<compile_context>
chip_gen: v5e
topology: v5e:2x2
jax: 0.10.0
libtpu: 0.0.40
codegen_flags: <defaults>
</compile_context>

<pallas_src>
import functools
import math

import jax
import jax.numpy as jnp
from jax.experimental import pallas as pl
from jax.experimental.pallas import tpu as pltpu


# ----------------------------- tiling helpers -----------------------------

def _tile(dim, target):
    """Largest tile <= target that divides dim (multiple of 8 sublanes)."""
    if dim <= target:
        return dim
    if dim % target == 0:
        return target
    for t in range(target - target % 8, 7, -8):
        if dim % t == 0:
            return t
    return dim


# ----------------------------- Pallas kernels -----------------------------

def _linear_kernel(x_ref, w_ref, b_ref, o_ref, acc_ref, *, act):
    """Tiled y = act(x @ w + b); grid = (M//tm, N//tn, K//tk), K last."""
    k = pl.program_id(2)
    part = jnp.dot(x_ref[...], w_ref[...], preferred_element_type=jnp.float32)

    @pl.when(k == 0)
    def _():
        acc_ref[...] = part          # direct write: no zero-fill + reload

    @pl.when(k > 0)
    def _():
        acc_ref[...] += part

    @pl.when(k == pl.num_programs(2) - 1)
    def _():
        z = acc_ref[...] + b_ref[...]
        if act == "gelu":
            # TODO(synk): HF BART uses exact (erf) gelu; tanh approximation is
            # used here for reliable Mosaic lowering on the EUP.
            c = math.sqrt(2.0 / math.pi)
            z = 0.5 * z * (1.0 + jnp.tanh(c * (z + 0.044715 * z * z * z)))
        o_ref[...] = z.astype(o_ref.dtype)


def _linear_add_ln_kernel(x_ref, res_ref, w_ref, b_ref, g_ref, bt_ref, o_ref,
                          acc_ref, *, eps):
    """K-tiled fused LayerNorm(residual + x @ w + b). Grid = (M//tm, K//tk)."""
    k = pl.program_id(1)
    part = jnp.dot(x_ref[...], w_ref[...], preferred_element_type=jnp.float32)

    @pl.when(k == 0)
    def _():
        acc_ref[...] = part

    @pl.when(k > 0)
    def _():
        acc_ref[...] += part

    @pl.when(k == pl.num_programs(1) - 1)
    def _():
        y = acc_ref[...] + b_ref[...] + res_ref[...].astype(jnp.float32)
        mu = jnp.mean(y, axis=-1, keepdims=True)
        var = jnp.mean((y - mu) * (y - mu), axis=-1, keepdims=True)
        o_ref[...] = ((y - mu) * jax.lax.rsqrt(var + eps) * g_ref[...]
                      + bt_ref[...]).astype(o_ref.dtype)


def _layernorm_kernel(x_ref, g_ref, b_ref, o_ref, *, eps):
    x = x_ref[...].astype(jnp.float32)
    mu = jnp.mean(x, axis=-1, keepdims=True)
    var = jnp.mean((x - mu) * (x - mu), axis=-1, keepdims=True)
    o_ref[...] = ((x - mu) * jax.lax.rsqrt(var + eps) * g_ref[...]
                  + b_ref[...]).astype(o_ref.dtype)


def _flash_attn_kernel(xq_ref, wq_ref, bq_ref, kv_ref, mask_ref, o_ref,
                       q_buf, o_buf, m_sc, l_sc, acc_sc,
                       *, H, Dh, scale, causal):
    """Flash-tiled multi-head attention with fused Q projection.

    xq_ref:  (1, tq, D)      bf16   pre-projection query activations
    wq/bq:   (D, D)/(1, D)          query projection
    kv_ref:  (1, tkv, 2*D)   bf16   fused K|V projection tile
    mask_ref:(1, 1, tkv)     f32    key-padding mask (1 = keep)
    grid = (B, Sq//tq, Skv//tkv); kv axis is the online-softmax reduction.
    """
    qi = pl.program_id(1)
    ki = pl.program_id(2)
    tq = xq_ref.shape[1]
    tkv = kv_ref.shape[1]
    D = H * Dh

    @pl.when(ki == 0)
    def _():
        # Q projection once per (b, q-tile); 1/sqrt(Dh) folded into q.
        q = jnp.dot(xq_ref[0], wq_ref[...], preferred_element_type=jnp.float32)
        q_buf[...] = ((q + bq_ref[...]) * scale).astype(q_buf.dtype)
        m_sc[...] = jnp.full_like(m_sc, -1e30)
        l_sc[...] = jnp.zeros_like(l_sc)
        acc_sc[...] = jnp.zeros_like(acc_sc)

    def _tile_update():
        kv = kv_ref[0]                                   # (tkv, 2D)
        mask = mask_ref[0]                               # (1, tkv)
        bias = jnp.where(mask > 0.5, 0.0, -1e9)
        if causal:
            r = jax.lax.broadcasted_iota(jnp.int32, (tq, tkv), 0) + qi * tq
            c = jax.lax.broadcasted_iota(jnp.int32, (tq, tkv), 1) + ki * tkv
            bias = bias + jnp.where(c <= r, 0.0, -1e9)   # per-tile iota only

        # TODO(synk): pack head pairs (128-deep contraction) or use a
        # (B, H, S, Dh) layout to avoid sub-128-lane head slices on v6e/v7x.
        for h in range(H):
            sl = slice(h * Dh, (h + 1) * Dh)
            q = q_buf[:, sl]                             # (tq, Dh) bf16
            k = kv[:, sl]                                # (tkv, Dh)
            v = kv[:, D + h * Dh:D + (h + 1) * Dh]       # (tkv, Dh)
            s = jax.lax.dot_general(q, k, (((1,), (1,)), ((), ())),
                                    preferred_element_type=jnp.float32)
            s = s + bias                                 # (tq, tkv)
            m_prev = m_sc[h]                             # (tq, 1)
            m_new = jnp.maximum(m_prev, jnp.max(s, axis=-1, keepdims=True))
            alpha = jnp.exp(m_prev - m_new)
            p = jnp.exp(s - m_new)
            l_sc[h] = alpha * l_sc[h] + jnp.sum(p, axis=-1, keepdims=True)
            acc_sc[h] = alpha * acc_sc[h] + jnp.dot(
                p.astype(v.dtype), v, preferred_element_type=jnp.float32)
            m_sc[h] = m_new

    if causal:
        # Skip KV tiles that are entirely in the future of this q tile.
        pl.when(ki * tkv <= qi * tq + (tq - 1))(_tile_update)
    else:
        _tile_update()

    @pl.when(ki == pl.num_programs(2) - 1)
    def _():
        for h in range(H):
            sl = slice(h * Dh, (h + 1) * Dh)
            o_buf[:, sl] = (acc_sc[h] / l_sc[h]).astype(o_buf.dtype)
        o_ref[0] = o_buf[...]


def _lm_head_ce_kernel(y_ref, e_ref, b_ref, lbl_ref, logits_ref, loss_ref,
                       acc_ref, m_sc, l_sc, t_sc):
    """Fused tied lm_head (y @ embed^T + bias) + per-token cross entropy.

    grid = (M//tm, Vp//tv, D//tk); logits tiles are consumed for the online
    logsumexp immediately after the D reduction — no HBM re-read of logits.
    """
    j = pl.program_id(1)
    k = pl.program_id(2)

    @pl.when(jnp.logical_and(j == 0, k == 0))
    def _():
        m_sc[...] = jnp.full_like(m_sc, -1e30)
        l_sc[...] = jnp.zeros_like(l_sc)
        t_sc[...] = jnp.zeros_like(t_sc)

    part = jax.lax.dot_general(y_ref[...], e_ref[...], (((1,), (1,)), ((), ())),
                               preferred_element_type=jnp.float32)

    @pl.when(k == 0)
    def _():
        acc_ref[...] = part

    @pl.when(k > 0)
    def _():
        acc_ref[...] += part

    @pl.when(k == pl.num_programs(2) - 1)
    def _():
        z = acc_ref[...] + b_ref[...]                    # (tm, tv) f32
        logits_ref[...] = z.astype(logits_ref.dtype)     # bf16 to HBM
        tv = z.shape[1]
        col = jax.lax.broadcasted_iota(jnp.int32, z.shape, 1) + j * tv
        lbl = lbl_ref[...]                               # (tm, 1) int32
        # target-logit gather without a dense one-hot
        t_sc[...] += jnp.sum(jnp.where(col == lbl, z, 0.0), axis=-1,
                             keepdims=True)
        m_new = jnp.maximum(m_sc[...], jnp.max(z, axis=-1, keepdims=True))
        l_sc[...] = (l_sc[...] * jnp.exp(m_sc[...] - m_new)
                     + jnp.sum(jnp.exp(z - m_new), axis=-1, keepdims=True))
        m_sc[...] = m_new

    @pl.when(jnp.logical_and(j == pl.num_programs(1) - 1,
                             k == pl.num_programs(2) - 1))
    def _():
        per = jnp.log(l_sc[...]) + m_sc[...] - t_sc[...]
        loss_ref[...] = jnp.where(lbl_ref[...] >= 0, per, 0.0)  # ignore=-100


# ----------------------------- kernel wrappers -----------------------------

# Tile targets are conservative so the same code fits v5e's 16 MiB and v7x's
# 32 MiB scoped VMEM; on v6e they can be raised (tm=512, tn/tk=1024) together
# with CompilerParams(vmem_limit_bytes=...).

def pallas_linear(x, w, b, act=None, out_dtype=jnp.bfloat16):
    M, K = x.shape
    N = w.shape[1]
    tm, tn, tk = _tile(M, 256), _tile(N, 512), _tile(K, 512)
    kern = functools.partial(_linear_kernel, act=act)
    return pl.pallas_call(
        kern,
        out_shape=jax.ShapeDtypeStruct((M, N), out_dtype),
        grid=(M // tm, N // tn, K // tk),
        in_specs=[
            pl.BlockSpec((tm, tk), lambda i, j, k: (i, k)),
            pl.BlockSpec((tk, tn), lambda i, j, k: (k, j)),
            pl.BlockSpec((1, tn), lambda i, j, k: (0, j)),
        ],
        out_specs=pl.BlockSpec((tm, tn), lambda i, j, k: (i, j)),
        scratch_shapes=[pltpu.VMEM((tm, tn), jnp.float32)],
        compiler_params=pltpu.CompilerParams(
            dimension_semantics=("parallel", "parallel", "arbitrary")),
    )(x, w, b)


def pallas_linear_add_ln(x, res, w, b, g, beta, eps=1e-5):
    """LayerNorm(res + x @ w + b): out-proj/fc2 + residual + LN, K-tiled."""
    M, K = x.shape
    D = w.shape[1]
    tm, tk = _tile(M, 256), _tile(K, 512)
    kern = functools.partial(_linear_add_ln_kernel, eps=eps)
    return pl.pallas_call(
        kern,
        out_shape=jax.ShapeDtypeStruct((M, D), jnp.bfloat16),
        grid=(M // tm, K // tk),
        in_specs=[
            pl.BlockSpec((tm, tk), lambda i, k: (i, k)),
            pl.BlockSpec((tm, D), lambda i, k: (i, 0)),
            pl.BlockSpec((tk, D), lambda i, k: (k, 0)),
            pl.BlockSpec((1, D), lambda i, k: (0, 0)),
            pl.BlockSpec((1, D), lambda i, k: (0, 0)),
            pl.BlockSpec((1, D), lambda i, k: (0, 0)),
        ],
        out_specs=pl.BlockSpec((tm, D), lambda i, k: (i, 0)),
        scratch_shapes=[pltpu.VMEM((tm, D), jnp.float32)],
        compiler_params=pltpu.CompilerParams(
            dimension_semantics=("parallel", "arbitrary")),
    )(x, res, w, b, g, beta)


def pallas_layernorm(x, g, b, eps=1e-5):
    M, D = x.shape
    tm = _tile(M, 512)
    kern = functools.partial(_layernorm_kernel, eps=eps)
    return pl.pallas_call(
        kern,
        out_shape=jax.ShapeDtypeStruct((M, D), jnp.bfloat16),
        grid=(M // tm,),
        in_specs=[
            pl.BlockSpec((tm, D), lambda i: (i, 0)),
            pl.BlockSpec((1, D), lambda i: (0, 0)),
            pl.BlockSpec((1, D), lambda i: (0, 0)),
        ],
        out_specs=pl.BlockSpec((tm, D), lambda i: (i, 0)),
        compiler_params=pltpu.CompilerParams(dimension_semantics=("parallel",)),
    )(x, g, b)


def pallas_flash_attention(x_q, wq, bq, kv, mask, H, Dh, scale, causal):
    B, Sq, D = x_q.shape
    Skv = kv.shape[1]
    tq = _tile(Sq, 128)
    tkv = _tile(Skv, 128)
    kern = functools.partial(_flash_attn_kernel, H=H, Dh=Dh, scale=scale,
                             causal=causal)
    return pl.pallas_call(
        kern,
        out_shape=jax.ShapeDtypeStruct((B, Sq, D), jnp.bfloat16),
        grid=(B, Sq // tq, Skv // tkv),
        in_specs=[
            pl.BlockSpec((1, tq, D), lambda b, qi, ki: (b, qi, 0)),
            pl.BlockSpec((D, D), lambda b, qi, ki: (0, 0)),
            pl.BlockSpec((1, D), lambda b, qi, ki: (0, 0)),
            pl.BlockSpec((1, tkv, 2 * D), lambda b, qi, ki: (b, ki, 0)),
            pl.BlockSpec((1, 1, tkv), lambda b, qi, ki: (b, 0, ki)),
        ],
        out_specs=pl.BlockSpec((1, tq, D), lambda b, qi, ki: (b, qi, 0)),
        scratch_shapes=[
            pltpu.VMEM((tq, D), jnp.bfloat16),       # projected/scaled Q
            pltpu.VMEM((tq, D), jnp.bfloat16),       # output staging
            pltpu.VMEM((H, tq, 1), jnp.float32),     # running max per head
            pltpu.VMEM((H, tq, 1), jnp.float32),     # running denom per head
            pltpu.VMEM((H, tq, Dh), jnp.float32),    # running numerator
        ],
        compiler_params=pltpu.CompilerParams(
            dimension_semantics=("parallel", "parallel", "arbitrary")),
    )(x_q, wq, bq, kv, mask)


def pallas_lm_head_ce(y, embed, bias, labels):
    """Fused tied lm_head + token-level CE. Returns (bf16 logits, f32 loss)."""
    M, D = y.shape
    V = embed.shape[0]
    tm, tk = _tile(M, 256), _tile(D, 512)
    tv_target = 512
    if V <= tv_target:
        tv, Vp = V, V
    else:
        tv = tv_target
        Vp = pl.cdiv(V, tv) * tv
        if Vp != V:
            # pad vocab so tv never falls back to the full V; padded columns
            # get bias -1e9 so they vanish from the logsumexp.
            embed = jnp.pad(embed, ((0, Vp - V), (0, 0)))
            bias = jnp.pad(bias, ((0, 0), (0, Vp - V)), constant_values=-1e9)

    logits, loss = pl.pallas_call(
        _lm_head_ce_kernel,
        out_shape=(jax.ShapeDtypeStruct((M, Vp), jnp.bfloat16),
                   jax.ShapeDtypeStruct((M, 1), jnp.float32)),
        grid=(M // tm, Vp // tv, D // tk),
        in_specs=[
            pl.BlockSpec((tm, tk), lambda i, j, k: (i, k)),
            pl.BlockSpec((tv, tk), lambda i, j, k: (j, k)),
            pl.BlockSpec((1, tv), lambda i, j, k: (0, j)),
            pl.BlockSpec((tm, 1), lambda i, j, k: (i, 0)),
        ],
        out_specs=(pl.BlockSpec((tm, tv), lambda i, j, k: (i, j)),
                   pl.BlockSpec((tm, 1), lambda i, j, k: (i, 0))),
        scratch_shapes=[pltpu.VMEM((tm, tv), jnp.float32),
                        pltpu.VMEM((tm, 1), jnp.float32),
                        pltpu.VMEM((tm, 1), jnp.float32),
                        pltpu.VMEM((tm, 1), jnp.float32)],
        compiler_params=pltpu.CompilerParams(
            dimension_semantics=("parallel", "arbitrary", "arbitrary")),
    )(y, embed, bias, labels)
    return logits, loss


# ----------------------------- model (glue in JAX) -----------------------------

def multi_head_attention(x_q, x_kv, mask, p, prefix, B, H, Dh, causal):
    D = H * Dh
    Sq = x_q.shape[0] // B
    Skv = x_kv.shape[0] // B
    # fused K|V projection (one HBM round-trip); Q projection is fused into
    # the attention kernel itself.
    kv = pallas_linear(x_kv, p[prefix + "_wkv"], p[prefix + "_bkv"])
    o = pallas_flash_attention(
        x_q.reshape(B, Sq, D), p[prefix + "_wq"], p[prefix + "_bq"],
        kv.reshape(B, Skv, 2 * D), mask, H, Dh, 1.0 / math.sqrt(Dh), causal)
    return o.reshape(B * Sq, D)           # pre output-projection (fused later)


def encoder_layer(x, enc_mask, p, i, B, H, Dh):
    pre = f"enc{i}"
    a = multi_head_attention(x, x, enc_mask, p, pre + "_self", B, H, Dh, False)
    x = pallas_linear_add_ln(a, x, p[pre + "_self_wo"], p[pre + "_self_bo"],
                             p[pre + "_ln1_g"], p[pre + "_ln1_b"])
    h = pallas_linear(x, p[pre + "_fc1_w"], p[pre + "_fc1_b"], act="gelu")
    x = pallas_linear_add_ln(h, x, p[pre + "_fc2_w"], p[pre + "_fc2_b"],
                             p[pre + "_ln2_g"], p[pre + "_ln2_b"])
    return x


def decoder_layer(y, enc_out, dec_mask, cross_mask, p, i, B, H, Dh):
    pre = f"dec{i}"
    a = multi_head_attention(y, y, dec_mask, p, pre + "_self", B, H, Dh, True)
    y = pallas_linear_add_ln(a, y, p[pre + "_self_wo"], p[pre + "_self_bo"],
                             p[pre + "_ln1_g"], p[pre + "_ln1_b"])
    a = multi_head_attention(y, enc_out, cross_mask, p, pre + "_cross",
                             B, H, Dh, False)
    y = pallas_linear_add_ln(a, y, p[pre + "_cross_wo"], p[pre + "_cross_bo"],
                             p[pre + "_ln2_g"], p[pre + "_ln2_b"])
    h = pallas_linear(y, p[pre + "_fc1_w"], p[pre + "_fc1_b"], act="gelu")
    y = pallas_linear_add_ln(h, y, p[pre + "_fc2_w"], p[pre + "_fc2_b"],
                             p[pre + "_ln3_g"], p[pre + "_ln3_b"])
    return y


def mybart_forward(params, input_ids, attention_mask, decoder_input_ids,
                   labels=None, *, H=4, n_enc=1, n_dec=1):
    p = params
    V, D = p["embed"].shape
    Dh = D // H
    B, Se = input_ids.shape
    Sd = decoder_input_ids.shape[1]

    # small per-key masks; the attention bias is built per-tile inside the kernel.
    enc_mask = attention_mask.astype(jnp.float32).reshape(B, 1, Se)
    cross_mask = enc_mask
    # HF BART: decoder_attention_mask defaults to None => causal mask only.
    dec_mask = jnp.ones((B, 1, Sd), jnp.float32)

    # ---- encoder ----
    pos_e = jnp.arange(Se) + 2                                   # BART pos offset
    x = (jnp.take(p["embed"], input_ids, axis=0)
         + jnp.take(p["pos"], pos_e, axis=0)[None])
    x = x.reshape(B * Se, D).astype(jnp.bfloat16)
    x = pallas_layernorm(x, p["ln_emb_enc_g"], p["ln_emb_enc_b"])
    for i in range(n_enc):
        x = encoder_layer(x, enc_mask, p, i, B, H, Dh)
    enc_out = x

    # ---- decoder ----
    pos_d = jnp.arange(Sd) + 2
    y = (jnp.take(p["embed"], decoder_input_ids, axis=0)
         + jnp.take(p["pos"], pos_d, axis=0)[None])
    y = y.reshape(B * Sd, D).astype(jnp.bfloat16)
    y = pallas_layernorm(y, p["ln_emb_dec_g"], p["ln_emb_dec_b"])
    for i in range(n_dec):
        y = decoder_layer(y, enc_out, dec_mask, cross_mask, p, i, B, H, Dh)

    # fused tied lm_head + cross entropy (logits never re-read from HBM).
    if labels is None:
        lbl = jnp.full((B * Sd, 1), -100, jnp.int32)
    else:
        lbl = labels.reshape(-1, 1).astype(jnp.int32)
    logits, per_tok = pallas_lm_head_ce(y, p["embed"], p["final_logits_bias"],
                                        lbl)
    logits_out = logits[:, :V].reshape(B, Sd, V)

    loss = None
    if labels is not None:
        valid = jnp.sum((lbl >= 0).astype(jnp.float32))
        loss = jnp.sum(per_tok) / jnp.maximum(valid, 1.0)
    return loss, logits_out


# ----------------------------- parameter init -----------------------------

def init_params(key, V, D, H, F, n_enc, n_dec, max_pos):
    # TODO(synk): real MyBart loads pretrained weights via from_pretrained;
    # here parameters are randomly initialized with the same structure.
    p = {}
    cnt = [0]

    def nrm(shape, std=0.02, dtype=jnp.bfloat16):
        cnt[0] += 1
        w = std * jax.random.normal(jax.random.fold_in(key, cnt[0]), shape,
                                    jnp.float32)
        return w.astype(dtype)

    zeros = lambda s: jnp.zeros(s, jnp.float32)
    ones = lambda s: jnp.ones(s, jnp.float32)

    p["embed"] = nrm((V, D))
    p["pos"] = nrm((max_pos + 2, D))
    p["ln_emb_enc_g"], p["ln_emb_enc_b"] = ones((1, D)), zeros((1, D))
    p["ln_emb_dec_g"], p["ln_emb_dec_b"] = ones((1, D)), zeros((1, D))
    p["final_logits_bias"] = zeros((1, V))

    def attn(prefix):
        p[prefix + "_wq"], p[prefix + "_bq"] = nrm((D, D)), zeros((1, D))
        p[prefix + "_wkv"], p[prefix + "_bkv"] = nrm((D, 2 * D)), zeros((1, 2 * D))
        p[prefix + "_wo"], p[prefix + "_bo"] = nrm((D, D)), zeros((1, D))

    for i in range(n_enc):
        pre = f"enc{i}"
        attn(pre + "_self")
        p[pre + "_fc1_w"], p[pre + "_fc1_b"] = nrm((D, F)), zeros((1, F))
        p[pre + "_fc2_w"], p[pre + "_fc2_b"] = nrm((F, D)), zeros((1, D))
        for j in (1, 2):
            p[pre + f"_ln{j}_g"], p[pre + f"_ln{j}_b"] = ones((1, D)), zeros((1, D))

    for i in range(n_dec):
        pre = f"dec{i}"
        attn(pre + "_self")
        attn(pre + "_cross")
        p[pre + "_fc1_w"], p[pre + "_fc1_b"] = nrm((D, F)), zeros((1, F))
        p[pre + "_fc2_w"], p[pre + "_fc2_b"] = nrm((F, D)), zeros((1, D))
        for j in (1, 2, 3):
            p[pre + f"_ln{j}_g"], p[pre + f"_ln{j}_b"] = ones((1, D)), zeros((1, D))
    return p


# ----------------------------- main -----------------------------

if __name__ == "__main__":
    V, D, H, F = 64, 32, 4, 64
    B, Se, Sd = 2, 8, 8

    root = jax.random.PRNGKey(0)
    kp, kin = jax.random.split(root)
    params = init_params(kp, V, D, H, F, n_enc=1, n_dec=1, max_pos=32)

    k1, k2, k3 = jax.random.split(kin, 3)
    input_ids = jax.random.randint(k1, (B, Se), 0, V)
    attention_mask = jnp.ones((B, Se), jnp.int32).at[:, -2:].set(0)  # last 2 padded
    decoder_input_ids = jax.random.randint(k2, (B, Sd), 0, V)
    labels = jax.random.randint(k3, (B, Sd), 0, V)

    fwd = jax.jit(functools.partial(mybart_forward, H=H, n_enc=1, n_dec=1))
    loss, logits = fwd(params, input_ids, attention_mask, decoder_input_ids,
                       labels)
    jax.block_until_ready(loss)
    jax.block_until_ready(logits)
    assert logits.shape == (B, Sd, V)
    assert bool(jnp.isfinite(loss))
    print("KERNEL_OK")
</pallas_src>

<mosaic_0001>
module attributes {stable_mosaic.version = 11 : i64} {
  func.func @_linear_kernel(%arg0: i32, %arg1: i32, %arg2: i32, %arg3: memref<16x32xbf16, #tpu.memory_space<vmem>>, %arg4: memref<32x64xbf16, #tpu.memory_space<vmem>>, %arg5: memref<1x64xf32, #tpu.memory_space<vmem>>, %arg6: memref<16x64xbf16, #tpu.memory_space<vmem>>, %arg7: memref<16x64xf32, #tpu.memory_space<vmem>>) attributes {dimension_semantics = [#tpu.dimension_semantics<parallel>, #tpu.dimension_semantics<parallel>, #tpu.dimension_semantics<arbitrary>], iteration_bounds = array<i64: 1, 1, 1>, scalar_prefetch = 0 : i64, scratch_operands = 1 : i64, tpu.core_type = #tpu.core_type<tc>, window_params = [{transform_indices = @transform_0, window_bounds = array<i64: 16, 32>}, {transform_indices = @transform_1, window_bounds = array<i64: 32, 64>}, {transform_indices = @transform_2, window_bounds = array<i64: 1, 64>}, {transform_indices = @transform_3, window_bounds = array<i64: 16, 64>}]} {
    %c0 = arith.constant 0 : index
    %c0_0 = arith.constant 0 : index
    %0 = vector.load %arg3[%c0, %c0_0] : memref<16x32xbf16, #tpu.memory_space<vmem>>, vector<16x32xbf16>
    %c0_1 = arith.constant 0 : index
    %c0_2 = arith.constant 0 : index
    %1 = vector.load %arg4[%c0_1, %c0_2] : memref<32x64xbf16, #tpu.memory_space<vmem>>, vector<32x64xbf16>
    %cst = arith.constant dense<0.000000e+00> : vector<16x64xf32>
    %2 = tpu.matmul %0, %1, %cst {dimension_numbers = #tpu.dot_dimension_numbers<[1], [0], [0], [1], [0, 0, 1, 1], [], []>} : vector<16x32xbf16>, vector<32x64xbf16>, vector<16x64xf32> -> vector<16x64xf32>
    %c0_i32 = arith.constant 0 : i32
    %3 = arith.cmpi eq, %arg2, %c0_i32 : i32
    %4 = arith.extui %3 : i1 to i32
    %c0_i32_3 = arith.constant 0 : i32
    %5 = arith.cmpi ne, %4, %c0_i32_3 : i32
    scf.if %5 {
      %c0_8 = arith.constant 0 : index
      %c0_9 = arith.constant 0 : index
      %12 = vector.load %arg7[%c0_8, %c0_9] : memref<16x64xf32, #tpu.memory_space<vmem>>, vector<16x64xf32>
      tpu.vector_store %arg7[%c0_8, %c0_9], %2 {strides = array<i32>} : memref<16x64xf32, #tpu.memory_space<vmem>>, vector<16x64xf32>,
    } else {
    }
    %c0_i32_4 = arith.constant 0 : i32
    %6 = arith.cmpi sgt, %arg2, %c0_i32_4 : i32
    %7 = arith.extui %6 : i1 to i32
    %c0_i32_5 = arith.constant 0 : i32
    %8 = arith.cmpi ne, %7, %c0_i32_5 : i32
    scf.if %8 {
      %c0_8 = arith.constant 0 : index
      %c0_9 = arith.constant 0 : index
      %12 = vector.load %arg7[%c0_8, %c0_9] : memref<16x64xf32, #tpu.memory_space<vmem>>, vector<16x64xf32>
      %13 = arith.addf %12, %2 : vector<16x64xf32>
      %c0_10 = arith.constant 0 : index
      %c0_11 = arith.constant 0 : index
      %14 = vector.load %arg7[%c0_10, %c0_11] : memref<16x64xf32, #tpu.memory_space<vmem>>, vector<16x64xf32>
      tpu.vector_store %arg7[%c0_10, %c0_11], %13 {strides = array<i32>} : memref<16x64xf32, #tpu.memory_space<vmem>>, vector<16x64xf32>,
    } else {
    }
    %c0_i32_6 = arith.constant 0 : i32
    %9 = arith.cmpi eq, %arg2, %c0_i32_6 : i32
    %10 = arith.extui %9 : i1 to i32
    %c0_i32_7 = arith.constant 0 : i32
    %11 = arith.cmpi ne, %10, %c0_i32_7 : i32
    scf.if %11 {
      %c0_8 = arith.constant 0 : index
      %c0_9 = arith.constant 0 : index
      %12 = vector.load %arg7[%c0_8, %c0_9] : memref<16x64xf32, #tpu.memory_space<vmem>>, vector<16x64xf32>
      %c0_10 = arith.constant 0 : index
      %c0_11 = arith.constant 0 : index
      %13 = vector.load %arg5[%c0_10, %c0_11] : memref<1x64xf32, #tpu.memory_space<vmem>>, vector<1x64xf32>
      %14 = vector.broadcast %13 : vector<1x64xf32> to vector<16x64xf32>
      %15 = arith.addf %12, %14 : vector<16x64xf32>
      %16 = arith.truncf %15 : vector<16x64xf32> to vector<16x64xbf16>
      %c0_12 = arith.constant 0 : index
      %c0_13 = arith.constant 0 : index
      %17 = vector.load %arg6[%c0_12, %c0_13] : memref<16x64xbf16, #tpu.memory_space<vmem>>, vector<16x64xbf16>
      tpu.vector_store %arg6[%c0_12, %c0_13], %16 {strides = array<i32>} : memref<16x64xbf16, #tpu.memory_space<vmem>>, vector<16x64xbf16>,
    } else {
    }
    return
  }
  func.func @transform_0(%arg0: i32, %arg1: i32, %arg2: i32) -> (i32, i32) {
    %c0_i32 = arith.constant 0 : i32
    return %arg0, %arg2 : i32, i32
  }
  func.func @transform_1(%arg0: i32, %arg1: i32, %arg2: i32) -> (i32, i32) {
    %c0_i32 = arith.constant 0 : i32
    return %arg2, %arg1 : i32, i32
  }
  func.func @transform_2(%arg0: i32, %arg1: i32, %arg2: i32) -> (i32, i32) {
    %c0_i32 = arith.constant 0 : i32
    %c0_i32_0 = arith.constant 0 : i32
    return %c0_i32, %arg1 : i32, i32
  }
  func.func @transform_3(%arg0: i32, %arg1: i32, %arg2: i32) -> (i32, i32) {
    %c0_i32 = arith.constant 0 : i32
    return %arg0, %arg1 : i32, i32
  }
}

module attributes {stable_mosaic.version = 11 : i64} {
  func.func @_layernorm_kernel(%arg0: i32, %arg1: memref<16x32xbf16, #tpu.memory_space<vmem>>, %arg2: memref<1x32xf32, #tpu.memory_space<vmem>>, %arg3: memref<1x32xf32, #tpu.memory_space<vmem>>, %arg4: memref<16x32xbf16, #tpu.memory_space<vmem>>) attributes {dimension_semantics = [#tpu.dimension_semantics<parallel>], iteration_bounds = array<i64: 1>, scalar_prefetch = 0 : i64, scratch_operands = 0 : i64, tpu.core_type = #tpu.core_type<tc>, window_params = [{transform_indices = @transform_0, window_bounds = array<i64: 16, 32>}, {pipeline_mode = #tpu.pipeline_mode<synchronous>, transform_indices = @transform_1, window_bounds = array<i64: 1, 32>}, {pipeline_mode = #tpu.pipeline_mode<synchronous>, transform_indices = @transform_2, window_bounds = array<i64: 1, 32>}, {transform_indices = @transform_3, window_bounds = array<i64: 16, 32>}]} {
    %c0 = arith.constant 0 : index
    %c0_0 = arith.constant 0 : index
    %0 = vector.load %arg1[%c0, %c0_0] : memref<16x32xbf16, #tpu.memory_space<vmem>>, vector<16x32xbf16>
    %1 = arith.extf %0 : vector<16x32xbf16> to vector<16x32xf32>
    %cst = arith.constant dense<0.000000e+00> : vector<16xf32>
    %2 = vector.multi_reduction <add>, %1, %cst [1] : vector<16x32xf32> to vector<16xf32>
    %3 = vector.shape_cast %2 : vector<16xf32> to vector<16x1xf32>
    %cst_1 = arith.constant 3.200000e+01 : f32
    %4 = vector.broadcast %cst_1 : f32 to vector<16x1xf32>
    %5 = arith.divf %3, %4 : vector<16x1xf32>
    %6 = vector.broadcast %5 : vector<16x1xf32> to vector<16x32xf32>
    %7 = arith.subf %1, %6 : vector<16x32xf32>
    %8 = vector.broadcast %5 : vector<16x1xf32> to vector<16x32xf32>
    %9 = arith.subf %1, %8 : vector<16x32xf32>
    %10 = arith.mulf %7, %9 : vector<16x32xf32>
    %cst_2 = arith.constant dense<0.000000e+00> : vector<16xf32>
    %11 = vector.multi_reduction <add>, %10, %cst_2 [1] : vector<16x32xf32> to vector<16xf32>
    %12 = vector.shape_cast %11 : vector<16xf32> to vector<16x1xf32>
    %cst_3 = arith.constant 3.200000e+01 : f32
    %13 = vector.broadcast %cst_3 : f32 to vector<16x1xf32>
    %14 = arith.divf %12, %13 : vector<16x1xf32>
    %15 = vector.broadcast %5 : vector<16x1xf32> to vector<16x32xf32>
    %16 = arith.subf %1, %15 : vector<16x32xf32>
    %cst_4 = arith.constant 9.99999974E-6 : f32
    %17 = vector.broadcast %cst_4 : f32 to vector<16x1xf32>
    %18 = arith.addf %14, %17 : vector<16x1xf32>
    %19 = math.rsqrt %18 : vector<16x1xf32>
    %20 = vector.broadcast %19 : vector<16x1xf32> to vector<16x32xf32>
    %21 = arith.mulf %16, %20 : vector<16x32xf32>
    %c0_5 = arith.constant 0 : index
    %c0_6 = arith.constant 0 : index
    %22 = vector.load %arg2[%c0_5, %c0_6] : memref<1x32xf32, #tpu.memory_space<vmem>>, vector<1x32xf32>
    %23 = vector.broadcast %22 : vector<1x32xf32> to vector<16x32xf32>
    %24 = arith.mulf %21, %23 : vector<16x32xf32>
    %c0_7 = arith.constant 0 : index
    %c0_8 = arith.constant 0 : index
    %25 = vector.load %arg3[%c0_7, %c0_8] : memref<1x32xf32, #tpu.memory_space<vmem>>, vector<1x32xf32>
    %26 = vector.broadcast %25 : vector<1x32xf32> to vector<16x32xf32>
    %27 = arith.addf %24, %26 : vector<16x32xf32>
    %28 = arith.truncf %27 : vector<16x32xf32> to vector<16x32xbf16>
    %c0_9 = arith.constant 0 : index
    %c0_10 = arith.constant 0 : index
    %29 = vector.load %arg4[%c0_9, %c0_10] : memref<16x32xbf16, #tpu.memory_space<vmem>>, vector<16x32xbf16>
    tpu.vector_store %arg4[%c0_9, %c0_10], %28 {strides = array<i32>} : memref<16x32xbf16, #tpu.memory_space<vmem>>, vector<16x32xbf16>,
    return
  }
  func.func @transform_0(%arg0: i32) -> (i32, i32) {
    %c0_i32 = arith.constant 0 : i32
    %c0_i32_0 = arith.constant 0 : i32
    return %arg0, %c0_i32 : i32, i32
  }
  func.func @transform_1(%arg0: i32) -> (i32, i32) {
    %c0_i32 = arith.constant 0 : i32
    %c0_i32_0 = arith.constant 0 : i32
    %c0_i32_1 = arith.constant 0 : i32
    return %c0_i32, %c0_i32_0 : i32, i32
  }
  func.func @transform_2(%arg0: i32) -> (i32, i32) {
    %c0_i32 = arith.constant 0 : i32
    %c0_i32_0 = arith.constant 0 : i32
    %c0_i32_1 = arith.constant 0 : i32
    return %c0_i32, %c0_i32_0 : i32, i32
  }
  func.func @transform_3(%arg0: i32) -> (i32, i32) {
    %c0_i32 = arith.constant 0 : i32
    %c0_i32_0 = arith.constant 0 : i32
    return %arg0, %c0_i32 : i32, i32
  }
}

module attributes {stable_mosaic.version = 11 : i64} {
  func.func @_flash_attn_kernel(%arg0: i32, %arg1: i32, %arg2: i32, %arg3: memref<1x8x32xbf16, #tpu.memory_space<vmem>>, %arg4: memref<32x32xbf16, #tpu.memory_space<vmem>>, %arg5: memref<1x32xf32, #tpu.memory_space<vmem>>, %arg6: memref<1x8x64xbf16, #tpu.memory_space<vmem>>, %arg7: memref<1x1x8xf32, #tpu.memory_space<vmem>>, %arg8: memref<1x8x32xbf16, #tpu.memory_space<vmem>>, %arg9: memref<8x32xbf16, #tpu.memory_space<vmem>>, %arg10: memref<8x32xbf16, #tpu.memory_space<vmem>>, %arg11: memref<4x8x1xf32, #tpu.memory_space<vmem>>, %arg12: memref<4x8x1xf32, #tpu.memory_space<vmem>>, %arg13: memref<4x8x8xf32, #tpu.memory_space<vmem>>) attributes {dimension_semantics = [#tpu.dimension_semantics<parallel>, #tpu.dimension_semantics<parallel>, #tpu.dimension_semantics<arbitrary>], iteration_bounds = array<i64: 2, 1, 1>, scalar_prefetch = 0 : i64, scratch_operands = 5 : i64, tpu.core_type = #tpu.core_type<tc>, window_params = [{transform_indices = @transform_0, window_bounds = array<i64: 1, 8, 32>}, {pipeline_mode = #tpu.pipeline_mode<synchronous>, transform_indices = @transform_1, window_bounds = array<i64: 32, 32>}, {pipeline_mode = #tpu.pipeline_mode<synchronous>, transform_indices = @transform_2, window_bounds = array<i64: 1, 32>}, {transform_indices = @transform_3, window_bounds = array<i64: 1, 8, 64>}, {transform_indices = @transform_4, window_bounds = array<i64: 1, 1, 8>}, {transform_indices = @transform_5, window_bounds = array<i64: 1, 8, 32>}]} {
    %c0_i32 = arith.constant 0 : i32
    %0 = arith.cmpi eq, %arg2, %c0_i32 : i32
    %1 = arith.extui %0 : i1 to i32
    %c0_i32_0 = arith.constant 0 : i32
    %2 = arith.cmpi ne, %1, %c0_i32_0 : i32
    scf.if %2 {
      %c0 = arith.constant 0 : index
      %c0_5 = arith.constant 0 : index
      %c0_6 = arith.constant 0 : index
      %12 = vector.load %arg3[%c0, %c0_5, %c0_6] : memref<1x8x32xbf16, #tpu.memory_space<vmem>>, vector<1x8x32xbf16>
      %13 = vector.shape_cast %12 : vector<1x8x32xbf16> to vector<8x32xbf16>
      %c0_7 = arith.constant 0 : index
      %c0_8 = arith.constant 0 : index
      %14 = vector.load %arg4[%c0_7, %c0_8] : memref<32x32xbf16, #tpu.memory_space<vmem>>, vector<32x32xbf16>
      %cst = arith.constant dense<0.000000e+00> : vector<8x32xf32>
      %15 = tpu.matmul %13, %14, %cst {dimension_numbers = #tpu.dot_dimension_numbers<[1], [0], [0], [1], [0, 0, 1, 1], [], []>} : vector<8x32xbf16>, vector<32x32xbf16>, vector<8x32xf32> -> vector<8x32xf32>
      %c0_9 = arith.constant 0 : index
      %c0_10 = arith.constant 0 : index
      %16 = vector.load %arg5[%c0_9, %c0_10] : memref<1x32xf32, #tpu.memory_space<vmem>>, vector<1x32xf32>
      %17 = vector.broadcast %16 : vector<1x32xf32> to vector<8x32xf32>
      %18 = arith.addf %15, %17 : vector<8x32xf32>
      %cst_11 = arith.constant 0.353553385 : f32
      %19 = vector.broadcast %cst_11 : f32 to vector<8x32xf32>
      %20 = arith.mulf %18, %19 : vector<8x32xf32>
      %21 = arith.truncf %20 : vector<8x32xf32> to vector<8x32xbf16>
      %c0_12 = arith.constant 0 : index
      %c0_13 = arith.constant 0 : index
      %22 = vector.load %arg9[%c0_12, %c0_13] : memref<8x32xbf16, #tpu.memory_space<vmem>>, vector<8x32xbf16>
      tpu.vector_store %arg9[%c0_12, %c0_13], %21 {strides = array<i32>} : memref<8x32xbf16, #tpu.memory_space<vmem>>, vector<8x32xbf16>,
      %cst_14 = arith.constant -1.000000e+30 : f32
      %23 = vector.broadcast %cst_14 : f32 to vector<4x8x1xf32>
      %c0_15 = arith.constant 0 : index
      %c0_16 = arith.constant 0 : index
      %c0_17 = arith.constant 0 : index
      %24 = vector.load %arg11[%c0_15, %c0_16, %c0_17] : memref<4x8x1xf32, #tpu.memory_space<vmem>>, vector<4x8x1xf32>
      tpu.vector_store %arg11[%c0_15, %c0_16, %c0_17], %23 {strides = array<i32>} : memref<4x8x1xf32, #tpu.memory_space<vmem>>, vector<4x8x1xf32>,
      %cst_18 = arith.constant 0.000000e+00 : f32
      %25 = vector.broadcast %cst_18 : f32 to vector<4x8x1xf32>
      %c0_19 = arith.constant 0 : index
      %c0_20 = arith.constant 0 : index
      %c0_21 = arith.constant 0 : index
      %26 = vector.load %arg12[%c0_19, %c0_20, %c0_21] : memref<4x8x1xf32, #tpu.memory_space<vmem>>, vector<4x8x1xf32>
      tpu.vector_store %arg12[%c0_19, %c0_20, %c0_21], %25 {strides = array<i32>} : memref<4x8x1xf32, #tpu.memory_space<vmem>>, vector<4x8x1xf32>,
      %cst_22 = arith.constant 0.000000e+00 : f32
      %27 = vector.broadcast %cst_22 : f32 to vector<4x8x8xf32>
      %c0_23 = arith.constant 0 : index
      %c0_24 = arith.constant 0 : index
      %c0_25 = arith.constant 0 : index
      %28 = vector.load %arg13[%c0_23, %c0_24, %c0_25] : memref<4x8x8xf32, #tpu.memory_space<vmem>>, vector<4x8x8xf32>
      tpu.vector_store %arg13[%c0_23, %c0_24, %c0_25], %27 {strides = array<i32>} : memref<4x8x8xf32, #tpu.memory_space<vmem>>, vector<4x8x8xf32>,
    } else {
    }
    %c8_i32 = arith.constant 8 : i32
    %3 = arith.muli %arg2, %c8_i32 : i32
    %c8_i32_1 = arith.constant 8 : i32
    %4 = arith.muli %arg1, %c8_i32_1 : i32
    %c7_i32 = arith.constant 7 : i32
    %5 = arith.addi %4, %c7_i32 : i32
    %6 = arith.cmpi sle, %3, %5 : i32
    %7 = arith.extui %6 : i1 to i32
    %c0_i32_2 = arith.constant 0 : i32
    %8 = arith.cmpi ne, %7, %c0_i32_2 : i32
    scf.if %8 {
      %c0 = arith.constant 0 : index
      %c0_5 = arith.constant 0 : index
      %c0_6 = arith.constant 0 : index
      %12 = vector.load %arg6[%c0, %c0_5, %c0_6] : memref<1x8x64xbf16, #tpu.memory_space<vmem>>, vector<1x8x64xbf16>
      %13 = vector.shape_cast %12 : vector<1x8x64xbf16> to vector<8x64xbf16>
      %c0_7 = arith.constant 0 : index
      %c0_8 = arith.constant 0 : index
      %c0_9 = arith.constant 0 : index
      %14 = vector.load %arg7[%c0_7, %c0_8, %c0_9] : memref<1x1x8xf32, #tpu.memory_space<vmem>>, vector<1x1x8xf32>
      %15 = vector.shape_cast %14 : vector<1x1x8xf32> to vector<1x8xf32>
      %cst = arith.constant 5.000000e-01 : f32
      %16 = vector.broadcast %cst : f32 to vector<1x8xf32>
      %17 = arith.cmpf ogt, %15, %16 : vector<1x8xf32>
      %cst_10 = arith.constant 0.000000e+00 : f32
      %cst_11 = arith.constant -1.000000e+09 : f32
      %18 = vector.broadcast %cst_10 : f32 to vector<1x8xf32>
      %19 = vector.broadcast %cst_11 : f32 to vector<1x8xf32>
      %20 = arith.select %17, %18, %19 : vector<1x8xi1>, vector<1x8xf32>
      %21 = tpu.iota {dimensions = array<i32: 0>} : vector<8x8xi32>
      %c8_i32_12 = arith.constant 8 : i32
      %22 = arith.muli %arg1, %c8_i32_12 : i32
      %23 = vector.broadcast %22 : i32 to vector<8x8xi32>
      %24 = arith.addi %21, %23 : vector<8x8xi32>
      %25 = tpu.iota {dimensions = array<i32: 1>} : vector<8x8xi32>
      %c8_i32_13 = arith.constant 8 : i32
      %26 = arith.muli %arg2, %c8_i32_13 : i32
      %27 = vector.broadcast %26 : i32 to vector<8x8xi32>
      %28 = arith.addi %25, %27 : vector<8x8xi32>
      %29 = arith.cmpi sle, %28, %24 : vector<8x8xi32>
      %cst_14 = arith.constant 0.000000e+00 : f32
      %cst_15 = arith.constant -1.000000e+09 : f32
      %30 = vector.broadcast %cst_14 : f32 to vector<8x8xf32>
      %31 = vector.broadcast %cst_15 : f32 to vector<8x8xf32>
      %32 = arith.select %29, %30, %31 : vector<8x8xi1>, vector<8x8xf32>
      %33 = vector.broadcast %20 : vector<1x8xf32> to vector<8x8xf32>
      %34 = arith.addf %33, %32 : vector<8x8xf32>
      %c0_16 = arith.constant 0 : index
      %c0_17 = arith.constant 0 : index
      %35 = vector.load %arg9[%c0_16, %c0_17] : memref<8x32xbf16, #tpu.memory_space<vmem>>, vector<8x8xbf16>
      %36 = vector.extract_strided_slice %13 {offsets = [0, 0], sizes = [8, 8], strides = [1, 1]} : vector<8x64xbf16> to vector<8x8xbf16>
      %37 = vector.extract_strided_slice %13 {offsets = [0, 32], sizes = [8, 8], strides = [1, 1]} : vector<8x64xbf16> to vector<8x8xbf16>
      %cst_18 = arith.constant dense<0.000000e+00> : vector<8x8xf32>
      %38 = tpu.matmul %35, %36, %cst_18 {dimension_numbers = #tpu.dot_dimension_numbers<[1], [1], [0], [0], [0, 0, 1, 0], [], []>} : vector<8x8xbf16>, vector<8x8xbf16>, vector<8x8xf32> -> vector<8x8xf32>
      %39 = arith.addf %38, %34 : vector<8x8xf32>
      %c0_19 = arith.constant 0 : index
      %c0_20 = arith.constant 0 : index
      %c0_21 = arith.constant 0 : index
      %40 = vector.load %arg11[%c0_19, %c0_20, %c0_21] : memref<4x8x1xf32, #tpu.memory_space<vmem>>, vector<1x8x1xf32>
      %41 = vector.shape_cast %40 : vector<1x8x1xf32> to vector<8x1xf32>
      %cst_22 = arith.constant dense<0xFF800000> : vector<8xf32>
      %42 = vector.multi_reduction <maximumf>, %39, %cst_22 [1] : vector<8x8xf32> to vector<8xf32>
      %43 = vector.shape_cast %42 : vector<8xf32> to vector<8x1xf32>
      %44 = arith.maximumf %41, %43 : vector<8x1xf32>
      %45 = arith.subf %41, %44 : vector<8x1xf32>
      %46 = math.exp %45 : vector<8x1xf32>
      %47 = vector.broadcast %44 : vector<8x1xf32> to vector<8x8xf32>
      %48 = arith.subf %39, %47 : vector<8x8xf32>
      %49 = math.exp %48 : vector<8x8xf32>
      %c0_23 = arith.constant 0 : index
      %c0_24 = arith.constant 0 : index
      %c0_25 = arith.constant 0 : index
      %50 = vector.load %arg12[%c0_23, %c0_24, %c0_25] : memref<4x8x1xf32, #tpu.memory_space<vmem>>, vector<1x8x1xf32>
      %51 = vector.shape_cast %50 : vector<1x8x1xf32> to vector<8x1xf32>
      %52 = arith.mulf %46, %51 : vector<8x1xf32>
      %cst_26 = arith.constant dense<0.000000e+00> : vector<8xf32>
      %53 = vector.multi_reduction <add>, %49, %cst_26 [1] : vector<8x8xf32> to vector<8xf32>
      %54 = vector.shape_cast %53 : vector<8xf32> to vector<8x1xf32>
      %55 = arith.addf %52, %54 : vector<8x1xf32>
      %c0_27 = arith.constant 0 : index
      %c0_28 = arith.constant 0 : index
      %c0_29 = arith.constant 0 : index
      %56 = vector.load %arg12[%c0_27, %c0_28, %c0_29] : memref<4x8x1xf32, #tpu.memory_space<vmem>>, vector<1x8x1xf32>
      %57 = vector.shape_cast %56 : vector<1x8x1xf32> to vector<8x1xf32>
      %58 = vector.shape_cast %55 : vector<8x1xf32> to vector<1x8x1xf32>
      tpu.vector_store %arg12[%c0_27, %c0_28, %c0_29], %58 {strides = array<i32>} : memref<4x8x1xf32, #tpu.memory_space<vmem>>, vector<1x8x1xf32>,
      %c0_30 = arith.constant 0 : index
      %c0_31 = arith.constant 0 : index
      %c0_32 = arith.constant 0 : index
      %59 = vector.load %arg13[%c0_30, %c0_31, %c0_32] : memref<4x8x8xf32, #tpu.memory_space<vmem>>, vector<1x8x8xf32>
      %60 = vector.shape_cast %59 : vector<1x8x8xf32> to vector<8x8xf32>
      %61 = vector.broadcast %46 : vector<8x1xf32> to vector<8x8xf32>
      %62 = arith.mulf %61, %60 : vector<8x8xf32>
      %63 = arith.truncf %49 : vector<8x8xf32> to vector<8x8xbf16>
      %cst_33 = arith.constant dense<0.000000e+00> : vector<8x8xf32>
      %64 = tpu.matmul %63, %37, %cst_33 {dimension_numbers = #tpu.dot_dimension_numbers<[1], [0], [0], [1], [0, 0, 1, 1], [], []>} : vector<8x8xbf16>, vector<8x8xbf16>, vector<8x8xf32> -> vector<8x8xf32>
      %65 = arith.addf %62, %64 : vector<8x8xf32>
      %c0_34 = arith.constant 0 : index
      %c0_35 = arith.constant 0 : index
      %c0_36 = arith.constant 0 : index
      %66 = vector.load %arg13[%c0_34, %c0_35, %c0_36] : memref<4x8x8xf32, #tpu.memory_space<vmem>>, vector<1x8x8xf32>
      %67 = vector.shape_cast %66 : vector<1x8x8xf32> to vector<8x8xf32>
      %68 = vector.shape_cast %65 : vector<8x8xf32> to vector<1x8x8xf32>
      tpu.vector_store %arg13[%c0_34, %c0_35, %c0_36], %68 {strides = array<i32>} : memref<4x8x8xf32, #tpu.memory_space<vmem>>, vector<1x8x8xf32>,
      %c0_37 = arith.constant 0 : index
      %c0_38 = arith.constant 0 : index
      %c0_39 = arith.constant 0 : index
      %69 = vector.load %arg11[%c0_37, %c0_38, %c0_39] : memref<4x8x1xf32, #tpu.memory_space<vmem>>, vector<1x8x1xf32>
      %70 = vector.shape_cast %69 : vector<1x8x1xf32> to vector<8x1xf32>
      %71 = vector.shape_cast %44 : vector<8x1xf32> to vector<1x8x1xf32>
      tpu.vector_store %arg11[%c0_37, %c0_38, %c0_39], %71 {strides = array<i32>} : memref<4x8x1xf32, #tpu.memory_space<vmem>>, vector<1x8x1xf32>,
      %c0_40 = arith.constant 0 : index
      %c8 = arith.constant 8 : index
      %72 = vector.load %arg9[%c0_40, %c8] : memref<8x32xbf16, #tpu.memory_space<vmem>>, vector<8x8xbf16>
      %73 = vector.extract_strided_slice %13 {offsets = [0, 8], sizes = [8, 8], strides = [1, 1]} : vector<8x64xbf16> to vector<8x8xbf16>
      %74 = vector.extract_strided_slice %13 {offsets = [0, 40], sizes = [8, 8], strides = [1, 1]} : vector<8x64xbf16> to vector<8x8xbf16>
      %cst_41 = arith.constant dense<0.000000e+00> : vector<8x8xf32>
      %75 = tpu.matmul %72, %73, %cst_41 {dimension_numbers = #tpu.dot_dimension_numbers<[1], [1], [0], [0], [0, 0, 1, 0], [], []>} : vector<8x8xbf16>, vector<8x8xbf16>, vector<8x8xf32> -> vector<8x8xf32>
      %76 = arith.addf %75, %34 : vector<8x8xf32>
      %c1 = arith.constant 1 : index
      %c0_42 = arith.constant 0 : index
      %c0_43 = arith.constant 0 : index
      %77 = vector.load %arg11[%c1, %c0_42, %c0_43] : memref<4x8x1xf32, #tpu.memory_space<vmem>>, vector<1x8x1xf32>
      %78 = vector.shape_cast %77 : vector<1x8x1xf32> to vector<8x1xf32>
      %cst_44 = arith.constant dense<0xFF800000> : vector<8xf32>
      %79 = vector.multi_reduction <maximumf>, %76, %cst_44 [1] : vector<8x8xf32> to vector<8xf32>
      %80 = vector.shape_cast %79 : vector<8xf32> to vector<8x1xf32>
      %81 = arith.maximumf %78, %80 : vector<8x1xf32>
      %82 = arith.subf %78, %81 : vector<8x1xf32>
      %83 = math.exp %82 : vector<8x1xf32>
      %84 = vector.broadcast %81 : vector<8x1xf32> to vector<8x8xf32>
      %85 = arith.subf %76, %84 : vector<8x8xf32>
      %86 = math.exp %85 : vector<8x8xf32>
      %c1_45 = arith.constant 1 : index
      %c0_46 = arith.constant 0 : index
      %c0_47 = arith.constant 0 : index
      %87 = vector.load %arg12[%c1_45, %c0_46, %c0_47] : memref<4x8x1xf32, #tpu.memory_space<vmem>>, vector<1x8x1xf32>
      %88 = vector.shape_cast %87 : vector<1x8x1xf32> to vector<8x1xf32>
      %89 = arith.mulf %83, %88 : vector<8x1xf32>
      %cst_48 = arith.constant dense<0.000000e+00> : vector<8xf32>
      %90 = vector.multi_reduction <add>, %86, %cst_48 [1] : vector<8x8xf32> to vector<8xf32>
      %91 = vector.shape_cast %90 : vector<8xf32> to vector<8x1xf32>
      %92 = arith.addf %89, %91 : vector<8x1xf32>
      %c1_49 = arith.constant 1 : index
      %c0_50 = arith.constant 0 : index
      %c0_51 = arith.constant 0 : index
      %93 = vector.load %arg12[%c1_49, %c0_50, %c0_51] : memref<4x8x1xf32, #tpu.memory_space<vmem>>, vector<1x8x1xf32>
      %94 = vector.shape_cast %93 : vector<1x8x1xf32> to vector<8x1xf32>
      %95 = vector.shape_cast %92 : vector<8x1xf32> to vector<1x8x1xf32>
      tpu.vector_store %arg12[%c1_49, %c0_50, %c0_51], %95 {strides = array<i32>} : memref<4x8x1xf32, #tpu.memory_space<vmem>>, vector<1x8x1xf32>,
      %c1_52 = arith.constant 1 : index
      %c0_53 = arith.constant 0 : index
      %c0_54 = arith.constant 0 : index
      %96 = vector.load %arg13[%c1_52, %c0_53, %c0_54] : memref<4x8x8xf32, #tpu.memory_space<vmem>>, vector<1x8x8xf32>
      %97 = vector.shape_cast %96 : vector<1x8x8xf32> to vector<8x8xf32>
      %98 = vector.broadcast %83 : vector<8x1xf32> to vector<8x8xf32>
      %99 = arith.mulf %98, %97 : vector<8x8xf32>
      %100 = arith.truncf %86 : vector<8x8xf32> to vector<8x8xbf16>
      %cst_55 = arith.constant dense<0.000000e+00> : vector<8x8xf32>
      %101 = tpu.matmul %100, %74, %cst_55 {dimension_numbers = #tpu.dot_dimension_numbers<[1], [0], [0], [1], [0, 0, 1, 1], [], []>} : vector<8x8xbf16>, vector<8x8xbf16>, vector<8x8xf32> -> vector<8x8xf32>
      %102 = arith.addf %99, %101 : vector<8x8xf32>
      %c1_56 = arith.constant 1 : index
      %c0_57 = arith.constant 0 : index
      %c0_58 = arith.constant 0 : index
      %103 = vector.load %arg13[%c1_56, %c0_57, %c0_58] : memref<4x8x8xf32, #tpu.memory_space<vmem>>, vector<1x8x8xf32>
      %104 = vector.shape_cast %103 : vector<1x8x8xf32> to vector<8x8xf32>
      %105 = vector.shape_cast %102 : vector<8x8xf32> to vector<1x8x8xf32>
      tpu.vector_store %arg13[%c1_56, %c0_57, %c0_58], %105 {strides = array<i32>} : memref<4x8x8xf32, #tpu.memory_space<vmem>>, vector<1x8x8xf32>,
      %c1_59 = arith.constant 1 : index
      %c0_60 = arith.constant 0 : index
      %c0_61 = arith.constant 0 : index
      %106 = vector.load %arg11[%c1_59, %c0_60, %c0_61] : memref<4x8x1xf32, #tpu.memory_space<vmem>>, vector<1x8x1xf32>
      %107 = vector.shape_cast %106 : vector<1x8x1xf32> to vector<8x1xf32>
      %108 = vector.shape_cast %81 : vector<8x1xf32> to vector<1x8x1xf32>
      tpu.vector_store %arg11[%c1_59, %c0_60, %c0_61], %108 {strides = array<i32>} : memref<4x8x1xf32, #tpu.memory_space<vmem>>, vector<1x8x1xf32>,
      %c0_62 = arith.constant 0 : index
      %c16 = arith.constant 16 : index
      %109 = vector.load %arg9[%c0_62, %c16] : memref<8x32xbf16, #tpu.memory_space<vmem>>, vector<8x8xbf16>
      %110 = vector.extract_strided_slice %13 {offsets = [0, 16], sizes = [8, 8], strides = [1, 1]} : vector<8x64xbf16> to vector<8x8xbf16>
      %111 = vector.extract_strided_slice %13 {offsets = [0, 48], sizes = [8, 8], strides = [1, 1]} : vector<8x64xbf16> to vector<8x8xbf16>
      %cst_63 = arith.constant dense<0.000000e+00> : vector<8x8xf32>
      %112 = tpu.matmul %109, %110, %cst_63 {dimension_numbers = #tpu.dot_dimension_numbers<[1], [1], [0], [0], [0, 0, 1, 0], [], []>} : vector<8x8xbf16>, vector<8x8xbf16>, vector<8x8xf32> -> vector<8x8xf32>
      %113 = arith.addf %112, %34 : vector<8x8xf32>
      %c2 = arith.constant 2 : index
      %c0_64 = arith.constant 0 : index
      %c0_65 = arith.constant 0 : index
      %114 = vector.load %arg11[%c2, %c0_64, %c0_65] : memref<4x8x1xf32, #tpu.memory_space<vmem>>, vector<1x8x1xf32>
      %115 = vector.shape_cast %114 : vector<1x8x1xf32> to vector<8x1xf32>
      %cst_66 = arith.constant dense<0xFF800000> : vector<8xf32>
      %116 = vector.multi_reduction <maximumf>, %113, %cst_66 [1] : vector<8x8xf32> to vector<8xf32>
      %117 = vector.shape_cast %116 : vector<8xf32> to vector<8x1xf32>
      %118 = arith.maximumf %115, %117 : vector<8x1xf32>
      %119 = arith.subf %115, %118 : vector<8x1xf32>
      %120 = math.exp %119 : vector<8x1xf32>
      %121 = vector.broadcast %118 : vector<8x1xf32> to vector<8x8xf32>
      %122 = arith.subf %113, %121 : vector<8x8xf32>
      %123 = math.exp %122 : vector<8x8xf32>
      %c2_67 = arith.constant 2 : index
      %c0_68 = arith.constant 0 : index
      %c0_69 = arith.constant 0 : index
      %124 = vector.load %arg12[%c2_67, %c0_68, %c0_69] : memref<4x8x1xf32, #tpu.memory_space<vmem>>, vector<1x8x1xf32>
      %125 = vector.shape_cast %124 : vector<1x8x1xf32> to vector<8x1xf32>
      %126 = arith.mulf %120, %125 : vector<8x1xf32>
      %cst_70 = arith.constant dense<0.000000e+00> : vector<8xf32>
      %127 = vector.multi_reduction <add>, %123, %cst_70 [1] : vector<8x8xf32> to vector<8xf32>
      %128 = vector.shape_cast %127 : vector<8xf32> to vector<8x1xf32>
      %129 = arith.addf %126, %128 : vector<8x1xf32>
      %c2_71 = arith.constant 2 : index
      %c0_72 = arith.constant 0 : index
      %c0_73 = arith.constant 0 : index
      %130 = vector.load %arg12[%c2_71, %c0_72, %c0_73] : memref<4x8x1xf32, #tpu.memory_space<vmem>>, vector<1x8x1xf32>
      %131 = vector.shape_cast %130 : vector<1x8x1xf32> to vector<8x1xf32>
      %132 = vector.shape_cast %129 : vector<8x1xf32> to vector<1x8x1xf32>
      tpu.vector_store %arg12[%c2_71, %c0_72, %c0_73], %132 {strides = array<i32>} : memref<4x8x1xf32, #tpu.memory_space<vmem>>, vector<1x8x1xf32>,
      %c2_74 = arith.constant 2 : index
      %c0_75 = arith.constant 0 : index
      %c0_76 = arith.constant 0 : index
      %133 = vector.load %arg13[%c2_74, %c0_75, %c0_76] : memref<4x8x8xf32, #tpu.memory_space<vmem>>, vector<1x8x8xf32>
      %134 = vector.shape_cast %133 : vector<1x8x8xf32> to vector<8x8xf32>
      %135 = vector.broadcast %120 : vector<8x1xf32> to vector<8x8xf32>
      %136 = arith.mulf %135, %134 : vector<8x8xf32>
      %137 = arith.truncf %123 : vector<8x8xf32> to vector<8x8xbf16>
      %cst_77 = arith.constant dense<0.000000e+00> : vector<8x8xf32>
      %138 = tpu.matmul %137, %111, %cst_77 {dimension_numbers = #tpu.dot_dimension_numbers<[1], [0], [0], [1], [0, 0, 1, 1], [], []>} : vector<8x8xbf16>, vector<8x8xbf16>, vector<8x8xf32> -> vector<8x8xf32>
      %139 = arith.addf %136, %138 : vector<8x8xf32>
      %c2_78 = arith.constant 2 : index
      %c0_79 = arith.constant 0 : index
      %c0_80 = arith.constant 0 : index
      %140 = vector.load %arg13[%c2_78, %c0_79, %c0_80] : memref<4x8x8xf32, #tpu.memory_space<vmem>>, vector<1x8x8xf32>
      %141 = vector.shape_cast %140 : vector<1x8x8xf32> to vector<8x8xf32>
      %142 = vector.shape_cast %139 : vector<8x8xf32> to vector<1x8x8xf32>
      tpu.vector_store %arg13[%c2_78, %c0_79, %c0_80], %142 {strides = array<i32>} : memref<4x8x8xf32, #tpu.memory_space<vmem>>, vector<1x8x8xf32>,
      %c2_81 = arith.constant 2 : index
      %c0_82 = arith.constant 0 : index
      %c0_83 = arith.constant 0 : index
      %143 = vector.load %arg11[%c2_81, %c0_82, %c0_83] : memref<4x8x1xf32, #tpu.memory_space<vmem>>, vector<1x8x1xf32>
      %144 = vector.shape_cast %143 : vector<1x8x1xf32> to vector<8x1xf32>
      %145 = vector.shape_cast %118 : vector<8x1xf32> to vector<1x8x1xf32>
      tpu.vector_store %arg11[%c2_81, %c0_82, %c0_83], %145 {strides = array<i32>} : memref<4x8x1xf32, #tpu.memory_space<vmem>>, vector<1x8x1xf32>,
      %c0_84 = arith.constant 0 : index
      %c24 = arith.constant 24 : index
      %146 = vector.load %arg9[%c0_84, %c24] : memref<8x32xbf16, #tpu.memory_space<vmem>>, vector<8x8xbf16>
      %147 = vector.extract_strided_slice %13 {offsets = [0, 24], sizes = [8, 8], strides = [1, 1]} : vector<8x64xbf16> to vector<8x8xbf16>
      %148 = vector.extract_strided_slice %13 {offsets = [0, 56], sizes = [8, 8], strides = [1, 1]} : vector<8x64xbf16> to vector<8x8xbf16>
      %cst_85 = arith.constant dense<0.000000e+00> : vector<8x8xf32>
      %149 = tpu.matmul %146, %147, %cst_85 {dimension_numbers = #tpu.dot_dimension_numbers<[1], [1], [0], [0], [0, 0, 1, 0], [], []>} : vector<8x8xbf16>, vector<8x8xbf16>, vector<8x8xf32> -> vector<8x8xf32>
      %150 = arith.addf %149, %34 : vector<8x8xf32>
      %c3 = arith.constant 3 : index
      %c0_86 = arith.constant 0 : index
      %c0_87 = arith.constant 0 : index
      %151 = vector.load %arg11[%c3, %c0_86, %c0_87] : memref<4x8x1xf32, #tpu.memory_space<vmem>>, vector<1x8x1xf32>
      %152 = vector.shape_cast %151 : vector<1x8x1xf32> to vector<8x1xf32>
      %cst_88 = arith.constant dense<0xFF800000> : vector<8xf32>
      %153 = vector.multi_reduction <maximumf>, %150, %cst_88 [1] : vector<8x8xf32> to vector<8xf32>
      %154 = vector.shape_cast %153 : vector<8xf32> to vector<8x1xf32>
      %155 = arith.maximumf %152, %154 : vector<8x1xf32>
      %156 = arith.subf %152, %155 : vector<8x1xf32>
      %157 = math.exp %156 : vector<8x1xf32>
      %158 = vector.broadcast %155 : vector<8x1xf32> to vector<8x8xf32>
      %159 = arith.subf %150, %158 : vector<8x8xf32>
      %160 = math.exp %159 : vector<8x8xf32>
      %c3_89 = arith.constant 3 : index
      %c0_90 = arith.constant 0 : index
      %c0_91 = arith.constant 0 : index
      %161 = vector.load %arg12[%c3_89, %c0_90, %c0_91] : memref<4x8x1xf32, #tpu.memory_space<vmem>>, vector<1x8x1xf32>
      %162 = vector.shape_cast %161 : vector<1x8x1xf32> to vector<8x1xf32>
      %163 = arith.mulf %157, %162 : vector<8x1xf32>
      %cst_92 = arith.constant dense<0.000000e+00> : vector<8xf32>
      %164 = vector.multi_reduction <add>, %160, %cst_92 [1] : vector<8x8xf32> to vector<8xf32>
      %165 = vector.shape_cast %164 : vector<8xf32> to vector<8x1xf32>
      %166 = arith.addf %163, %165 : vector<8x1xf32>
      %c3_93 = arith.constant 3 : index
      %c0_94 = arith.constant 0 : index
      %c0_95 = arith.constant 0 : index
      %167 = vector.load %arg12[%c3_93, %c0_94, %c0_95] : memref<4x8x1xf32, #tpu.memory_space<vmem>>, vector<1x8x1xf32>
      %168 = vector.shape_cast %167 : vector<1x8x1xf32> to vector<8x1xf32>
      %169 = vector.shape_cast %166 : vector<8x1xf32> to vector<1x8x1xf32>
      tpu.vector_store %arg12[%c3_93, %c0_94, %c0_95], %169 {strides = array<i32>} : memref<4x8x1xf32, #tpu.memory_space<vmem>>, vector<1x8x1xf32>,
      %c3_96 = arith.constant 3 : index
      %c0_97 = arith.constant 0 : index
      %c0_98 = arith.constant 0 : index
      %170 = vector.load %arg13[%c3_96, %c0_97, %c0_98] : memref<4x8x8xf32, #tpu.memory_space<vmem>>, vector<1x8x8xf32>
      %171 = vector.shape_cast %170 : vector<1x8x8xf32> to vector<8x8xf32>
      %172 = vector.broadcast %157 : vector<8x1xf32> to vector<8x8xf32>
      %173 = arith.mulf %172, %171 : vector<8x8xf32>
      %174 = arith.truncf %160 : vector<8x8xf32> to vector<8x8xbf16>
      %cst_99 = arith.constant dense<0.000000e+00> : vector<8x8xf32>
      %175 = tpu.matmul %174, %148, %cst_99 {dimension_numbers = #tpu.dot_dimension_numbers<[1], [0], [0], [1], [0, 0, 1, 1], [], []>} : vector<8x8xbf16>, vector<8x8xbf16>, vector<8x8xf32> -> vector<8x8xf32>
      %176 = arith.addf %173, %175 : vector<8x8xf32>
      %c3_100 = arith.constant 3 : index
      %c0_101 = arith.constant 0 : index
      %c0_102 = arith.constant 0 : index
      %177 = vector.load %arg13[%c3_100, %c0_101, %c0_102] : memref<4x8x8xf32, #tpu.memory_space<vmem>>, vector<1x8x8xf32>
      %178 = vector.shape_cast %177 : vector<1x8x8xf32> to vector<8x8xf32>
      %179 = vector.shape_cast %176 : vector<8x8xf32> to vector<1x8x8xf32>
      tpu.vector_store %arg13[%c3_100, %c0_101, %c0_102], %179 {strides = array<i32>} : memref<4x8x8xf32, #tpu.memory_space<vmem>>, vector<1x8x8xf32>,
      %c3_103 = arith.constant 3 : index
      %c0_104 = arith.constant 0 : index
      %c0_105 = arith.constant 0 : index
      %180 = vector.load %arg11[%c3_103, %c0_104, %c0_105] : memref<4x8x1xf32, #tpu.memory_space<vmem>>, vector<1x8x1xf32>
      %181 = vector.shape_cast %180 : vector<1x8x1xf32> to vector<8x1xf32>
      %182 = vector.shape_cast %155 : vector<8x1xf32> to vector<1x8x1xf32>
      tpu.vector_store %arg11[%c3_103, %c0_104, %c0_105], %182 {strides = array<i32>} : memref<4x8x1xf32, #tpu.memory_space<vmem>>, vector<1x8x1xf32>,
    } else {
    }
    %c0_i32_3 = arith.constant 0 : i32
    %9 = arith.cmpi eq, %arg2, %c0_i32_3 : i32
    %10 = arith.extui %9 : i1 to i32
    %c0_i32_4 = arith.constant 0 : i32
    %11 = arith.cmpi ne, %10, %c0_i32_4 : i32
    scf.if %11 {
      %c0 = arith.constant 0 : index
      %c0_5 = arith.constant 0 : index
      %c0_6 = arith.constant 0 : index
      %12 = vector.load %arg13[%c0, %c0_5, %c0_6] : memref<4x8x8xf32, #tpu.memory_space<vmem>>, vector<1x8x8xf32>
      %13 = vector.shape_cast %12 : vector<1x8x8xf32> to vector<8x8xf32>
      %c0_7 = arith.constant 0 : index
      %c0_8 = arith.constant 0 : index
      %c0_9 = arith.constant 0 : index
      %14 = vector.load %arg12[%c0_7, %c0_8, %c0_9] : memref<4x8x1xf32, #tpu.memory_space<vmem>>, vector<1x8x1xf32>
      %15 = vector.shape_cast %14 : vector<1x8x1xf32> to vector<8x1xf32>
      %16 = vector.broadcast %15 : vector<8x1xf32> to vector<8x8xf32>
      %17 = arith.divf %13, %16 : vector<8x8xf32>
      %18 = arith.truncf %17 : vector<8x8xf32> to vector<8x8xbf16>
      %c0_10 = arith.constant 0 : index
      %c0_11 = arith.constant 0 : index
      %19 = vector.load %arg10[%c0_10, %c0_11] : memref<8x32xbf16, #tpu.memory_space<vmem>>, vector<8x8xbf16>
      tpu.vector_store %arg10[%c0_10, %c0_11], %18 {strides = array<i32>} : memref<8x32xbf16, #tpu.memory_space<vmem>>, vector<8x8xbf16>,
      %c1 = arith.constant 1 : index
      %c0_12 = arith.constant 0 : index
      %c0_13 = arith.constant 0 : index
      %20 = vector.load %arg13[%c1, %c0_12, %c0_13] : memref<4x8x8xf32, #tpu.memory_space<vmem>>, vector<1x8x8xf32>
      %21 = vector.shape_cast %20 : vector<1x8x8xf32> to vector<8x8xf32>
      %c1_14 = arith.constant 1 : index
      %c0_15 = arith.constant 0 : index
      %c0_16 = arith.constant 0 : index
      %22 = vector.load %arg12[%c1_14, %c0_15, %c0_16] : memref<4x8x1xf32, #tpu.memory_space<vmem>>, vector<1x8x1xf32>
      %23 = vector.shape_cast %22 : vector<1x8x1xf32> to vector<8x1xf32>
      %24 = vector.broadcast %23 : vector<8x1xf32> to vector<8x8xf32>
      %25 = arith.divf %21, %24 : vector<8x8xf32>
      %26 = arith.truncf %25 : vector<8x8xf32> to vector<8x8xbf16>
      %c0_17 = arith.constant 0 : index
      %c8 = arith.constant 8 : index
      %27 = vector.load %arg10[%c0_17, %c8] : memref<8x32xbf16, #tpu.memory_space<vmem>>, vector<8x8xbf16>
      tpu.vector_store %arg10[%c0_17, %c8], %26 {strides = array<i32>} : memref<8x32xbf16, #tpu.memory_space<vmem>>, vector<8x8xbf16>,
      %c2 = arith.constant 2 : index
      %c0_18 = arith.constant 0 : index
      %c0_19 = arith.constant 0 : index
      %28 = vector.load %arg13[%c2, %c0_18, %c0_19] : memref<4x8x8xf32, #tpu.memory_space<vmem>>, vector<1x8x8xf32>
      %29 = vector.shape_cast %28 : vector<1x8x8xf32> to vector<8x8xf32>
      %c2_20 = arith.constant 2 : index
      %c0_21 = arith.constant 0 : index
      %c0_22 = arith.constant 0 : index
      %30 = vector.load %arg12[%c2_20, %c0_21, %c0_22] : memref<4x8x1xf32, #tpu.memory_space<vmem>>, vector<1x8x1xf32>
      %31 = vector.shape_cast %30 : vector<1x8x1xf32> to vector<8x1xf32>
      %32 = vector.broadcast %31 : vector<8x1xf32> to vector<8x8xf32>
      %33 = arith.divf %29, %32 : vector<8x8xf32>
      %34 = arith.truncf %33 : vector<8x8xf32> to vector<8x8xbf16>
      %c0_23 = arith.constant 0 : index
      %c16 = arith.constant 16 : index
      %35 = vector.load %arg10[%c0_23, %c16] : memref<8x32xbf16, #tpu.memory_space<vmem>>, vector<8x8xbf16>
      tpu.vector_store %arg10[%c0_23, %c16], %34 {strides = array<i32>} : memref<8x32xbf16, #tpu.memory_space<vmem>>, vector<8x8xbf16>,
      %c3 = arith.constant 3 : index
      %c0_24 = arith.constant 0 : index
      %c0_25 = arith.constant 0 : index
      %36 = vector.load %arg13[%c3, %c0_24, %c0_25] : memref<4x8x8xf32, #tpu.memory_space<vmem>>, vector<1x8x8xf32>
      %37 = vector.shape_cast %36 : vector<1x8x8xf32> to vector<8x8xf32>
      %c3_26 = arith.constant 3 : index
      %c0_27 = arith.constant 0 : index
      %c0_28 = arith.constant 0 : index
      %38 = vector.load %arg12[%c3_26, %c0_27, %c0_28] : memref<4x8x1xf32, #tpu.memory_space<vmem>>, vector<1x8x1xf32>
      %39 = vector.shape_cast %38 : vector<1x8x1xf32> to vector<8x1xf32>
      %40 = vector.broadcast %39 : vector<8x1xf32> to vector<8x8xf32>
      %41 = arith.divf %37, %40 : vector<8x8xf32>
      %42 = arith.truncf %41 : vector<8x8xf32> to vector<8x8xbf16>
      %c0_29 = arith.constant 0 : index
      %c24 = arith.constant 24 : index
      %43 = vector.load %arg10[%c0_29, %c24] : memref<8x32xbf16, #tpu.memory_space<vmem>>, vector<8x8xbf16>
      tpu.vector_store %arg10[%c0_29, %c24], %42 {strides = array<i32>} : memref<8x32xbf16, #tpu.memory_space<vmem>>, vector<8x8xbf16>,
      %c0_30 = arith.constant 0 : index
      %c0_31 = arith.constant 0 : index
      %44 = vector.load %arg10[%c0_30, %c0_31] : memref<8x32xbf16, #tpu.memory_space<vmem>>, vector<8x32xbf16>
      %c0_32 = arith.constant 0 : index
      %c0_33 = arith.constant 0 : index
      %c0_34 = arith.constant 0 : index
      %45 = vector.load %arg8[%c0_32, %c0_33, %c0_34] : memref<1x8x32xbf16, #tpu.memory_space<vmem>>, vector<1x8x32xbf16>
      %46 = vector.shape_cast %45 : vector<1x8x32xbf16> to vector<8x32xbf16>
      %47 = vector.shape_cast %44 : vector<8x32xbf16> to vector<1x8x32xbf16>
      tpu.vector_store %arg8[%c0_32, %c0_33, %c0_34], %47 {strides = array<i32>} : memref<1x8x32xbf16, #tpu.memory_space<vmem>>, vector<1x8x32xbf16>,
    } else {
    }
    return
  }
  func.func @transform_0(%arg0: i32, %arg1: i32, %arg2: i32) -> (i32, i32, i32) {
    %c0_i32 = arith.constant 0 : i32
    %c0_i32_0 = arith.constant 0 : i32
    return %arg0, %arg1, %c0_i32 : i32, i32, i32
  }
  func.func @transform_1(%arg0: i32, %arg1: i32, %arg2: i32) -> (i32, i32) {
    %c0_i32 = arith.constant 0 : i32
    %c0_i32_0 = arith.constant 0 : i32
    %c0_i32_1 = arith.constant 0 : i32
    return %c0_i32, %c0_i32_0 : i32, i32
  }
  func.func @transform_2(%arg0: i32, %arg1: i32, %arg2: i32) -> (i32, i32) {
    %c0_i32 = arith.constant 0 : i32
    %c0_i32_0 = arith.constant 0 : i32
    %c0_i32_1 = arith.constant 0 : i32
    return %c0_i32, %c0_i32_0 : i32, i32
  }
  func.func @transform_3(%arg0: i32, %arg1: i32, %arg2: i32) -> (i32, i32, i32) {
    %c0_i32 = arith.constant 0 : i32
    %c0_i32_0 = arith.constant 0 : i32
    return %arg0, %arg2, %c0_i32 : i32, i32, i32
  }
  func.func @transform_4(%arg0: i32, %arg1: i32, %arg2: i32) -> (i32, i32, i32) {
    %c0_i32 = arith.constant 0 : i32
    %c0_i32_0 = arith.constant 0 : i32
    return %arg0, %c0_i32, %arg2 : i32, i32, i32
  }
  func.func @transform_5(%arg0: i32, %arg1: i32, %arg2: i32) -> (i32, i32, i32) {
    %c0_i32 = arith.constant 0 : i32
    %c0_i32_0 = arith.constant 0 : i32
    return %arg0, %arg1, %c0_i32 : i32, i32, i32
  }
}

module attributes {stable_mosaic.version = 11 : i64} {
  func.func @_linear_add_ln_kernel(%arg0: i32, %arg1: i32, %arg2: memref<16x32xbf16, #tpu.memory_space<vmem>>, %arg3: memref<16x32xbf16, #tpu.memory_space<vmem>>, %arg4: memref<32x32xbf16, #tpu.memory_space<vmem>>, %arg5: memref<1x32xf32, #tpu.memory_space<vmem>>, %arg6: memref<1x32xf32, #tpu.memory_space<vmem>>, %arg7: memref<1x32xf32, #tpu.memory_space<vmem>>, %arg8: memref<16x32xbf16, #tpu.memory_space<vmem>>, %arg9: memref<16x32xf32, #tpu.memory_space<vmem>>) attributes {dimension_semantics = [#tpu.dimension_semantics<parallel>, #tpu.dimension_semantics<arbitrary>], iteration_bounds = array<i64: 1, 1>, scalar_prefetch = 0 : i64, scratch_operands = 1 : i64, tpu.core_type = #tpu.core_type<tc>, window_params = [{transform_indices = @transform_0, window_bounds = array<i64: 16, 32>}, {transform_indices = @transform_1, window_bounds = array<i64: 16, 32>}, {transform_indices = @transform_2, window_bounds = array<i64: 32, 32>}, {pipeline_mode = #tpu.pipeline_mode<synchronous>, transform_indices = @transform_3, window_bounds = array<i64: 1, 32>}, {pipeline_mode = #tpu.pipeline_mode<synchronous>, transform_indices = @transform_4, window_bounds = array<i64: 1, 32>}, {pipeline_mode = #tpu.pipeline_mode<synchronous>, transform_indices = @transform_5, window_bounds = array<i64: 1, 32>}, {transform_indices = @transform_6, window_bounds = array<i64: 16, 32>}]} {
    %c0 = arith.constant 0 : index
    %c0_0 = arith.constant 0 : index
    %0 = vector.load %arg2[%c0, %c0_0] : memref<16x32xbf16, #tpu.memory_space<vmem>>, vector<16x32xbf16>
    %c0_1 = arith.constant 0 : index
    %c0_2 = arith.constant 0 : index
    %1 = vector.load %arg4[%c0_1, %c0_2] : memref<32x32xbf16, #tpu.memory_space<vmem>>, vector<32x32xbf16>
    %cst = arith.constant dense<0.000000e+00> : vector<16x32xf32>
    %2 = tpu.matmul %0, %1, %cst {dimension_numbers = #tpu.dot_dimension_numbers<[1], [0], [0], [1], [0, 0, 1, 1], [], []>} : vector<16x32xbf16>, vector<32x32xbf16>, vector<16x32xf32> -> vector<16x32xf32>
    %c0_i32 = arith.constant 0 : i32
    %3 = arith.cmpi eq, %arg1, %c0_i32 : i32
    %4 = arith.extui %3 : i1 to i32
    %c0_i32_3 = arith.constant 0 : i32
    %5 = arith.cmpi ne, %4, %c0_i32_3 : i32
    scf.if %5 {
      %c0_8 = arith.constant 0 : index
      %c0_9 = arith.constant 0 : index
      %12 = vector.load %arg9[%c0_8, %c0_9] : memref<16x32xf32, #tpu.memory_space<vmem>>, vector<16x32xf32>
      tpu.vector_store %arg9[%c0_8, %c0_9], %2 {strides = array<i32>} : memref<16x32xf32, #tpu.memory_space<vmem>>, vector<16x32xf32>,
    } else {
    }
    %c0_i32_4 = arith.constant 0 : i32
    %6 = arith.cmpi sgt, %arg1, %c0_i32_4 : i32
    %7 = arith.extui %6 : i1 to i32
    %c0_i32_5 = arith.constant 0 : i32
    %8 = arith.cmpi ne, %7, %c0_i32_5 : i32
    scf.if %8 {
      %c0_8 = arith.constant 0 : index
      %c0_9 = arith.constant 0 : index
      %12 = vector.load %arg9[%c0_8, %c0_9] : memref<16x32xf32, #tpu.memory_space<vmem>>, vector<16x32xf32>
      %13 = arith.addf %12, %2 : vector<16x32xf32>
      %c0_10 = arith.constant 0 : index
      %c0_11 = arith.constant 0 : index
      %14 = vector.load %arg9[%c0_10, %c0_11] : memref<16x32xf32, #tpu.memory_space<vmem>>, vector<16x32xf32>
      tpu.vector_store %arg9[%c0_10, %c0_11], %13 {strides = array<i32>} : memref<16x32xf32, #tpu.memory_space<vmem>>, vector<16x32xf32>,
    } else {
    }
    %c0_i32_6 = arith.constant 0 : i32
    %9 = arith.cmpi eq, %arg1, %c0_i32_6 : i32
    %10 = arith.extui %9 : i1 to i32
    %c0_i32_7 = arith.constant 0 : i32
    %11 = arith.cmpi ne, %10, %c0_i32_7 : i32
    scf.if %11 {
      %c0_8 = arith.constant 0 : index
      %c0_9 = arith.constant 0 : index
      %12 = vector.load %arg9[%c0_8, %c0_9] : memref<16x32xf32, #tpu.memory_space<vmem>>, vector<16x32xf32>
      %c0_10 = arith.constant 0 : index
      %c0_11 = arith.constant 0 : index
      %13 = vector.load %arg5[%c0_10, %c0_11] : memref<1x32xf32, #tpu.memory_space<vmem>>, vector<1x32xf32>
      %14 = vector.broadcast %13 : vector<1x32xf32> to vector<16x32xf32>
      %15 = arith.addf %12, %14 : vector<16x32xf32>
      %c0_12 = arith.constant 0 : index
      %c0_13 = arith.constant 0 : index
      %16 = vector.load %arg3[%c0_12, %c0_13] : memref<16x32xbf16, #tpu.memory_space<vmem>>, vector<16x32xbf16>
      %17 = arith.extf %16 : vector<16x32xbf16> to vector<16x32xf32>
      %18 = arith.addf %15, %17 : vector<16x32xf32>
      %cst_14 = arith.constant dense<0.000000e+00> : vector<16xf32>
      %19 = vector.multi_reduction <add>, %18, %cst_14 [1] : vector<16x32xf32> to vector<16xf32>
      %20 = vector.shape_cast %19 : vector<16xf32> to vector<16x1xf32>
      %cst_15 = arith.constant 3.200000e+01 : f32
      %21 = vector.broadcast %cst_15 : f32 to vector<16x1xf32>
      %22 = arith.divf %20, %21 : vector<16x1xf32>
      %23 = vector.broadcast %22 : vector<16x1xf32> to vector<16x32xf32>
      %24 = arith.subf %18, %23 : vector<16x32xf32>
      %25 = vector.broadcast %22 : vector<16x1xf32> to vector<16x32xf32>
      %26 = arith.subf %18, %25 : vector<16x32xf32>
      %27 = arith.mulf %24, %26 : vector<16x32xf32>
      %cst_16 = arith.constant dense<0.000000e+00> : vector<16xf32>
      %28 = vector.multi_reduction <add>, %27, %cst_16 [1] : vector<16x32xf32> to vector<16xf32>
      %29 = vector.shape_cast %28 : vector<16xf32> to vector<16x1xf32>
      %cst_17 = arith.constant 3.200000e+01 : f32
      %30 = vector.broadcast %cst_17 : f32 to vector<16x1xf32>
      %31 = arith.divf %29, %30 : vector<16x1xf32>
      %32 = vector.broadcast %22 : vector<16x1xf32> to vector<16x32xf32>
      %33 = arith.subf %18, %32 : vector<16x32xf32>
      %cst_18 = arith.constant 9.99999974E-6 : f32
      %34 = vector.broadcast %cst_18 : f32 to vector<16x1xf32>
      %35 = arith.addf %31, %34 : vector<16x1xf32>
      %36 = math.rsqrt %35 : vector<16x1xf32>
      %37 = vector.broadcast %36 : vector<16x1xf32> to vector<16x32xf32>
      %38 = arith.mulf %33, %37 : vector<16x32xf32>
      %c0_19 = arith.constant 0 : index
      %c0_20 = arith.constant 0 : index
      %39 = vector.load %arg6[%c0_19, %c0_20] : memref<1x32xf32, #tpu.memory_space<vmem>>, vector<1x32xf32>
      %40 = vector.broadcast %39 : vector<1x32xf32> to vector<16x32xf32>
      %41 = arith.mulf %38, %40 : vector<16x32xf32>
      %c0_21 = arith.constant 0 : index
      %c0_22 = arith.constant 0 : index
      %42 = vector.load %arg7[%c0_21, %c0_22] : memref<1x32xf32, #tpu.memory_space<vmem>>, vector<1x32xf32>
      %43 = vector.broadcast %42 : vector<1x32xf32> to vector<16x32xf32>
      %44 = arith.addf %41, %43 : vector<16x32xf32>
      %45 = arith.truncf %44 : vector<16x32xf32> to vector<16x32xbf16>
      %c0_23 = arith.constant 0 : index
      %c0_24 = arith.constant 0 : index
      %46 = vector.load %arg8[%c0_23, %c0_24] : memref<16x32xbf16, #tpu.memory_space<vmem>>, vector<16x32xbf16>
      tpu.vector_store %arg8[%c0_23, %c0_24], %45 {strides = array<i32>} : memref<16x32xbf16, #tpu.memory_space<vmem>>, vector<16x32xbf16>,
    } else {
    }
    return
  }
  func.func @transform_0(%arg0: i32, %arg1: i32) -> (i32, i32) {
    %c0_i32 = arith.constant 0 : i32
    return %arg0, %arg1 : i32, i32
  }
  func.func @transform_1(%arg0: i32, %arg1: i32) -> (i32, i32) {
    %c0_i32 = arith.constant 0 : i32
    %c0_i32_0 = arith.constant 0 : i32
    return %arg0, %c0_i32 : i32, i32
  }
  func.func @transform_2(%arg0: i32, %arg1: i32) -> (i32, i32) {
    %c0_i32 = arith.constant 0 : i32
    %c0_i32_0 = arith.constant 0 : i32
    return %arg1, %c0_i32 : i32, i32
  }
  func.func @transform_3(%arg0: i32, %arg1: i32) -> (i32, i32) {
    %c0_i32 = arith.constant 0 : i32
    %c0_i32_0 = arith.constant 0 : i32
    %c0_i32_1 = arith.constant 0 : i32
    return %c0_i32, %c0_i32_0 : i32, i32
  }
  func.func @transform_4(%arg0: i32, %arg1: i32) -> (i32, i32) {
    %c0_i32 = arith.constant 0 : i32
    %c0_i32_0 = arith.constant 0 : i32
    %c0_i32_1 = arith.constant 0 : i32
    return %c0_i32, %c0_i32_0 : i32, i32
  }
  func.func @transform_5(%arg0: i32, %arg1: i32) -> (i32, i32) {
    %c0_i32 = arith.constant 0 : i32
    %c0_i32_0 = arith.constant 0 : i32
    %c0_i32_1 = arith.constant 0 : i32
    return %c0_i32, %c0_i32_0 : i32, i32
  }
  func.func @transform_6(%arg0: i32, %arg1: i32) -> (i32, i32) {
    %c0_i32 = arith.constant 0 : i32
    %c0_i32_0 = arith.constant 0 : i32
    return %arg0, %c0_i32 : i32, i32
  }
}

module attributes {stable_mosaic.version = 11 : i64} {
  func.func @_linear_kernel(%arg0: i32, %arg1: i32, %arg2: i32, %arg3: memref<16x32xbf16, #tpu.memory_space<vmem>>, %arg4: memref<32x64xbf16, #tpu.memory_space<vmem>>, %arg5: memref<1x64xf32, #tpu.memory_space<vmem>>, %arg6: memref<16x64xbf16, #tpu.memory_space<vmem>>, %arg7: memref<16x64xf32, #tpu.memory_space<vmem>>) attributes {dimension_semantics = [#tpu.dimension_semantics<parallel>, #tpu.dimension_semantics<parallel>, #tpu.dimension_semantics<arbitrary>], iteration_bounds = array<i64: 1, 1, 1>, scalar_prefetch = 0 : i64, scratch_operands = 1 : i64, tpu.core_type = #tpu.core_type<tc>, window_params = [{transform_indices = @transform_0, window_bounds = array<i64: 16, 32>}, {transform_indices = @transform_1, window_bounds = array<i64: 32, 64>}, {transform_indices = @transform_2, window_bounds = array<i64: 1, 64>}, {transform_indices = @transform_3, window_bounds = array<i64: 16, 64>}]} {
    %c0 = arith.constant 0 : index
    %c0_0 = arith.constant 0 : index
    %0 = vector.load %arg3[%c0, %c0_0] : memref<16x32xbf16, #tpu.memory_space<vmem>>, vector<16x32xbf16>
    %c0_1 = arith.constant 0 : index
    %c0_2 = arith.constant 0 : index
    %1 = vector.load %arg4[%c0_1, %c0_2] : memref<32x64xbf16, #tpu.memory_space<vmem>>, vector<32x64xbf16>
    %cst = arith.constant dense<0.000000e+00> : vector<16x64xf32>
    %2 = tpu.matmul %0, %1, %cst {dimension_numbers = #tpu.dot_dimension_numbers<[1], [0], [0], [1], [0, 0, 1, 1], [], []>} : vector<16x32xbf16>, vector<32x64xbf16>, vector<16x64xf32> -> vector<16x64xf32>
    %c0_i32 = arith.constant 0 : i32
    %3 = arith.cmpi eq, %arg2, %c0_i32 : i32
    %4 = arith.extui %3 : i1 to i32
    %c0_i32_3 = arith.constant 0 : i32
    %5 = arith.cmpi ne, %4, %c0_i32_3 : i32
    scf.if %5 {
      %c0_8 = arith.constant 0 : index
      %c0_9 = arith.constant 0 : index
      %12 = vector.load %arg7[%c0_8, %c0_9] : memref<16x64xf32, #tpu.memory_space<vmem>>, vector<16x64xf32>
      tpu.vector_store %arg7[%c0_8, %c0_9], %2 {strides = array<i32>} : memref<16x64xf32, #tpu.memory_space<vmem>>, vector<16x64xf32>,
    } else {
    }
    %c0_i32_4 = arith.constant 0 : i32
    %6 = arith.cmpi sgt, %arg2, %c0_i32_4 : i32
    %7 = arith.extui %6 : i1 to i32
    %c0_i32_5 = arith.constant 0 : i32
    %8 = arith.cmpi ne, %7, %c0_i32_5 : i32
    scf.if %8 {
      %c0_8 = arith.constant 0 : index
      %c0_9 = arith.constant 0 : index
      %12 = vector.load %arg7[%c0_8, %c0_9] : memref<16x64xf32, #tpu.memory_space<vmem>>, vector<16x64xf32>
      %13 = arith.addf %12, %2 : vector<16x64xf32>
      %c0_10 = arith.constant 0 : index
      %c0_11 = arith.constant 0 : index
      %14 = vector.load %arg7[%c0_10, %c0_11] : memref<16x64xf32, #tpu.memory_space<vmem>>, vector<16x64xf32>
      tpu.vector_store %arg7[%c0_10, %c0_11], %13 {strides = array<i32>} : memref<16x64xf32, #tpu.memory_space<vmem>>, vector<16x64xf32>,
    } else {
    }
    %c0_i32_6 = arith.constant 0 : i32
    %9 = arith.cmpi eq, %arg2, %c0_i32_6 : i32
    %10 = arith.extui %9 : i1 to i32
    %c0_i32_7 = arith.constant 0 : i32
    %11 = arith.cmpi ne, %10, %c0_i32_7 : i32
    scf.if %11 {
      %c0_8 = arith.constant 0 : index
      %c0_9 = arith.constant 0 : index
      %12 = vector.load %arg7[%c0_8, %c0_9] : memref<16x64xf32, #tpu.memory_space<vmem>>, vector<16x64xf32>
      %c0_10 = arith.constant 0 : index
      %c0_11 = arith.constant 0 : index
      %13 = vector.load %arg5[%c0_10, %c0_11] : memref<1x64xf32, #tpu.memory_space<vmem>>, vector<1x64xf32>
      %14 = vector.broadcast %13 : vector<1x64xf32> to vector<16x64xf32>
      %15 = arith.addf %12, %14 : vector<16x64xf32>
      %cst_12 = arith.constant 5.000000e-01 : f32
      %16 = vector.broadcast %cst_12 : f32 to vector<16x64xf32>
      %17 = arith.mulf %16, %15 : vector<16x64xf32>
      %cst_13 = arith.constant 4.471500e-02 : f32
      %18 = vector.broadcast %cst_13 : f32 to vector<16x64xf32>
      %19 = arith.mulf %18, %15 : vector<16x64xf32>
      %20 = arith.mulf %19, %15 : vector<16x64xf32>
      %21 = arith.mulf %20, %15 : vector<16x64xf32>
      %22 = arith.addf %15, %21 : vector<16x64xf32>
      %cst_14 = arith.constant 0.797884583 : f32
      %23 = vector.broadcast %cst_14 : f32 to vector<16x64xf32>
      %24 = arith.mulf %23, %22 : vector<16x64xf32>
      %25 = math.tanh %24 : vector<16x64xf32>
      %cst_15 = arith.constant 1.000000e+00 : f32
      %26 = vector.broadcast %cst_15 : f32 to vector<16x64xf32>
      %27 = arith.addf %26, %25 : vector<16x64xf32>
      %28 = arith.mulf %17, %27 : vector<16x64xf32>
      %29 = arith.truncf %28 : vector<16x64xf32> to vector<16x64xbf16>
      %c0_16 = arith.constant 0 : index
      %c0_17 = arith.constant 0 : index
      %30 = vector.load %arg6[%c0_16, %c0_17] : memref<16x64xbf16, #tpu.memory_space<vmem>>, vector<16x64xbf16>
      tpu.vector_store %arg6[%c0_16, %c0_17], %29 {strides = array<i32>} : memref<16x64xbf16, #tpu.memory_space<vmem>>, vector<16x64xbf16>,
    } else {
    }
    return
  }
  func.func @transform_0(%arg0: i32, %arg1: i32, %arg2: i32) -> (i32, i32) {
    %c0_i32 = arith.constant 0 : i32
    return %arg0, %arg2 : i32, i32
  }
  func.func @transform_1(%arg0: i32, %arg1: i32, %arg2: i32) -> (i32, i32) {
    %c0_i32 = arith.constant 0 : i32
    return %arg2, %arg1 : i32, i32
  }
  func.func @transform_2(%arg0: i32, %arg1: i32, %arg2: i32) -> (i32, i32) {
    %c0_i32 = arith.constant 0 : i32
    %c0_i32_0 = arith.constant 0 : i32
    return %c0_i32, %arg1 : i32, i32
  }
  func.func @transform_3(%arg0: i32, %arg1: i32, %arg2: i32) -> (i32, i32) {
    %c0_i32 = arith.constant 0 : i32
    return %arg0, %arg1 : i32, i32
  }
}

module attributes {stable_mosaic.version = 11 : i64} {
  func.func @_linear_add_ln_kernel(%arg0: i32, %arg1: i32, %arg2: memref<16x64xbf16, #tpu.memory_space<vmem>>, %arg3: memref<16x32xbf16, #tpu.memory_space<vmem>>, %arg4: memref<64x32xbf16, #tpu.memory_space<vmem>>, %arg5: memref<1x32xf32, #tpu.memory_space<vmem>>, %arg6: memref<1x32xf32, #tpu.memory_space<vmem>>, %arg7: memref<1x32xf32, #tpu.memory_space<vmem>>, %arg8: memref<16x32xbf16, #tpu.memory_space<vmem>>, %arg9: memref<16x32xf32, #tpu.memory_space<vmem>>) attributes {dimension_semantics = [#tpu.dimension_semantics<parallel>, #tpu.dimension_semantics<arbitrary>], iteration_bounds = array<i64: 1, 1>, scalar_prefetch = 0 : i64, scratch_operands = 1 : i64, tpu.core_type = #tpu.core_type<tc>, window_params = [{transform_indices = @transform_0, window_bounds = array<i64: 16, 64>}, {transform_indices = @transform_1, window_bounds = array<i64: 16, 32>}, {transform_indices = @transform_2, window_bounds = array<i64: 64, 32>}, {pipeline_mode = #tpu.pipeline_mode<synchronous>, transform_indices = @transform_3, window_bounds = array<i64: 1, 32>}, {pipeline_mode = #tpu.pipeline_mode<synchronous>, transform_indices = @transform_4, window_bounds = array<i64: 1, 32>}, {pipeline_mode = #tpu.pipeline_mode<synchronous>, transform_indices = @transform_5, window_bounds = array<i64: 1, 32>}, {transform_indices = @transform_6, window_bounds = array<i64: 16, 32>}]} {
    %c0 = arith.constant 0 : index
    %c0_0 = arith.constant 0 : index
    %0 = vector.load %arg2[%c0, %c0_0] : memref<16x64xbf16, #tpu.memory_space<vmem>>, vector<16x64xbf16>
    %c0_1 = arith.constant 0 : index
    %c0_2 = arith.constant 0 : index
    %1 = vector.load %arg4[%c0_1, %c0_2] : memref<64x32xbf16, #tpu.memory_space<vmem>>, vector<64x32xbf16>
    %cst = arith.constant dense<0.000000e+00> : vector<16x32xf32>
    %2 = tpu.matmul %0, %1, %cst {dimension_numbers = #tpu.dot_dimension_numbers<[1], [0], [0], [1], [0, 0, 1, 1], [], []>} : vector<16x64xbf16>, vector<64x32xbf16>, vector<16x32xf32> -> vector<16x32xf32>
    %c0_i32 = arith.constant 0 : i32
    %3 = arith.cmpi eq, %arg1, %c0_i32 : i32
    %4 = arith.extui %3 : i1 to i32
    %c0_i32_3 = arith.constant 0 : i32
    %5 = arith.cmpi ne, %4, %c0_i32_3 : i32
    scf.if %5 {
      %c0_8 = arith.constant 0 : index
      %c0_9 = arith.constant 0 : index
      %12 = vector.load %arg9[%c0_8, %c0_9] : memref<16x32xf32, #tpu.memory_space<vmem>>, vector<16x32xf32>
      tpu.vector_store %arg9[%c0_8, %c0_9], %2 {strides = array<i32>} : memref<16x32xf32, #tpu.memory_space<vmem>>, vector<16x32xf32>,
    } else {
    }
    %c0_i32_4 = arith.constant 0 : i32
    %6 = arith.cmpi sgt, %arg1, %c0_i32_4 : i32
    %7 = arith.extui %6 : i1 to i32
    %c0_i32_5 = arith.constant 0 : i32
    %8 = arith.cmpi ne, %7, %c0_i32_5 : i32
    scf.if %8 {
      %c0_8 = arith.constant 0 : index
      %c0_9 = arith.constant 0 : index
      %12 = vector.load %arg9[%c0_8, %c0_9] : memref<16x32xf32, #tpu.memory_space<vmem>>, vector<16x32xf32>
      %13 = arith.addf %12, %2 : vector<16x32xf32>
      %c0_10 = arith.constant 0 : index
      %c0_11 = arith.constant 0 : index
      %14 = vector.load %arg9[%c0_10, %c0_11] : memref<16x32xf32, #tpu.memory_space<vmem>>, vector<16x32xf32>
      tpu.vector_store %arg9[%c0_10, %c0_11], %13 {strides = array<i32>} : memref<16x32xf32, #tpu.memory_space<vmem>>, vector<16x32xf32>,
    } else {
    }
    %c0_i32_6 = arith.constant 0 : i32
    %9 = arith.cmpi eq, %arg1, %c0_i32_6 : i32
    %10 = arith.extui %9 : i1 to i32
    %c0_i32_7 = arith.constant 0 : i32
    %11 = arith.cmpi ne, %10, %c0_i32_7 : i32
    scf.if %11 {
      %c0_8 = arith.constant 0 : index
      %c0_9 = arith.constant 0 : index
      %12 = vector.load %arg9[%c0_8, %c0_9] : memref<16x32xf32, #tpu.memory_space<vmem>>, vector<16x32xf32>
      %c0_10 = arith.constant 0 : index
      %c0_11 = arith.constant 0 : index
      %13 = vector.load %arg5[%c0_10, %c0_11] : memref<1x32xf32, #tpu.memory_space<vmem>>, vector<1x32xf32>
      %14 = vector.broadcast %13 : vector<1x32xf32> to vector<16x32xf32>
      %15 = arith.addf %12, %14 : vector<16x32xf32>
      %c0_12 = arith.constant 0 : index
      %c0_13 = arith.constant 0 : index
      %16 = vector.load %arg3[%c0_12, %c0_13] : memref<16x32xbf16, #tpu.memory_space<vmem>>, vector<16x32xbf16>
      %17 = arith.extf %16 : vector<16x32xbf16> to vector<16x32xf32>
      %18 = arith.addf %15, %17 : vector<16x32xf32>
      %cst_14 = arith.constant dense<0.000000e+00> : vector<16xf32>
      %19 = vector.multi_reduction <add>, %18, %cst_14 [1] : vector<16x32xf32> to vector<16xf32>
      %20 = vector.shape_cast %19 : vector<16xf32> to vector<16x1xf32>
      %cst_15 = arith.constant 3.200000e+01 : f32
      %21 = vector.broadcast %cst_15 : f32 to vector<16x1xf32>
      %22 = arith.divf %20, %21 : vector<16x1xf32>
      %23 = vector.broadcast %22 : vector<16x1xf32> to vector<16x32xf32>
      %24 = arith.subf %18, %23 : vector<16x32xf32>
      %25 = vector.broadcast %22 : vector<16x1xf32> to vector<16x32xf32>
      %26 = arith.subf %18, %25 : vector<16x32xf32>
      %27 = arith.mulf %24, %26 : vector<16x32xf32>
      %cst_16 = arith.constant dense<0.000000e+00> : vector<16xf32>
      %28 = vector.multi_reduction <add>, %27, %cst_16 [1] : vector<16x32xf32> to vector<16xf32>
      %29 = vector.shape_cast %28 : vector<16xf32> to vector<16x1xf32>
      %cst_17 = arith.constant 3.200000e+01 : f32
      %30 = vector.broadcast %cst_17 : f32 to vector<16x1xf32>
      %31 = arith.divf %29, %30 : vector<16x1xf32>
      %32 = vector.broadcast %22 : vector<16x1xf32> to vector<16x32xf32>
      %33 = arith.subf %18, %32 : vector<16x32xf32>
      %cst_18 = arith.constant 9.99999974E-6 : f32
      %34 = vector.broadcast %cst_18 : f32 to vector<16x1xf32>
      %35 = arith.addf %31, %34 : vector<16x1xf32>
      %36 = math.rsqrt %35 : vector<16x1xf32>
      %37 = vector.broadcast %36 : vector<16x1xf32> to vector<16x32xf32>
      %38 = arith.mulf %33, %37 : vector<16x32xf32>
      %c0_19 = arith.constant 0 : index
      %c0_20 = arith.constant 0 : index
      %39 = vector.load %arg6[%c0_19, %c0_20] : memref<1x32xf32, #tpu.memory_space<vmem>>, vector<1x32xf32>
      %40 = vector.broadcast %39 : vector<1x32xf32> to vector<16x32xf32>
      %41 = arith.mulf %38, %40 : vector<16x32xf32>
      %c0_21 = arith.constant 0 : index
      %c0_22 = arith.constant 0 : index
      %42 = vector.load %arg7[%c0_21, %c0_22] : memref<1x32xf32, #tpu.memory_space<vmem>>, vector<1x32xf32>
      %43 = vector.broadcast %42 : vector<1x32xf32> to vector<16x32xf32>
      %44 = arith.addf %41, %43 : vector<16x32xf32>
      %45 = arith.truncf %44 : vector<16x32xf32> to vector<16x32xbf16>
      %c0_23 = arith.constant 0 : index
      %c0_24 = arith.constant 0 : index
      %46 = vector.load %arg8[%c0_23, %c0_24] : memref<16x32xbf16, #tpu.memory_space<vmem>>, vector<16x32xbf16>
      tpu.vector_store %arg8[%c0_23, %c0_24], %45 {strides = array<i32>} : memref<16x32xbf16, #tpu.memory_space<vmem>>, vector<16x32xbf16>,
    } else {
    }
    return
  }
  func.func @transform_0(%arg0: i32, %arg1: i32) -> (i32, i32) {
    %c0_i32 = arith.constant 0 : i32
    return %arg0, %arg1 : i32, i32
  }
  func.func @transform_1(%arg0: i32, %arg1: i32) -> (i32, i32) {
    %c0_i32 = arith.constant 0 : i32
    %c0_i32_0 = arith.constant 0 : i32
    return %arg0, %c0_i32 : i32, i32
  }
  func.func @transform_2(%arg0: i32, %arg1: i32) -> (i32, i32) {
    %c0_i32 = arith.constant 0 : i32
    %c0_i32_0 = arith.constant 0 : i32
    return %arg1, %c0_i32 : i32, i32
  }
  func.func @transform_3(%arg0: i32, %arg1: i32) -> (i32, i32) {
    %c0_i32 = arith.constant 0 : i32
    %c0_i32_0 = arith.constant 0 : i32
    %c0_i32_1 = arith.constant 0 : i32
    return %c0_i32, %c0_i32_0 : i32, i32
  }
  func.func @transform_4(%arg0: i32, %arg1: i32) -> (i32, i32) {
    %c0_i32 = arith.constant 0 : i32
    %c0_i32_0 = arith.constant 0 : i32
    %c0_i32_1 = arith.constant 0 : i32
    return %c0_i32, %c0_i32_0 : i32, i32
  }
  func.func @transform_5(%arg0: i32, %arg1: i32) -> (i32, i32) {
    %c0_i32 = arith.constant 0 : i32
    %c0_i32_0 = arith.constant 0 : i32
    %c0_i32_1 = arith.constant 0 : i32
    return %c0_i32, %c0_i32_0 : i32, i32
  }
  func.func @transform_6(%arg0: i32, %arg1: i32) -> (i32, i32) {
    %c0_i32 = arith.constant 0 : i32
    %c0_i32_0 = arith.constant 0 : i32
    return %arg0, %c0_i32 : i32, i32
  }
}

module attributes {stable_mosaic.version = 11 : i64} {
  func.func @_flash_attn_kernel(%arg0: i32, %arg1: i32, %arg2: i32, %arg3: memref<1x8x32xbf16, #tpu.memory_space<vmem>>, %arg4: memref<32x32xbf16, #tpu.memory_space<vmem>>, %arg5: memref<1x32xf32, #tpu.memory_space<vmem>>, %arg6: memref<1x8x64xbf16, #tpu.memory_space<vmem>>, %arg7: memref<1x1x8xf32, #tpu.memory_space<vmem>>, %arg8: memref<1x8x32xbf16, #tpu.memory_space<vmem>>, %arg9: memref<8x32xbf16, #tpu.memory_space<vmem>>, %arg10: memref<8x32xbf16, #tpu.memory_space<vmem>>, %arg11: memref<4x8x1xf32, #tpu.memory_space<vmem>>, %arg12: memref<4x8x1xf32, #tpu.memory_space<vmem>>, %arg13: memref<4x8x8xf32, #tpu.memory_space<vmem>>) attributes {dimension_semantics = [#tpu.dimension_semantics<parallel>, #tpu.dimension_semantics<parallel>, #tpu.dimension_semantics<arbitrary>], iteration_bounds = array<i64: 2, 1, 1>, scalar_prefetch = 0 : i64, scratch_operands = 5 : i64, tpu.core_type = #tpu.core_type<tc>, window_params = [{transform_indices = @transform_0, window_bounds = array<i64: 1, 8, 32>}, {pipeline_mode = #tpu.pipeline_mode<synchronous>, transform_indices = @transform_1, window_bounds = array<i64: 32, 32>}, {pipeline_mode = #tpu.pipeline_mode<synchronous>, transform_indices = @transform_2, window_bounds = array<i64: 1, 32>}, {transform_indices = @transform_3, window_bounds = array<i64: 1, 8, 64>}, {transform_indices = @transform_4, window_bounds = array<i64: 1, 1, 8>}, {transform_indices = @transform_5, window_bounds = array<i64: 1, 8, 32>}]} {
    %c0_i32 = arith.constant 0 : i32
    %0 = arith.cmpi eq, %arg2, %c0_i32 : i32
    %1 = arith.extui %0 : i1 to i32
    %c0_i32_0 = arith.constant 0 : i32
    %2 = arith.cmpi ne, %1, %c0_i32_0 : i32
    scf.if %2 {
      %c0_100 = arith.constant 0 : index
      %c0_101 = arith.constant 0 : index
      %c0_102 = arith.constant 0 : index
      %167 = vector.load %arg3[%c0_100, %c0_101, %c0_102] : memref<1x8x32xbf16, #tpu.memory_space<vmem>>, vector<1x8x32xbf16>
      %168 = vector.shape_cast %167 : vector<1x8x32xbf16> to vector<8x32xbf16>
      %c0_103 = arith.constant 0 : index
      %c0_104 = arith.constant 0 : index
      %169 = vector.load %arg4[%c0_103, %c0_104] : memref<32x32xbf16, #tpu.memory_space<vmem>>, vector<32x32xbf16>
      %cst_105 = arith.constant dense<0.000000e+00> : vector<8x32xf32>
      %170 = tpu.matmul %168, %169, %cst_105 {dimension_numbers = #tpu.dot_dimension_numbers<[1], [0], [0], [1], [0, 0, 1, 1], [], []>} : vector<8x32xbf16>, vector<32x32xbf16>, vector<8x32xf32> -> vector<8x32xf32>
      %c0_106 = arith.constant 0 : index
      %c0_107 = arith.constant 0 : index
      %171 = vector.load %arg5[%c0_106, %c0_107] : memref<1x32xf32, #tpu.memory_space<vmem>>, vector<1x32xf32>
      %172 = vector.broadcast %171 : vector<1x32xf32> to vector<8x32xf32>
      %173 = arith.addf %170, %172 : vector<8x32xf32>
      %cst_108 = arith.constant 0.353553385 : f32
      %174 = vector.broadcast %cst_108 : f32 to vector<8x32xf32>
      %175 = arith.mulf %173, %174 : vector<8x32xf32>
      %176 = arith.truncf %175 : vector<8x32xf32> to vector<8x32xbf16>
      %c0_109 = arith.constant 0 : index
      %c0_110 = arith.constant 0 : index
      %177 = vector.load %arg9[%c0_109, %c0_110] : memref<8x32xbf16, #tpu.memory_space<vmem>>, vector<8x32xbf16>
      tpu.vector_store %arg9[%c0_109, %c0_110], %176 {strides = array<i32>} : memref<8x32xbf16, #tpu.memory_space<vmem>>, vector<8x32xbf16>,
      %cst_111 = arith.constant -1.000000e+30 : f32
      %178 = vector.broadcast %cst_111 : f32 to vector<4x8x1xf32>
      %c0_112 = arith.constant 0 : index
      %c0_113 = arith.constant 0 : index
      %c0_114 = arith.constant 0 : index
      %179 = vector.load %arg11[%c0_112, %c0_113, %c0_114] : memref<4x8x1xf32, #tpu.memory_space<vmem>>, vector<4x8x1xf32>
      tpu.vector_store %arg11[%c0_112, %c0_113, %c0_114], %178 {strides = array<i32>} : memref<4x8x1xf32, #tpu.memory_space<vmem>>, vector<4x8x1xf32>,
      %cst_115 = arith.constant 0.000000e+00 : f32
      %180 = vector.broadcast %cst_115 : f32 to vector<4x8x1xf32>
      %c0_116 = arith.constant 0 : index
      %c0_117 = arith.constant 0 : index
      %c0_118 = arith.constant 0 : index
      %181 = vector.load %arg12[%c0_116, %c0_117, %c0_118] : memref<4x8x1xf32, #tpu.memory_space<vmem>>, vector<4x8x1xf32>
      tpu.vector_store %arg12[%c0_116, %c0_117, %c0_118], %180 {strides = array<i32>} : memref<4x8x1xf32, #tpu.memory_space<vmem>>, vector<4x8x1xf32>,
      %cst_119 = arith.constant 0.000000e+00 : f32
      %182 = vector.broadcast %cst_119 : f32 to vector<4x8x8xf32>
      %c0_120 = arith.constant 0 : index
      %c0_121 = arith.constant 0 : index
      %c0_122 = arith.constant 0 : index
      %183 = vector.load %arg13[%c0_120, %c0_121, %c0_122] : memref<4x8x8xf32, #tpu.memory_space<vmem>>, vector<4x8x8xf32>
      tpu.vector_store %arg13[%c0_120, %c0_121, %c0_122], %182 {strides = array<i32>} : memref<4x8x8xf32, #tpu.memory_space<vmem>>, vector<4x8x8xf32>,
    } else {
    }
    %c0 = arith.constant 0 : index
    %c0_1 = arith.constant 0 : index
    %c0_2 = arith.constant 0 : index
    %3 = vector.load %arg6[%c0, %c0_1, %c0_2] : memref<1x8x64xbf16, #tpu.memory_space<vmem>>, vector<1x8x64xbf16>
    %4 = vector.shape_cast %3 : vector<1x8x64xbf16> to vector<8x64xbf16>
    %c0_3 = arith.constant 0 : index
    %c0_4 = arith.constant 0 : index
    %c0_5 = arith.constant 0 : index
    %5 = vector.load %arg7[%c0_3, %c0_4, %c0_5] : memref<1x1x8xf32, #tpu.memory_space<vmem>>, vector<1x1x8xf32>
    %6 = vector.shape_cast %5 : vector<1x1x8xf32> to vector<1x8xf32>
    %cst = arith.constant 5.000000e-01 : f32
    %7 = vector.broadcast %cst : f32 to vector<1x8xf32>
    %8 = arith.cmpf ogt, %6, %7 : vector<1x8xf32>
    %cst_6 = arith.constant 0.000000e+00 : f32
    %cst_7 = arith.constant -1.000000e+09 : f32
    %9 = vector.broadcast %cst_6 : f32 to vector<1x8xf32>
    %10 = vector.broadcast %cst_7 : f32 to vector<1x8xf32>
    %11 = arith.select %8, %9, %10 : vector<1x8xi1>, vector<1x8xf32>
    %c0_8 = arith.constant 0 : index
    %c0_9 = arith.constant 0 : index
    %12 = vector.load %arg9[%c0_8, %c0_9] : memref<8x32xbf16, #tpu.memory_space<vmem>>, vector<8x8xbf16>
    %13 = vector.extract_strided_slice %4 {offsets = [0, 0], sizes = [8, 8], strides = [1, 1]} : vector<8x64xbf16> to vector<8x8xbf16>
    %14 = vector.extract_strided_slice %4 {offsets = [0, 32], sizes = [8, 8], strides = [1, 1]} : vector<8x64xbf16> to vector<8x8xbf16>
    %cst_10 = arith.constant dense<0.000000e+00> : vector<8x8xf32>
    %15 = tpu.matmul %12, %13, %cst_10 {dimension_numbers = #tpu.dot_dimension_numbers<[1], [1], [0], [0], [0, 0, 1, 0], [], []>} : vector<8x8xbf16>, vector<8x8xbf16>, vector<8x8xf32> -> vector<8x8xf32>
    %16 = vector.broadcast %11 : vector<1x8xf32> to vector<8x8xf32>
    %17 = arith.addf %15, %16 : vector<8x8xf32>
    %c0_11 = arith.constant 0 : index
    %c0_12 = arith.constant 0 : index
    %c0_13 = arith.constant 0 : index
    %18 = vector.load %arg11[%c0_11, %c0_12, %c0_13] : memref<4x8x1xf32, #tpu.memory_space<vmem>>, vector<1x8x1xf32>
    %19 = vector.shape_cast %18 : vector<1x8x1xf32> to vector<8x1xf32>
    %cst_14 = arith.constant dense<0xFF800000> : vector<8xf32>
    %20 = vector.multi_reduction <maximumf>, %17, %cst_14 [1] : vector<8x8xf32> to vector<8xf32>
    %21 = vector.shape_cast %20 : vector<8xf32> to vector<8x1xf32>
    %22 = arith.maximumf %19, %21 : vector<8x1xf32>
    %23 = arith.subf %19, %22 : vector<8x1xf32>
    %24 = math.exp %23 : vector<8x1xf32>
    %25 = vector.broadcast %22 : vector<8x1xf32> to vector<8x8xf32>
    %26 = arith.subf %17, %25 : vector<8x8xf32>
    %27 = math.exp %26 : vector<8x8xf32>
    %c0_15 = arith.constant 0 : index
    %c0_16 = arith.constant 0 : index
    %c0_17 = arith.constant 0 : index
    %28 = vector.load %arg12[%c0_15, %c0_16, %c0_17] : memref<4x8x1xf32, #tpu.memory_space<vmem>>, vector<1x8x1xf32>
    %29 = vector.shape_cast %28 : vector<1x8x1xf32> to vector<8x1xf32>
    %30 = arith.mulf %24, %29 : vector<8x1xf32>
    %cst_18 = arith.constant dense<0.000000e+00> : vector<8xf32>
    %31 = vector.multi_reduction <add>, %27, %cst_18 [1] : vector<8x8xf32> to vector<8xf32>
    %32 = vector.shape_cast %31 : vector<8xf32> to vector<8x1xf32>
    %33 = arith.addf %30, %32 : vector<8x1xf32>
    %c0_19 = arith.constant 0 : index
    %c0_20 = arith.constant 0 : index
    %c0_21 = arith.constant 0 : index
    %34 = vector.load %arg12[%c0_19, %c0_20, %c0_21] : memref<4x8x1xf32, #tpu.memory_space<vmem>>, vector<1x8x1xf32>
    %35 = vector.shape_cast %34 : vector<1x8x1xf32> to vector<8x1xf32>
    %36 = vector.shape_cast %33 : vector<8x1xf32> to vector<1x8x1xf32>
    tpu.vector_store %arg12[%c0_19, %c0_20, %c0_21], %36 {strides = array<i32>} : memref<4x8x1xf32, #tpu.memory_space<vmem>>, vector<1x8x1xf32>,
    %c0_22 = arith.constant 0 : index
    %c0_23 = arith.constant 0 : index
    %c0_24 = arith.constant 0 : index
    %37 = vector.load %arg13[%c0_22, %c0_23, %c0_24] : memref<4x8x8xf32, #tpu.memory_space<vmem>>, vector<1x8x8xf32>
    %38 = vector.shape_cast %37 : vector<1x8x8xf32> to vector<8x8xf32>
    %39 = vector.broadcast %24 : vector<8x1xf32> to vector<8x8xf32>
    %40 = arith.mulf %39, %38 : vector<8x8xf32>
    %41 = arith.truncf %27 : vector<8x8xf32> to vector<8x8xbf16>
    %cst_25 = arith.constant dense<0.000000e+00> : vector<8x8xf32>
    %42 = tpu.matmul %41, %14, %cst_25 {dimension_numbers = #tpu.dot_dimension_numbers<[1], [0], [0], [1], [0, 0, 1, 1], [], []>} : vector<8x8xbf16>, vector<8x8xbf16>, vector<8x8xf32> -> vector<8x8xf32>
    %43 = arith.addf %40, %42 : vector<8x8xf32>
    %c0_26 = arith.constant 0 : index
    %c0_27 = arith.constant 0 : index
    %c0_28 = arith.constant 0 : index
    %44 = vector.load %arg13[%c0_26, %c0_27, %c0_28] : memref<4x8x8xf32, #tpu.memory_space<vmem>>, vector<1x8x8xf32>
    %45 = vector.shape_cast %44 : vector<1x8x8xf32> to vector<8x8xf32>
    %46 = vector.shape_cast %43 : vector<8x8xf32> to vector<1x8x8xf32>
    tpu.vector_store %arg13[%c0_26, %c0_27, %c0_28], %46 {strides = array<i32>} : memref<4x8x8xf32, #tpu.memory_space<vmem>>, vector<1x8x8xf32>,
    %c0_29 = arith.constant 0 : index
    %c0_30 = arith.constant 0 : index
    %c0_31 = arith.constant 0 : index
    %47 = vector.load %arg11[%c0_29, %c0_30, %c0_31] : memref<4x8x1xf32, #tpu.memory_space<vmem>>, vector<1x8x1xf32>
    %48 = vector.shape_cast %47 : vector<1x8x1xf32> to vector<8x1xf32>
    %49 = vector.shape_cast %22 : vector<8x1xf32> to vector<1x8x1xf32>
    tpu.vector_store %arg11[%c0_29, %c0_30, %c0_31], %49 {strides = array<i32>} : memref<4x8x1xf32, #tpu.memory_space<vmem>>, vector<1x8x1xf32>,
    %c0_32 = arith.constant 0 : index
    %c8 = arith.constant 8 : index
    %50 = vector.load %arg9[%c0_32, %c8] : memref<8x32xbf16, #tpu.memory_space<vmem>>, vector<8x8xbf16>
    %51 = vector.extract_strided_slice %4 {offsets = [0, 8], sizes = [8, 8], strides = [1, 1]} : vector<8x64xbf16> to vector<8x8xbf16>
    %52 = vector.extract_strided_slice %4 {offsets = [0, 40], sizes = [8, 8], strides = [1, 1]} : vector<8x64xbf16> to vector<8x8xbf16>
    %cst_33 = arith.constant dense<0.000000e+00> : vector<8x8xf32>
    %53 = tpu.matmul %50, %51, %cst_33 {dimension_numbers = #tpu.dot_dimension_numbers<[1], [1], [0], [0], [0, 0, 1, 0], [], []>} : vector<8x8xbf16>, vector<8x8xbf16>, vector<8x8xf32> -> vector<8x8xf32>
    %54 = vector.broadcast %11 : vector<1x8xf32> to vector<8x8xf32>
    %55 = arith.addf %53, %54 : vector<8x8xf32>
    %c1 = arith.constant 1 : index
    %c0_34 = arith.constant 0 : index
    %c0_35 = arith.constant 0 : index
    %56 = vector.load %arg11[%c1, %c0_34, %c0_35] : memref<4x8x1xf32, #tpu.memory_space<vmem>>, vector<1x8x1xf32>
    %57 = vector.shape_cast %56 : vector<1x8x1xf32> to vector<8x1xf32>
    %cst_36 = arith.constant dense<0xFF800000> : vector<8xf32>
    %58 = vector.multi_reduction <maximumf>, %55, %cst_36 [1] : vector<8x8xf32> to vector<8xf32>
    %59 = vector.shape_cast %58 : vector<8xf32> to vector<8x1xf32>
    %60 = arith.maximumf %57, %59 : vector<8x1xf32>
    %61 = arith.subf %57, %60 : vector<8x1xf32>
    %62 = math.exp %61 : vector<8x1xf32>
    %63 = vector.broadcast %60 : vector<8x1xf32> to vector<8x8xf32>
    %64 = arith.subf %55, %63 : vector<8x8xf32>
    %65 = math.exp %64 : vector<8x8xf32>
    %c1_37 = arith.constant 1 : index
    %c0_38 = arith.constant 0 : index
    %c0_39 = arith.constant 0 : index
    %66 = vector.load %arg12[%c1_37, %c0_38, %c0_39] : memref<4x8x1xf32, #tpu.memory_space<vmem>>, vector<1x8x1xf32>
    %67 = vector.shape_cast %66 : vector<1x8x1xf32> to vector<8x1xf32>
    %68 = arith.mulf %62, %67 : vector<8x1xf32>
    %cst_40 = arith.constant dense<0.000000e+00> : vector<8xf32>
    %69 = vector.multi_reduction <add>, %65, %cst_40 [1] : vector<8x8xf32> to vector<8xf32>
    %70 = vector.shape_cast %69 : vector<8xf32> to vector<8x1xf32>
    %71 = arith.addf %68, %70 : vector<8x1xf32>
    %c1_41 = arith.constant 1 : index
    %c0_42 = arith.constant 0 : index
    %c0_43 = arith.constant 0 : index
    %72 = vector.load %arg12[%c1_41, %c0_42, %c0_43] : memref<4x8x1xf32, #tpu.memory_space<vmem>>, vector<1x8x1xf32>
    %73 = vector.shape_cast %72 : vector<1x8x1xf32> to vector<8x1xf32>
    %74 = vector.shape_cast %71 : vector<8x1xf32> to vector<1x8x1xf32>
    tpu.vector_store %arg12[%c1_41, %c0_42, %c0_43], %74 {strides = array<i32>} : memref<4x8x1xf32, #tpu.memory_space<vmem>>, vector<1x8x1xf32>,
    %c1_44 = arith.constant 1 : index
    %c0_45 = arith.constant 0 : index
    %c0_46 = arith.constant 0 : index
    %75 = vector.load %arg13[%c1_44, %c0_45, %c0_46] : memref<4x8x8xf32, #tpu.memory_space<vmem>>, vector<1x8x8xf32>
    %76 = vector.shape_cast %75 : vector<1x8x8xf32> to vector<8x8xf32>
    %77 = vector.broadcast %62 : vector<8x1xf32> to vector<8x8xf32>
    %78 = arith.mulf %77, %76 : vector<8x8xf32>
    %79 = arith.truncf %65 : vector<8x8xf32> to vector<8x8xbf16>
    %cst_47 = arith.constant dense<0.000000e+00> : vector<8x8xf32>
    %80 = tpu.matmul %79, %52, %cst_47 {dimension_numbers = #tpu.dot_dimension_numbers<[1], [0], [0], [1], [0, 0, 1, 1], [], []>} : vector<8x8xbf16>, vector<8x8xbf16>, vector<8x8xf32> -> vector<8x8xf32>
    %81 = arith.addf %78, %80 : vector<8x8xf32>
    %c1_48 = arith.constant 1 : index
    %c0_49 = arith.constant 0 : index
    %c0_50 = arith.constant 0 : index
    %82 = vector.load %arg13[%c1_48, %c0_49, %c0_50] : memref<4x8x8xf32, #tpu.memory_space<vmem>>, vector<1x8x8xf32>
    %83 = vector.shape_cast %82 : vector<1x8x8xf32> to vector<8x8xf32>
    %84 = vector.shape_cast %81 : vector<8x8xf32> to vector<1x8x8xf32>
    tpu.vector_store %arg13[%c1_48, %c0_49, %c0_50], %84 {strides = array<i32>} : memref<4x8x8xf32, #tpu.memory_space<vmem>>, vector<1x8x8xf32>,
    %c1_51 = arith.constant 1 : index
    %c0_52 = arith.constant 0 : index
    %c0_53 = arith.constant 0 : index
    %85 = vector.load %arg11[%c1_51, %c0_52, %c0_53] : memref<4x8x1xf32, #tpu.memory_space<vmem>>, vector<1x8x1xf32>
    %86 = vector.shape_cast %85 : vector<1x8x1xf32> to vector<8x1xf32>
    %87 = vector.shape_cast %60 : vector<8x1xf32> to vector<1x8x1xf32>
    tpu.vector_store %arg11[%c1_51, %c0_52, %c0_53], %87 {strides = array<i32>} : memref<4x8x1xf32, #tpu.memory_space<vmem>>, vector<1x8x1xf32>,
    %c0_54 = arith.constant 0 : index
    %c16 = arith.constant 16 : index
    %88 = vector.load %arg9[%c0_54, %c16] : memref<8x32xbf16, #tpu.memory_space<vmem>>, vector<8x8xbf16>
    %89 = vector.extract_strided_slice %4 {offsets = [0, 16], sizes = [8, 8], strides = [1, 1]} : vector<8x64xbf16> to vector<8x8xbf16>
    %90 = vector.extract_strided_slice %4 {offsets = [0, 48], sizes = [8, 8], strides = [1, 1]} : vector<8x64xbf16> to vector<8x8xbf16>
    %cst_55 = arith.constant dense<0.000000e+00> : vector<8x8xf32>
    %91 = tpu.matmul %88, %89, %cst_55 {dimension_numbers = #tpu.dot_dimension_numbers<[1], [1], [0], [0], [0, 0, 1, 0], [], []>} : vector<8x8xbf16>, vector<8x8xbf16>, vector<8x8xf32> -> vector<8x8xf32>
    %92 = vector.broadcast %11 : vector<1x8xf32> to vector<8x8xf32>
    %93 = arith.addf %91, %92 : vector<8x8xf32>
    %c2 = arith.constant 2 : index
    %c0_56 = arith.constant 0 : index
    %c0_57 = arith.constant 0 : index
    %94 = vector.load %arg11[%c2, %c0_56, %c0_57] : memref<4x8x1xf32, #tpu.memory_space<vmem>>, vector<1x8x1xf32>
    %95 = vector.shape_cast %94 : vector<1x8x1xf32> to vector<8x1xf32>
    %cst_58 = arith.constant dense<0xFF800000> : vector<8xf32>
    %96 = vector.multi_reduction <maximumf>, %93, %cst_58 [1] : vector<8x8xf32> to vector<8xf32>
    %97 = vector.shape_cast %96 : vector<8xf32> to vector<8x1xf32>
    %98 = arith.maximumf %95, %97 : vector<8x1xf32>
    %99 = arith.subf %95, %98 : vector<8x1xf32>
    %100 = math.exp %99 : vector<8x1xf32>
    %101 = vector.broadcast %98 : vector<8x1xf32> to vector<8x8xf32>
    %102 = arith.subf %93, %101 : vector<8x8xf32>
    %103 = math.exp %102 : vector<8x8xf32>
    %c2_59 = arith.constant 2 : index
    %c0_60 = arith.constant 0 : index
    %c0_61 = arith.constant 0 : index
    %104 = vector.load %arg12[%c2_59, %c0_60, %c0_61] : memref<4x8x1xf32, #tpu.memory_space<vmem>>, vector<1x8x1xf32>
    %105 = vector.shape_cast %104 : vector<1x8x1xf32> to vector<8x1xf32>
    %106 = arith.mulf %100, %105 : vector<8x1xf32>
    %cst_62 = arith.constant dense<0.000000e+00> : vector<8xf32>
    %107 = vector.multi_reduction <add>, %103, %cst_62 [1] : vector<8x8xf32> to vector<8xf32>
    %108 = vector.shape_cast %107 : vector<8xf32> to vector<8x1xf32>
    %109 = arith.addf %106, %108 : vector<8x1xf32>
    %c2_63 = arith.constant 2 : index
    %c0_64 = arith.constant 0 : index
    %c0_65 = arith.constant 0 : index
    %110 = vector.load %arg12[%c2_63, %c0_64, %c0_65] : memref<4x8x1xf32, #tpu.memory_space<vmem>>, vector<1x8x1xf32>
    %111 = vector.shape_cast %110 : vector<1x8x1xf32> to vector<8x1xf32>
    %112 = vector.shape_cast %109 : vector<8x1xf32> to vector<1x8x1xf32>
    tpu.vector_store %arg12[%c2_63, %c0_64, %c0_65], %112 {strides = array<i32>} : memref<4x8x1xf32, #tpu.memory_space<vmem>>, vector<1x8x1xf32>,
    %c2_66 = arith.constant 2 : index
    %c0_67 = arith.constant 0 : index
    %c0_68 = arith.constant 0 : index
    %113 = vector.load %arg13[%c2_66, %c0_67, %c0_68] : memref<4x8x8xf32, #tpu.memory_space<vmem>>, vector<1x8x8xf32>
    %114 = vector.shape_cast %113 : vector<1x8x8xf32> to vector<8x8xf32>
    %115 = vector.broadcast %100 : vector<8x1xf32> to vector<8x8xf32>
    %116 = arith.mulf %115, %114 : vector<8x8xf32>
    %117 = arith.truncf %103 : vector<8x8xf32> to vector<8x8xbf16>
    %cst_69 = arith.constant dense<0.000000e+00> : vector<8x8xf32>
    %118 = tpu.matmul %117, %90, %cst_69 {dimension_numbers = #tpu.dot_dimension_numbers<[1], [0], [0], [1], [0, 0, 1, 1], [], []>} : vector<8x8xbf16>, vector<8x8xbf16>, vector<8x8xf32> -> vector<8x8xf32>
    %119 = arith.addf %116, %118 : vector<8x8xf32>
    %c2_70 = arith.constant 2 : index
    %c0_71 = arith.constant 0 : index
    %c0_72 = arith.constant 0 : index
    %120 = vector.load %arg13[%c2_70, %c0_71, %c0_72] : memref<4x8x8xf32, #tpu.memory_space<vmem>>, vector<1x8x8xf32>
    %121 = vector.shape_cast %120 : vector<1x8x8xf32> to vector<8x8xf32>
    %122 = vector.shape_cast %119 : vector<8x8xf32> to vector<1x8x8xf32>
    tpu.vector_store %arg13[%c2_70, %c0_71, %c0_72], %122 {strides = array<i32>} : memref<4x8x8xf32, #tpu.memory_space<vmem>>, vector<1x8x8xf32>,
    %c2_73 = arith.constant 2 : index
    %c0_74 = arith.constant 0 : index
    %c0_75 = arith.constant 0 : index
    %123 = vector.load %arg11[%c2_73, %c0_74, %c0_75] : memref<4x8x1xf32, #tpu.memory_space<vmem>>, vector<1x8x1xf32>
    %124 = vector.shape_cast %123 : vector<1x8x1xf32> to vector<8x1xf32>
    %125 = vector.shape_cast %98 : vector<8x1xf32> to vector<1x8x1xf32>
    tpu.vector_store %arg11[%c2_73, %c0_74, %c0_75], %125 {strides = array<i32>} : memref<4x8x1xf32, #tpu.memory_space<vmem>>, vector<1x8x1xf32>,
    %c0_76 = arith.constant 0 : index
    %c24 = arith.constant 24 : index
    %126 = vector.load %arg9[%c0_76, %c24] : memref<8x32xbf16, #tpu.memory_space<vmem>>, vector<8x8xbf16>
    %127 = vector.extract_strided_slice %4 {offsets = [0, 24], sizes = [8, 8], strides = [1, 1]} : vector<8x64xbf16> to vector<8x8xbf16>
    %128 = vector.extract_strided_slice %4 {offsets = [0, 56], sizes = [8, 8], strides = [1, 1]} : vector<8x64xbf16> to vector<8x8xbf16>
    %cst_77 = arith.constant dense<0.000000e+00> : vector<8x8xf32>
    %129 = tpu.matmul %126, %127, %cst_77 {dimension_numbers = #tpu.dot_dimension_numbers<[1], [1], [0], [0], [0, 0, 1, 0], [], []>} : vector<8x8xbf16>, vector<8x8xbf16>, vector<8x8xf32> -> vector<8x8xf32>
    %130 = vector.broadcast %11 : vector<1x8xf32> to vector<8x8xf32>
    %131 = arith.addf %129, %130 : vector<8x8xf32>
    %c3 = arith.constant 3 : index
    %c0_78 = arith.constant 0 : index
    %c0_79 = arith.constant 0 : index
    %132 = vector.load %arg11[%c3, %c0_78, %c0_79] : memref<4x8x1xf32, #tpu.memory_space<vmem>>, vector<1x8x1xf32>
    %133 = vector.shape_cast %132 : vector<1x8x1xf32> to vector<8x1xf32>
    %cst_80 = arith.constant dense<0xFF800000> : vector<8xf32>
    %134 = vector.multi_reduction <maximumf>, %131, %cst_80 [1] : vector<8x8xf32> to vector<8xf32>
    %135 = vector.shape_cast %134 : vector<8xf32> to vector<8x1xf32>
    %136 = arith.maximumf %133, %135 : vector<8x1xf32>
    %137 = arith.subf %133, %136 : vector<8x1xf32>
    %138 = math.exp %137 : vector<8x1xf32>
    %139 = vector.broadcast %136 : vector<8x1xf32> to vector<8x8xf32>
    %140 = arith.subf %131, %139 : vector<8x8xf32>
    %141 = math.exp %140 : vector<8x8xf32>
    %c3_81 = arith.constant 3 : index
    %c0_82 = arith.constant 0 : index
    %c0_83 = arith.constant 0 : index
    %142 = vector.load %arg12[%c3_81, %c0_82, %c0_83] : memref<4x8x1xf32, #tpu.memory_space<vmem>>, vector<1x8x1xf32>
    %143 = vector.shape_cast %142 : vector<1x8x1xf32> to vector<8x1xf32>
    %144 = arith.mulf %138, %143 : vector<8x1xf32>
    %cst_84 = arith.constant dense<0.000000e+00> : vector<8xf32>
    %145 = vector.multi_reduction <add>, %141, %cst_84 [1] : vector<8x8xf32> to vector<8xf32>
    %146 = vector.shape_cast %145 : vector<8xf32> to vector<8x1xf32>
    %147 = arith.addf %144, %146 : vector<8x1xf32>
    %c3_85 = arith.constant 3 : index
    %c0_86 = arith.constant 0 : index
    %c0_87 = arith.constant 0 : index
    %148 = vector.load %arg12[%c3_85, %c0_86, %c0_87] : memref<4x8x1xf32, #tpu.memory_space<vmem>>, vector<1x8x1xf32>
    %149 = vector.shape_cast %148 : vector<1x8x1xf32> to vector<8x1xf32>
    %150 = vector.shape_cast %147 : vector<8x1xf32> to vector<1x8x1xf32>
    tpu.vector_store %arg12[%c3_85, %c0_86, %c0_87], %150 {strides = array<i32>} : memref<4x8x1xf32, #tpu.memory_space<vmem>>, vector<1x8x1xf32>,
    %c3_88 = arith.constant 3 : index
    %c0_89 = arith.constant 0 : index
    %c0_90 = arith.constant 0 : index
    %151 = vector.load %arg13[%c3_88, %c0_89, %c0_90] : memref<4x8x8xf32, #tpu.memory_space<vmem>>, vector<1x8x8xf32>
    %152 = vector.shape_cast %151 : vector<1x8x8xf32> to vector<8x8xf32>
    %153 = vector.broadcast %138 : vector<8x1xf32> to vector<8x8xf32>
    %154 = arith.mulf %153, %152 : vector<8x8xf32>
    %155 = arith.truncf %141 : vector<8x8xf32> to vector<8x8xbf16>
    %cst_91 = arith.constant dense<0.000000e+00> : vector<8x8xf32>
    %156 = tpu.matmul %155, %128, %cst_91 {dimension_numbers = #tpu.dot_dimension_numbers<[1], [0], [0], [1], [0, 0, 1, 1], [], []>} : vector<8x8xbf16>, vector<8x8xbf16>, vector<8x8xf32> -> vector<8x8xf32>
    %157 = arith.addf %154, %156 : vector<8x8xf32>
    %c3_92 = arith.constant 3 : index
    %c0_93 = arith.constant 0 : index
    %c0_94 = arith.constant 0 : index
    %158 = vector.load %arg13[%c3_92, %c0_93, %c0_94] : memref<4x8x8xf32, #tpu.memory_space<vmem>>, vector<1x8x8xf32>
    %159 = vector.shape_cast %158 : vector<1x8x8xf32> to vector<8x8xf32>
    %160 = vector.shape_cast %157 : vector<8x8xf32> to vector<1x8x8xf32>
    tpu.vector_store %arg13[%c3_92, %c0_93, %c0_94], %160 {strides = array<i32>} : memref<4x8x8xf32, #tpu.memory_space<vmem>>, vector<1x8x8xf32>,
    %c3_95 = arith.constant 3 : index
    %c0_96 = arith.constant 0 : index
    %c0_97 = arith.constant 0 : index
    %161 = vector.load %arg11[%c3_95, %c0_96, %c0_97] : memref<4x8x1xf32, #tpu.memory_space<vmem>>, vector<1x8x1xf32>
    %162 = vector.shape_cast %161 : vector<1x8x1xf32> to vector<8x1xf32>
    %163 = vector.shape_cast %136 : vector<8x1xf32> to vector<1x8x1xf32>
    tpu.vector_store %arg11[%c3_95, %c0_96, %c0_97], %163 {strides = array<i32>} : memref<4x8x1xf32, #tpu.memory_space<vmem>>, vector<1x8x1xf32>,
    %c0_i32_98 = arith.constant 0 : i32
    %164 = arith.cmpi eq, %arg2, %c0_i32_98 : i32
    %165 = arith.extui %164 : i1 to i32
    %c0_i32_99 = arith.constant 0 : i32
    %166 = arith.cmpi ne, %165, %c0_i32_99 : i32
    scf.if %166 {
      %c0_100 = arith.constant 0 : index
      %c0_101 = arith.constant 0 : index
      %c0_102 = arith.constant 0 : index
      %167 = vector.load %arg13[%c0_100, %c0_101, %c0_102] : memref<4x8x8xf32, #tpu.memory_space<vmem>>, vector<1x8x8xf32>
      %168 = vector.shape_cast %167 : vector<1x8x8xf32> to vector<8x8xf32>
      %c0_103 = arith.constant 0 : index
      %c0_104 = arith.constant 0 : index
      %c0_105 = arith.constant 0 : index
      %169 = vector.load %arg12[%c0_103, %c0_104, %c0_105] : memref<4x8x1xf32, #tpu.memory_space<vmem>>, vector<1x8x1xf32>
      %170 = vector.shape_cast %169 : vector<1x8x1xf32> to vector<8x1xf32>
      %171 = vector.broadcast %170 : vector<8x1xf32> to vector<8x8xf32>
      %172 = arith.divf %168, %171 : vector<8x8xf32>
      %173 = arith.truncf %172 : vector<8x8xf32> to vector<8x8xbf16>
      %c0_106 = arith.constant 0 : index
      %c0_107 = arith.constant 0 : index
      %174 = vector.load %arg10[%c0_106, %c0_107] : memref<8x32xbf16, #tpu.memory_space<vmem>>, vector<8x8xbf16>
      tpu.vector_store %arg10[%c0_106, %c0_107], %173 {strides = array<i32>} : memref<8x32xbf16, #tpu.memory_space<vmem>>, vector<8x8xbf16>,
      %c1_108 = arith.constant 1 : index
      %c0_109 = arith.constant 0 : index
      %c0_110 = arith.constant 0 : index
      %175 = vector.load %arg13[%c1_108, %c0_109, %c0_110] : memref<4x8x8xf32, #tpu.memory_space<vmem>>, vector<1x8x8xf32>
      %176 = vector.shape_cast %175 : vector<1x8x8xf32> to vector<8x8xf32>
      %c1_111 = arith.constant 1 : index
      %c0_112 = arith.constant 0 : index
      %c0_113 = arith.constant 0 : index
      %177 = vector.load %arg12[%c1_111, %c0_112, %c0_113] : memref<4x8x1xf32, #tpu.memory_space<vmem>>, vector<1x8x1xf32>
      %178 = vector.shape_cast %177 : vector<1x8x1xf32> to vector<8x1xf32>
      %179 = vector.broadcast %178 : vector<8x1xf32> to vector<8x8xf32>
      %180 = arith.divf %176, %179 : vector<8x8xf32>
      %181 = arith.truncf %180 : vector<8x8xf32> to vector<8x8xbf16>
      %c0_114 = arith.constant 0 : index
      %c8_115 = arith.constant 8 : index
      %182 = vector.load %arg10[%c0_114, %c8_115] : memref<8x32xbf16, #tpu.memory_space<vmem>>, vector<8x8xbf16>
      tpu.vector_store %arg10[%c0_114, %c8_115], %181 {strides = array<i32>} : memref<8x32xbf16, #tpu.memory_space<vmem>>, vector<8x8xbf16>,
      %c2_116 = arith.constant 2 : index
      %c0_117 = arith.constant 0 : index
      %c0_118 = arith.constant 0 : index
      %183 = vector.load %arg13[%c2_116, %c0_117, %c0_118] : memref<4x8x8xf32, #tpu.memory_space<vmem>>, vector<1x8x8xf32>
      %184 = vector.shape_cast %183 : vector<1x8x8xf32> to vector<8x8xf32>
      %c2_119 = arith.constant 2 : index
      %c0_120 = arith.constant 0 : index
      %c0_121 = arith.constant 0 : index
      %185 = vector.load %arg12[%c2_119, %c0_120, %c0_121] : memref<4x8x1xf32, #tpu.memory_space<vmem>>, vector<1x8x1xf32>
      %186 = vector.shape_cast %185 : vector<1x8x1xf32> to vector<8x1xf32>
      %187 = vector.broadcast %186 : vector<8x1xf32> to vector<8x8xf32>
      %188 = arith.divf %184, %187 : vector<8x8xf32>
      %189 = arith.truncf %188 : vector<8x8xf32> to vector<8x8xbf16>
      %c0_122 = arith.constant 0 : index
      %c16_123 = arith.constant 16 : index
      %190 = vector.load %arg10[%c0_122, %c16_123] : memref<8x32xbf16, #tpu.memory_space<vmem>>, vector<8x8xbf16>
      tpu.vector_store %arg10[%c0_122, %c16_123], %189 {strides = array<i32>} : memref<8x32xbf16, #tpu.memory_space<vmem>>, vector<8x8xbf16>,
      %c3_124 = arith.constant 3 : index
      %c0_125 = arith.constant 0 : index
      %c0_126 = arith.constant 0 : index
      %191 = vector.load %arg13[%c3_124, %c0_125, %c0_126] : memref<4x8x8xf32, #tpu.memory_space<vmem>>, vector<1x8x8xf32>
      %192 = vector.shape_cast %191 : vector<1x8x8xf32> to vector<8x8xf32>
      %c3_127 = arith.constant 3 : index
      %c0_128 = arith.constant 0 : index
      %c0_129 = arith.constant 0 : index
      %193 = vector.load %arg12[%c3_127, %c0_128, %c0_129] : memref<4x8x1xf32, #tpu.memory_space<vmem>>, vector<1x8x1xf32>
      %194 = vector.shape_cast %193 : vector<1x8x1xf32> to vector<8x1xf32>
      %195 = vector.broadcast %194 : vector<8x1xf32> to vector<8x8xf32>
      %196 = arith.divf %192, %195 : vector<8x8xf32>
      %197 = arith.truncf %196 : vector<8x8xf32> to vector<8x8xbf16>
      %c0_130 = arith.constant 0 : index
      %c24_131 = arith.constant 24 : index
      %198 = vector.load %arg10[%c0_130, %c24_131] : memref<8x32xbf16, #tpu.memory_space<vmem>>, vector<8x8xbf16>
      tpu.vector_store %arg10[%c0_130, %c24_131], %197 {strides = array<i32>} : memref<8x32xbf16, #tpu.memory_space<vmem>>, vector<8x8xbf16>,
      %c0_132 = arith.constant 0 : index
      %c0_133 = arith.constant 0 : index
      %199 = vector.load %arg10[%c0_132, %c0_133] : memref<8x32xbf16, #tpu.memory_space<vmem>>, vector<8x32xbf16>
      %c0_134 = arith.constant 0 : index
      %c0_135 = arith.constant 0 : index
      %c0_136 = arith.constant 0 : index
      %200 = vector.load %arg8[%c0_134, %c0_135, %c0_136] : memref<1x8x32xbf16, #tpu.memory_space<vmem>>, vector<1x8x32xbf16>
      %201 = vector.shape_cast %200 : vector<1x8x32xbf16> to vector<8x32xbf16>
      %202 = vector.shape_cast %199 : vector<8x32xbf16> to vector<1x8x32xbf16>
      tpu.vector_store %arg8[%c0_134, %c0_135, %c0_136], %202 {strides = array<i32>} : memref<1x8x32xbf16, #tpu.memory_space<vmem>>, vector<1x8x32xbf16>,
    } else {
    }
    return
  }
  func.func @transform_0(%arg0: i32, %arg1: i32, %arg2: i32) -> (i32, i32, i32) {
    %c0_i32 = arith.constant 0 : i32
    %c0_i32_0 = arith.constant 0 : i32
    return %arg0, %arg1, %c0_i32 : i32, i32, i32
  }
  func.func @transform_1(%arg0: i32, %arg1: i32, %arg2: i32) -> (i32, i32) {
    %c0_i32 = arith.constant 0 : i32
    %c0_i32_0 = arith.constant 0 : i32
    %c0_i32_1 = arith.constant 0 : i32
    return %c0_i32, %c0_i32_0 : i32, i32
  }
  func.func @transform_2(%arg0: i32, %arg1: i32, %arg2: i32) -> (i32, i32) {
    %c0_i32 = arith.constant 0 : i32
    %c0_i32_0 = arith.constant 0 : i32
    %c0_i32_1 = arith.constant 0 : i32
    return %c0_i32, %c0_i32_0 : i32, i32
  }
  func.func @transform_3(%arg0: i32, %arg1: i32, %arg2: i32) -> (i32, i32, i32) {
    %c0_i32 = arith.constant 0 : i32
    %c0_i32_0 = arith.constant 0 : i32
    return %arg0, %arg2, %c0_i32 : i32, i32, i32
  }
  func.func @transform_4(%arg0: i32, %arg1: i32, %arg2: i32) -> (i32, i32, i32) {
    %c0_i32 = arith.constant 0 : i32
    %c0_i32_0 = arith.constant 0 : i32
    return %arg0, %c0_i32, %arg2 : i32, i32, i32
  }
  func.func @transform_5(%arg0: i32, %arg1: i32, %arg2: i32) -> (i32, i32, i32) {
    %c0_i32 = arith.constant 0 : i32
    %c0_i32_0 = arith.constant 0 : i32
    return %arg0, %arg1, %c0_i32 : i32, i32, i32
  }
}

module attributes {stable_mosaic.version = 11 : i64} {
  func.func @_lm_head_ce_kernel(%arg0: i32, %arg1: i32, %arg2: i32, %arg3: memref<16x32xbf16, #tpu.memory_space<vmem>>, %arg4: memref<64x32xbf16, #tpu.memory_space<vmem>>, %arg5: memref<1x64xf32, #tpu.memory_space<vmem>>, %arg6: memref<16x1xi32, #tpu.memory_space<vmem>>, %arg7: memref<16x64xbf16, #tpu.memory_space<vmem>>, %arg8: memref<16x1xf32, #tpu.memory_space<vmem>>, %arg9: memref<16x64xf32, #tpu.memory_space<vmem>>, %arg10: memref<16x1xf32, #tpu.memory_space<vmem>>, %arg11: memref<16x1xf32, #tpu.memory_space<vmem>>, %arg12: memref<16x1xf32, #tpu.memory_space<vmem>>) attributes {dimension_semantics = [#tpu.dimension_semantics<parallel>, #tpu.dimension_semantics<arbitrary>, #tpu.dimension_semantics<arbitrary>], iteration_bounds = array<i64: 1, 1, 1>, scalar_prefetch = 0 : i64, scratch_operands = 4 : i64, tpu.core_type = #tpu.core_type<tc>, window_params = [{transform_indices = @transform_0, window_bounds = array<i64: 16, 32>}, {transform_indices = @transform_1, window_bounds = array<i64: 64, 32>}, {transform_indices = @transform_2, window_bounds = array<i64: 1, 64>}, {transform_indices = @transform_3, window_bounds = array<i64: 16, 1>}, {transform_indices = @transform_4, window_bounds = array<i64: 16, 64>}, {transform_indices = @transform_5, window_bounds = array<i64: 16, 1>}]} {
    %c0_i32 = arith.constant 0 : i32
    %0 = arith.cmpi eq, %arg1, %c0_i32 : i32
    %c0_i32_0 = arith.constant 0 : i32
    %1 = arith.cmpi eq, %arg2, %c0_i32_0 : i32
    %2 = arith.andi %0, %1 : i1
    %3 = arith.extui %2 : i1 to i32
    %c0_i32_1 = arith.constant 0 : i32
    %4 = arith.cmpi ne, %3, %c0_i32_1 : i32
    scf.if %4 {
      %cst_14 = arith.constant -1.000000e+30 : f32
      %22 = vector.broadcast %cst_14 : f32 to vector<16x1xf32>
      %c0_15 = arith.constant 0 : index
      %c0_16 = arith.constant 0 : index
      %23 = vector.load %arg10[%c0_15, %c0_16] : memref<16x1xf32, #tpu.memory_space<vmem>>, vector<16x1xf32>
      tpu.vector_store %arg10[%c0_15, %c0_16], %22 {strides = array<i32>} : memref<16x1xf32, #tpu.memory_space<vmem>>, vector<16x1xf32>,
      %cst_17 = arith.constant 0.000000e+00 : f32
      %24 = vector.broadcast %cst_17 : f32 to vector<16x1xf32>
      %c0_18 = arith.constant 0 : index
      %c0_19 = arith.constant 0 : index
      %25 = vector.load %arg11[%c0_18, %c0_19] : memref<16x1xf32, #tpu.memory_space<vmem>>, vector<16x1xf32>
      tpu.vector_store %arg11[%c0_18, %c0_19], %24 {strides = array<i32>} : memref<16x1xf32, #tpu.memory_space<vmem>>, vector<16x1xf32>,
      %cst_20 = arith.constant 0.000000e+00 : f32
      %26 = vector.broadcast %cst_20 : f32 to vector<16x1xf32>
      %c0_21 = arith.constant 0 : index
      %c0_22 = arith.constant 0 : index
      %27 = vector.load %arg12[%c0_21, %c0_22] : memref<16x1xf32, #tpu.memory_space<vmem>>, vector<16x1xf32>
      tpu.vector_store %arg12[%c0_21, %c0_22], %26 {strides = array<i32>} : memref<16x1xf32, #tpu.memory_space<vmem>>, vector<16x1xf32>,
    } else {
    }
    %c0 = arith.constant 0 : index
    %c0_2 = arith.constant 0 : index
    %5 = vector.load %arg3[%c0, %c0_2] : memref<16x32xbf16, #tpu.memory_space<vmem>>, vector<16x32xbf16>
    %c0_3 = arith.constant 0 : index
    %c0_4 = arith.constant 0 : index
    %6 = vector.load %arg4[%c0_3, %c0_4] : memref<64x32xbf16, #tpu.memory_space<vmem>>, vector<64x32xbf16>
    %cst = arith.constant dense<0.000000e+00> : vector<16x64xf32>
    %7 = tpu.matmul %5, %6, %cst {dimension_numbers = #tpu.dot_dimension_numbers<[1], [1], [0], [0], [0, 0, 1, 0], [], []>} : vector<16x32xbf16>, vector<64x32xbf16>, vector<16x64xf32> -> vector<16x64xf32>
    %c0_i32_5 = arith.constant 0 : i32
    %8 = arith.cmpi eq, %arg2, %c0_i32_5 : i32
    %9 = arith.extui %8 : i1 to i32
    %c0_i32_6 = arith.constant 0 : i32
    %10 = arith.cmpi ne, %9, %c0_i32_6 : i32
    scf.if %10 {
      %c0_14 = arith.constant 0 : index
      %c0_15 = arith.constant 0 : index
      %22 = vector.load %arg9[%c0_14, %c0_15] : memref<16x64xf32, #tpu.memory_space<vmem>>, vector<16x64xf32>
      tpu.vector_store %arg9[%c0_14, %c0_15], %7 {strides = array<i32>} : memref<16x64xf32, #tpu.memory_space<vmem>>, vector<16x64xf32>,
    } else {
    }
    %c0_i32_7 = arith.constant 0 : i32
    %11 = arith.cmpi sgt, %arg2, %c0_i32_7 : i32
    %12 = arith.extui %11 : i1 to i32
    %c0_i32_8 = arith.constant 0 : i32
    %13 = arith.cmpi ne, %12, %c0_i32_8 : i32
    scf.if %13 {
      %c0_14 = arith.constant 0 : index
      %c0_15 = arith.constant 0 : index
      %22 = vector.load %arg9[%c0_14, %c0_15] : memref<16x64xf32, #tpu.memory_space<vmem>>, vector<16x64xf32>
      %23 = arith.addf %22, %7 : vector<16x64xf32>
      %c0_16 = arith.constant 0 : index
      %c0_17 = arith.constant 0 : index
      %24 = vector.load %arg9[%c0_16, %c0_17] : memref<16x64xf32, #tpu.memory_space<vmem>>, vector<16x64xf32>
      tpu.vector_store %arg9[%c0_16, %c0_17], %23 {strides = array<i32>} : memref<16x64xf32, #tpu.memory_space<vmem>>, vector<16x64xf32>,
    } else {
    }
    %c0_i32_9 = arith.constant 0 : i32
    %14 = arith.cmpi eq, %arg2, %c0_i32_9 : i32
    %15 = arith.extui %14 : i1 to i32
    %c0_i32_10 = arith.constant 0 : i32
    %16 = arith.cmpi ne, %15, %c0_i32_10 : i32
    scf.if %16 {
      %c0_14 = arith.constant 0 : index
      %c0_15 = arith.constant 0 : index
      %22 = vector.load %arg9[%c0_14, %c0_15] : memref<16x64xf32, #tpu.memory_space<vmem>>, vector<16x64xf32>
      %c0_16 = arith.constant 0 : index
      %c0_17 = arith.constant 0 : index
      %23 = vector.load %arg5[%c0_16, %c0_17] : memref<1x64xf32, #tpu.memory_space<vmem>>, vector<1x64xf32>
      %24 = vector.broadcast %23 : vector<1x64xf32> to vector<16x64xf32>
      %25 = arith.addf %22, %24 : vector<16x64xf32>
      %26 = arith.truncf %25 : vector<16x64xf32> to vector<16x64xbf16>
      %c0_18 = arith.constant 0 : index
      %c0_19 = arith.constant 0 : index
      %27 = vector.load %arg7[%c0_18, %c0_19] : memref<16x64xbf16, #tpu.memory_space<vmem>>, vector<16x64xbf16>
      tpu.vector_store %arg7[%c0_18, %c0_19], %26 {strides = array<i32>} : memref<16x64xbf16, #tpu.memory_space<vmem>>, vector<16x64xbf16>,
      %28 = tpu.iota {dimensions = array<i32: 1>} : vector<16x64xi32>
      %c64_i32 = arith.constant 64 : i32
      %29 = arith.muli %arg1, %c64_i32 : i32
      %30 = vector.broadcast %29 : i32 to vector<16x64xi32>
      %31 = arith.addi %28, %30 : vector<16x64xi32>
      %c0_20 = arith.constant 0 : index
      %c0_21 = arith.constant 0 : index
      %32 = vector.load %arg6[%c0_20, %c0_21] : memref<16x1xi32, #tpu.memory_space<vmem>>, vector<16x1xi32>
      %c0_22 = arith.constant 0 : index
      %c0_23 = arith.constant 0 : index
      %33 = vector.load %arg12[%c0_22, %c0_23] : memref<16x1xf32, #tpu.memory_space<vmem>>, vector<16x1xf32>
      %34 = vector.broadcast %32 : vector<16x1xi32> to vector<16x64xi32>
      %35 = arith.cmpi eq, %31, %34 : vector<16x64xi32>
      %cst_24 = arith.constant 0.000000e+00 : f32
      %36 = vector.broadcast %cst_24 : f32 to vector<16x64xf32>
      %37 = arith.select %35, %25, %36 : vector<16x64xi1>, vector<16x64xf32>
      %cst_25 = arith.constant dense<0.000000e+00> : vector<16xf32>
      %38 = vector.multi_reduction <add>, %37, %cst_25 [1] : vector<16x64xf32> to vector<16xf32>
      %39 = vector.shape_cast %38 : vector<16xf32> to vector<16x1xf32>
      %40 = arith.addf %33, %39 : vector<16x1xf32>
      %c0_26 = arith.constant 0 : index
      %c0_27 = arith.constant 0 : index
      %41 = vector.load %arg12[%c0_26, %c0_27] : memref<16x1xf32, #tpu.memory_space<vmem>>, vector<16x1xf32>
      tpu.vector_store %arg12[%c0_26, %c0_27], %40 {strides = array<i32>} : memref<16x1xf32, #tpu.memory_space<vmem>>, vector<16x1xf32>,
      %c0_28 = arith.constant 0 : index
      %c0_29 = arith.constant 0 : index
      %42 = vector.load %arg10[%c0_28, %c0_29] : memref<16x1xf32, #tpu.memory_space<vmem>>, vector<16x1xf32>
      %cst_30 = arith.constant dense<0xFF800000> : vector<16xf32>
      %43 = vector.multi_reduction <maximumf>, %25, %cst_30 [1] : vector<16x64xf32> to vector<16xf32>
      %44 = vector.shape_cast %43 : vector<16xf32> to vector<16x1xf32>
      %45 = arith.maximumf %42, %44 : vector<16x1xf32>
      %c0_31 = arith.constant 0 : index
      %c0_32 = arith.constant 0 : index
      %46 = vector.load %arg11[%c0_31, %c0_32] : memref<16x1xf32, #tpu.memory_space<vmem>>, vector<16x1xf32>
      %c0_33 = arith.constant 0 : index
      %c0_34 = arith.constant 0 : index
      %47 = vector.load %arg10[%c0_33, %c0_34] : memref<16x1xf32, #tpu.memory_space<vmem>>, vector<16x1xf32>
      %48 = arith.subf %47, %45 : vector<16x1xf32>
      %49 = math.exp %48 : vector<16x1xf32>
      %50 = arith.mulf %46, %49 : vector<16x1xf32>
      %51 = vector.broadcast %45 : vector<16x1xf32> to vector<16x64xf32>
      %52 = arith.subf %25, %51 : vector<16x64xf32>
      %53 = math.exp %52 : vector<16x64xf32>
      %cst_35 = arith.constant dense<0.000000e+00> : vector<16xf32>
      %54 = vector.multi_reduction <add>, %53, %cst_35 [1] : vector<16x64xf32> to vector<16xf32>
      %55 = vector.shape_cast %54 : vector<16xf32> to vector<16x1xf32>
      %56 = arith.addf %50, %55 : vector<16x1xf32>
      %c0_36 = arith.constant 0 : index
      %c0_37 = arith.constant 0 : index
      %57 = vector.load %arg11[%c0_36, %c0_37] : memref<16x1xf32, #tpu.memory_space<vmem>>, vector<16x1xf32>
      tpu.vector_store %arg11[%c0_36, %c0_37], %56 {strides = array<i32>} : memref<16x1xf32, #tpu.memory_space<vmem>>, vector<16x1xf32>,
      %c0_38 = arith.constant 0 : index
      %c0_39 = arith.constant 0 : index
      %58 = vector.load %arg10[%c0_38, %c0_39] : memref<16x1xf32, #tpu.memory_space<vmem>>, vector<16x1xf32>
      tpu.vector_store %arg10[%c0_38, %c0_39], %45 {strides = array<i32>} : memref<16x1xf32, #tpu.memory_space<vmem>>, vector<16x1xf32>,
    } else {
    }
    %c0_i32_11 = arith.constant 0 : i32
    %17 = arith.cmpi eq, %arg1, %c0_i32_11 : i32
    %c0_i32_12 = arith.constant 0 : i32
    %18 = arith.cmpi eq, %arg2, %c0_i32_12 : i32
    %19 = arith.andi %17, %18 : i1
    %20 = arith.extui %19 : i1 to i32
    %c0_i32_13 = arith.constant 0 : i32
    %21 = arith.cmpi ne, %20, %c0_i32_13 : i32
    scf.if %21 {
      %c0_14 = arith.constant 0 : index
      %c0_15 = arith.constant 0 : index
      %22 = vector.load %arg11[%c0_14, %c0_15] : memref<16x1xf32, #tpu.memory_space<vmem>>, vector<16x1xf32>
      %23 = math.log %22 : vector<16x1xf32>
      %c0_16 = arith.constant 0 : index
      %c0_17 = arith.constant 0 : index
      %24 = vector.load %arg10[%c0_16, %c0_17] : memref<16x1xf32, #tpu.memory_space<vmem>>, vector<16x1xf32>
      %25 = arith.addf %23, %24 : vector<16x1xf32>
      %c0_18 = arith.constant 0 : index
      %c0_19 = arith.constant 0 : index
      %26 = vector.load %arg12[%c0_18, %c0_19] : memref<16x1xf32, #tpu.memory_space<vmem>>, vector<16x1xf32>
      %27 = arith.subf %25, %26 : vector<16x1xf32>
      %c0_20 = arith.constant 0 : index
      %c0_21 = arith.constant 0 : index
      %28 = vector.load %arg6[%c0_20, %c0_21] : memref<16x1xi32, #tpu.memory_space<vmem>>, vector<16x1xi32>
      %c0_i32_22 = arith.constant 0 : i32
      %29 = vector.broadcast %c0_i32_22 : i32 to vector<16x1xi32>
      %30 = arith.cmpi sge, %28, %29 : vector<16x1xi32>
      %cst_23 = arith.constant 0.000000e+00 : f32
      %31 = vector.broadcast %cst_23 : f32 to vector<16x1xf32>
      %32 = arith.select %30, %27, %31 : vector<16x1xi1>, vector<16x1xf32>
      %c0_24 = arith.constant 0 : index
      %c0_25 = arith.constant 0 : index
      %33 = vector.load %arg8[%c0_24, %c0_25] : memref<16x1xf32, #tpu.memory_space<vmem>>, vector<16x1xf32>
      tpu.vector_store %arg8[%c0_24, %c0_25], %32 {strides = array<i32>} : memref<16x1xf32, #tpu.memory_space<vmem>>, vector<16x1xf32>,
    } else {
    }
    return
  }
  func.func @transform_0(%arg0: i32, %arg1: i32, %arg2: i32) -> (i32, i32) {
    %c0_i32 = arith.constant 0 : i32
    return %arg0, %arg2 : i32, i32
  }
  func.func @transform_1(%arg0: i32, %arg1: i32, %arg2: i32) -> (i32, i32) {
    %c0_i32 = arith.constant 0 : i32
    return %arg1, %arg2 : i32, i32
  }
  func.func @transform_2(%arg0: i32, %arg1: i32, %arg2: i32) -> (i32, i32) {
    %c0_i32 = arith.constant 0 : i32
    %c0_i32_0 = arith.constant 0 : i32
    return %c0_i32, %arg1 : i32, i32
  }
  func.func @transform_3(%arg0: i32, %arg1: i32, %arg2: i32) -> (i32, i32) {
    %c0_i32 = arith.constant 0 : i32
    %c0_i32_0 = arith.constant 0 : i32
    return %arg0, %c0_i32 : i32, i32
  }
  func.func @transform_4(%arg0: i32, %arg1: i32, %arg2: i32) -> (i32, i32) {
    %c0_i32 = arith.constant 0 : i32
    return %arg0, %arg1 : i32, i32
  }
  func.func @transform_5(%arg0: i32, %arg1: i32, %arg2: i32) -> (i32, i32) {
    %c0_i32 = arith.constant 0 : i32
    %c0_i32_0 = arith.constant 0 : i32
    return %arg0, %c0_i32 : i32, i32
  }
}

</mosaic_0001>

<llo_original>
// kernel: mybart_forward.22
$region0: #{mybart_forward.22}
  #allocation0 [shape = 'u32[]', space=smem, size = 0x4, offset = 0x4, fixed_abs, tag = 'smem constant byte address 0x4 - core index']
  #allocation1 [shape = 'u32[72,128]{1,0:T(1,128)}', space=vmem, size = 0x9000, scoped, tag = 'internal scratch']
  %s0 = inlined_call_operand.vmem [shape: bf16[16,32], index: 0, kind: input, shape index: {}]
  %s1 = inlined_call_operand.vmem [shape: f32[1,32], index: 1, kind: input, shape index: {}]
  %s2 = inlined_call_operand.vmem [shape: f32[1,32], index: 2, kind: input, shape index: {}]
  %s3 = inlined_call_operand.vmem [shape: bf16[16,32], index: 3, kind: output, shape index: {}]
  %s4 = sld [smem:[#allocation0]]
  $region22: #{mybart_forward.22} parent=0
    _
  %s6 = ssub.s32 1, %s4
  %s7 = scalar_select 0, %s6, %s4
  // Predicated region
  $region2: #{mybart_forward.22} parent=0 // pred_check
    _
  $region3: #{mybart_forward.22} parent=0 // pred_check_branch
    %9 = sbr.rel (0) target = $region5
  $region4: #{mybart_forward.22} parent=0 // pred_region
    _
  $region5: #{mybart_forward.22} parent=0 // pred_fallthru
    _
  // Predicated region
  $region6: #{mybart_forward.22} parent=0 // pred_check
    _
  $region7: #{mybart_forward.22} parent=0 // pred_check_branch
    %11 = sbr.rel (0) target = $region9
  $region8: #{mybart_forward.22} parent=0 // pred_region
    _
  $region9: #{mybart_forward.22} parent=0 // pred_fallthru
    _
  // Predicated region
  $region10: #{mybart_forward.22} parent=0 // pred_check
    _
  $region11: #{mybart_forward.22} parent=0 // pred_check_branch
    %13 = sbr.rel (0) target = $region13
  $region12: #{mybart_forward.22} parent=0 // pred_region
    _
  $region13: #{mybart_forward.22} parent=0 // pred_fallthru
    _
  %v14 = vld [vmem:[%s0] sm:$0xf]
  %v15 = vld [vmem:[%s0 + $0x4] sm:$0xf]
  %v16 = vunpack.c.l.bf16 %v14
  %v17 = vunpack.c.l.bf16 %v15
  %vm18 = vcmask 261120
  %v19 = vsel %vm18, %v16, 0.0
  %20 = vadd.xlane.f32.xlu0 %v19
  %v21 = vpop.xlane.xlu0 %20
  %v22 = vsel %vm18, %v17, 0.0
  %23 = vadd.xlane.f32.xlu0 %v22
  %v24 = vpop.xlane.xlu0 %23
  %v25 = vrcp.pop 32.0
  %v26 = vmul.f32 32.0, %v25
  %v27 = vsub.f32 1.0, %v26
  %v28 = vmul.f32 %v25, %v27
  %v29 = vadd.f32 %v25, %v28
  %vm30 = vweird.f32 %v25
  %v31 = vsel %vm30, %v25, %v29
  %v32 = vmul.f32 %v21, %v31
  %v33 = vmul.f32 %v24, %v31
  %v34 = vsub.f32 %v16, %v32
  %v35 = vsub.f32 %v17, %v33
  %v36 = vmul.f32 %v34, %v34
  %v37 = vmul.f32 %v35, %v35
  %v38 = vsel %vm18, %v36, 0.0
  %39 = vadd.xlane.f32.xlu0 %v38
  %v40 = vpop.xlane.xlu0 %39
  %v41 = vsel %vm18, %v37, 0.0
  %42 = vadd.xlane.f32.xlu0 %v41
  %v43 = vpop.xlane.xlu0 %42
  %v44 = vmul.f32 %v40, %v31
  %v45 = vmul.f32 %v43, %v31
  %v46 = vadd.f32 %v44, 1e-05
  %v47 = vadd.f32 %v45, 1e-05
  %v48 = vrsqrt.pop %v46
  %v49 = vmul.f32 %v48, %v46
  %v50 = vmul.f32 %v49, %v48
  %v51 = vmul.f32 0.5, %v50
  %v52 = vsub.f32 1.5, %v51
  %v53 = vmul.f32 %v48, %v52
  %vm54 = vweird.f32 %v46
  %vm55 = vweird.f32 %v48
  %vm56 = vmor %vm54, %vm55
  %v57 = vsel %vm56, %v48, %v53
  %v58 = vrsqrt.pop %v47
  %v59 = vmul.f32 %v58, %v47
  %v60 = vmul.f32 %v59, %v58
  %v61 = vmul.f32 0.5, %v60
  %v62 = vsub.f32 1.5, %v61
  %v63 = vmul.f32 %v58, %v62
  %vm64 = vweird.f32 %v47
  %vm65 = vweird.f32 %v58
  %vm66 = vmor %vm64, %vm65
  %v67 = vsel %vm66, %v58, %v63
  %v68 = vmul.f32 %v34, %v57
  %v69 = vmul.f32 %v35, %v67
  %v70 = vld [vmem:[%s1] sm:$0x1]
  %v72 = vperm.slane %v70, 0
  %v74 = vmul.f32 %v68, %v72
  %v75 = vmul.f32 %v69, %v72
  %v76 = vld [vmem:[%s2] sm:$0x1]
  %v78 = vperm.slane %v76, 0
  %v80 = vadd.f32 %v74, %v78
  %v81 = vadd.f32 %v75, %v78
  %v82 = vpack.c.bf16 %v80, %v80
  %v83 = vpack.c.bf16 %v81, %v81
  %vm84 = vcmask 257024
  %85 = vst.msk [vmem:[%s3] sm:$0xf] %vm84, %v82
  %86 = vst.msk [vmem:[%s3 + $0x4] sm:$0xf] %vm84, %v83
  // Predicated region
  $region14: #{mybart_forward.22} parent=0 // pred_check
    _
  $region15: #{mybart_forward.22} parent=0 // pred_check_branch
    %88 = sbr.rel (0) target = $region17
  $region16: #{mybart_forward.22} parent=0 // pred_region
    _
  $region17: #{mybart_forward.22} parent=0 // pred_fallthru
    _
  // Predicated region
  $region18: #{mybart_forward.22} parent=0 // pred_check
    _
  $region19: #{mybart_forward.22} parent=0 // pred_check_branch
    %90 = sbr.rel (0) target = $region21
  $region20: #{mybart_forward.22} parent=0 // pred_region
    _
  $region21: #{mybart_forward.22} parent=0 // pred_fallthru
    _

// kernel: mybart_forward.23
$region0: #{mybart_forward.23}
  #allocation0 [shape = 'u32[]', space=smem, size = 0x4, offset = 0x4, fixed_abs, tag = 'smem constant byte address 0x4 - core index']
  #allocation1 [shape = 'u32[72,128]{1,0:T(1,128)}', space=vmem, size = 0x9000, scoped, tag = 'internal scratch']
  #allocation2 [shape = 'f32[16,64]{1,0:T(8,128)}', space=vmem, size = 0x2000, scoped, tag = 'scratch operand']
  %s0 = inlined_call_operand.vmem [shape: bf16[16,32], index: 0, kind: input, shape index: {}]
  %s1 = inlined_call_operand.vmem [shape: bf16[32,64], index: 1, kind: input, shape index: {}]
  %s2 = inlined_call_operand.vmem [shape: f32[1,64], index: 2, kind: input, shape index: {}]
  %s3 = inlined_call_operand.vmem [shape: bf16[16,64], index: 3, kind: output, shape index: {}]
  %s4 = sld [smem:[#allocation0]]
  $region34: #{mybart_forward.23} parent=0
    _
  %s6 = ssub.s32 1, %s4
  %s7 = scalar_select 0, %s6, %s4
  // Predicated region
  $region2: #{mybart_forward.23} parent=0 // pred_check
    _
  $region3: #{mybart_forward.23} parent=0 // pred_check_branch
    %9 = sbr.rel (0) target = $region5
  $region4: #{mybart_forward.23} parent=0 // pred_region
    _
  $region5: #{mybart_forward.23} parent=0 // pred_fallthru
    _
  // Predicated region
  $region6: #{mybart_forward.23} parent=0 // pred_check
    _
  $region7: #{mybart_forward.23} parent=0 // pred_check_branch
    %11 = sbr.rel (0) target = $region9
  $region8: #{mybart_forward.23} parent=0 // pred_region
    _
  $region9: #{mybart_forward.23} parent=0 // pred_fallthru
    _
  // Predicated region
  $region10: #{mybart_forward.23} parent=0 // pred_check
    _
  $region11: #{mybart_forward.23} parent=0 // pred_check_branch
    %13 = sbr.rel (0) target = $region13
  $region12: #{mybart_forward.23} parent=0 // pred_region
    _
  $region13: #{mybart_forward.23} parent=0 // pred_fallthru
    _
  %v15 = vld [vmem:[%s0] sm:$0xf]
  %v16 = vld [vmem:[%s0 + $0x4] sm:$0xf]
  %v17 = vld [vmem:[%s1] sm:$0xf]
  %v18 = vld [vmem:[%s1 + $0x4] sm:$0xf]
  %v19 = vld [vmem:[%s1 + $0x8] sm:$0xf]
  %v20 = vld [vmem:[%s1 + $0xc] sm:$0xf]
  %v23 = vunpack.c.l.b16 %v15
  %v24 = vunpack.c.l.b16 %v16
  %v25 = vpack.c.b16 %v24, %v23
  %v30 = vunpack.c.l.b16 %v17
  %v31 = vunpack.c.l.b16 %v18
  %v32 = vunpack.c.l.b16 %v19
  %v33 = vunpack.c.l.b16 %v20
  %v34 = vpack.c.b16 %v31, %v30
  %v35 = vpack.c.b16 %v33, %v32
  %vm38 = vcmask 261120
  %v40 = vsel %vm38, %v25, 0
  %42 = vmatpush.bf16.msra.mxu0 0
  %43 = vmatpush.bf16.msra.mxu0 0
  %44 = vmatpush.bf16.msra.mxu0 0
  %45 = vmatpush.bf16.msra.mxu0 0
  %46 = vmatpush.bf16.msra.mxu0 0
  %47 = vmatpush.bf16.msra.mxu0 0
  %48 = vmatpush.bf16.msra.mxu0 %v35
  %49 = vmatpush.bf16.msra.mxu0 %v34
  %50 = vmatmul.bf16.gmra.mxu0 %v40
  %v51 = vpop.f32.mrf.mxu0
  %v52 = vadd.f32 0.0, %v51
  %v53 = vpop.f32.mrf.mxu0
  %v54 = vadd.f32 0.0, %v53
  %55 = vdwg.mxu0
  %p56 = scmp.eq.s32.totalorder 0, 0
  // Predicated region
  $region14: #{mybart_forward.23} parent=0 // pred_check
    %p57 = pneg %p56
  $region15: #{mybart_forward.23} parent=0 // pred_check_branch
    %59 = sbr.rel (%p57) target = $region17
  $region16: #{mybart_forward.23} parent=0 // pred_region
    %vm60 = vcmask 523264
    %61 = vst.msk [vmem:[#allocation2] sm:$0xff] %vm60, %v52
    %62 = vst.msk [vmem:[#allocation2 + $0x8] sm:$0xff] %vm60, %v54
  $region17: #{mybart_forward.23} parent=0 // pred_fallthru
    _
  %p63 = scmp.gt.s32.totalorder 0, 0
  // Predicated region
  $region18: #{mybart_forward.23} parent=0 // pred_check
    %p64 = pneg %p63
  $region19: #{mybart_forward.23} parent=0 // pred_check_branch
    %66 = sbr.rel (%p64) target = $region21
  $region20: #{mybart_forward.23} parent=0 // pred_region
    %v67 = vld [vmem:[#allocation2] sm:$0xff]
    %v68 = vld [vmem:[#allocation2 + $0x8] sm:$0xff]
    %v69 = vadd.f32 %v67, %v52
    %v70 = vadd.f32 %v68, %v54
    %vm71 = vcmask 523264
    %72 = vst.msk [vmem:[#allocation2] sm:$0xff] %vm71, %v69
    %73 = vst.msk [vmem:[#allocation2 + $0x8] sm:$0xff] %vm71, %v70
  $region21: #{mybart_forward.23} parent=0 // pred_fallthru
    _
  // Predicated region
  $region22: #{mybart_forward.23} parent=0 // pred_check
    %p74 = pneg %p56
  $region23: #{mybart_forward.23} parent=0 // pred_check_branch
    %76 = sbr.rel (%p74) target = $region25
  $region24: #{mybart_forward.23} parent=0 // pred_region
    %v77 = vld [vmem:[#allocation2] sm:$0xff]
    %v78 = vld [vmem:[#allocation2 + $0x8] sm:$0xff]
    %v79 = vld [vmem:[%s2] sm:$0x1]
    %v81 = vperm.slane %v79, 0
    %v83 = vadd.f32 %v77, %v81
    %v84 = vadd.f32 %v78, %v81
    %v85 = vpack.c.bf16 %v83, %v83
    %v86 = vpack.c.bf16 %v84, %v84
    %vm87 = vcmask 519168
    %88 = vst.msk [vmem:[%s3] sm:$0xf] %vm87, %v85
    %89 = vst.msk [vmem:[%s3 + $0x4] sm:$0xf] %vm87, %v86
  $region25: #{mybart_forward.23} parent=0 // pred_fallthru
    _
  // Predicated region
  $region26: #{mybart_forward.23} parent=0 // pred_check
    _
  $region27: #{mybart_forward.23} parent=0 // pred_check_branch
    %91 = sbr.rel (0) target = $region29
  $region28: #{mybart_forward.23} parent=0 // pred_region
    _
  $region29: #{mybart_forward.23} parent=0 // pred_fallthru
    _
  // Predicated region
  $region30: #{mybart_forward.23} parent=0 // pred_check
    _
  $region31: #{mybart_forward.23} parent=0 // pred_check_branch
    %93 = sbr.rel (0) target = $region33
  $region32: #{mybart_forward.23} parent=0 // pred_region
    _
  $region33: #{mybart_forward.23} parent=0 // pred_fallthru
    _

// kernel: mybart_forward.25
$region0: #{mybart_forward.25}
  #allocation0 [shape = 'u32[]', space=smem, size = 0x4, offset = 0x4, fixed_abs, tag = 'smem constant byte address 0x4 - core index']
  #allocation1 [shape = 'u32[72,128]{1,0:T(1,128)}', space=vmem, size = 0x9000, scoped, tag = 'internal scratch']
  #allocation2 [shape = 'f32[16,32]{1,0:T(8,128)}', space=vmem, size = 0x2000, scoped, tag = 'scratch operand']
  %s0 = inlined_call_operand.vmem [shape: bf16[16,32], index: 0, kind: input, shape index: {}]
  %s1 = inlined_call_operand.vmem [shape: bf16[16,32], index: 1, kind: input, shape index: {}]
  %s2 = inlined_call_operand.vmem [shape: bf16[32,32], index: 2, kind: input, shape index: {}]
  %s3 = inlined_call_operand.vmem [shape: f32[1,32], index: 3, kind: input, shape index: {}]
  %s4 = inlined_call_operand.vmem [shape: f32[1,32], index: 4, kind: input, shape index: {}]
  %s5 = inlined_call_operand.vmem [shape: f32[1,32], index: 5, kind: input, shape index: {}]
  %s6 = inlined_call_operand.vmem [shape: bf16[16,32], index: 6, kind: output, shape index: {}]
  %s7 = sld [smem:[#allocation0]]
  $region46: #{mybart_forward.25} parent=0
    _
  %s9 = ssub.s32 1, %s7
  %s10 = scalar_select 0, %s9, %s7
  // Predicated region
  $region2: #{mybart_forward.25} parent=0 // pred_check
    _
  $region3: #{mybart_forward.25} parent=0 // pred_check_branch
    %12 = sbr.rel (0) target = $region5
  $region4: #{mybart_forward.25} parent=0 // pred_region
    _
  $region5: #{mybart_forward.25} parent=0 // pred_fallthru
    _
  // Predicated region
  $region6: #{mybart_forward.25} parent=0 // pred_check
    _
  $region7: #{mybart_forward.25} parent=0 // pred_check_branch
    %14 = sbr.rel (0) target = $region9
  $region8: #{mybart_forward.25} parent=0 // pred_region
    _
  $region9: #{mybart_forward.25} parent=0 // pred_fallthru
    _
  // Predicated region
  $region10: #{mybart_forward.25} parent=0 // pred_check
    _
  $region11: #{mybart_forward.25} parent=0 // pred_check_branch
    %16 = sbr.rel (0) target = $region13
  $region12: #{mybart_forward.25} parent=0 // pred_region
    _
  $region13: #{mybart_forward.25} parent=0 // pred_fallthru
    _
  // Predicated region
  $region14: #{mybart_forward.25} parent=0 // pred_check
    _
  $region15: #{mybart_forward.25} parent=0 // pred_check_branch
    %18 = sbr.rel (0) target = $region17
  $region16: #{mybart_forward.25} parent=0 // pred_region
    _
  $region17: #{mybart_forward.25} parent=0 // pred_fallthru
    _
  // Predicated region
  $region18: #{mybart_forward.25} parent=0 // pred_check
    _
  $region19: #{mybart_forward.25} parent=0 // pred_check_branch
    %20 = sbr.rel (0) target = $region21
  $region20: #{mybart_forward.25} parent=0 // pred_region
    _
  $region21: #{mybart_forward.25} parent=0 // pred_fallthru
    _
  // Predicated region
  $region22: #{mybart_forward.25} parent=0 // pred_check
    _
  $region23: #{mybart_forward.25} parent=0 // pred_check_branch
    %22 = sbr.rel (0) target = $region25
  $region24: #{mybart_forward.25} parent=0 // pred_region
    _
  $region25: #{mybart_forward.25} parent=0 // pred_fallthru
    _
  %v24 = vld [vmem:[%s0] sm:$0xf]
  %v25 = vld [vmem:[%s0 + $0x4] sm:$0xf]
  %v26 = vld [vmem:[%s2] sm:$0xf]
  %v27 = vld [vmem:[%s2 + $0x4] sm:$0xf]
  %v28 = vld [vmem:[%s2 + $0x8] sm:$0xf]
  %v29 = vld [vmem:[%s2 + $0xc] sm:$0xf]
  %v32 = vunpack.c.l.b16 %v24
  %v33 = vunpack.c.l.b16 %v25
  %v34 = vpack.c.b16 %v33, %v32
  %v39 = vunpack.c.l.b16 %v26
  %v40 = vunpack.c.l.b16 %v27
  %v41 = vunpack.c.l.b16 %v28
  %v42 = vunpack.c.l.b16 %v29
  %v43 = vpack.c.b16 %v40, %v39
  %v44 = vpack.c.b16 %v42, %v41
  %vm47 = vcmask 261120
  %v49 = vsel %vm47, %v34, 0
  %51 = vmatpush.bf16.msra.mxu0 0
  %52 = vmatpush.bf16.msra.mxu0 0
  %53 = vmatpush.bf16.msra.mxu0 0
  %54 = vmatpush.bf16.msra.mxu0 0
  %55 = vmatpush.bf16.msra.mxu0 0
  %56 = vmatpush.bf16.msra.mxu0 0
  %57 = vmatpush.bf16.msra.mxu0 %v44
  %58 = vmatpush.bf16.msra.mxu0 %v43
  %59 = vmatmul.bf16.gmra.mxu0 %v49
  %v60 = vpop.f32.mrf.mxu0
  %v61 = vadd.f32 0.0, %v60
  %v62 = vpop.f32.mrf.mxu0
  %v63 = vadd.f32 0.0, %v62
  %64 = vdwg.mxu0
  %p65 = scmp.eq.s32.totalorder 0, 0
  // Predicated region
  $region26: #{mybart_forward.25} parent=0 // pred_check
    %p66 = pneg %p65
  $region27: #{mybart_forward.25} parent=0 // pred_check_branch
    %68 = sbr.rel (%p66) target = $region29
  $region28: #{mybart_forward.25} parent=0 // pred_region
    %69 = vst.msk [vmem:[#allocation2] sm:$0xff] %vm47, %v61
    %70 = vst.msk [vmem:[#allocation2 + $0x8] sm:$0xff] %vm47, %v63
  $region29: #{mybart_forward.25} parent=0 // pred_fallthru
    _
  %p71 = scmp.gt.s32.totalorder 0, 0
  // Predicated region
  $region30: #{mybart_forward.25} parent=0 // pred_check
    %p72 = pneg %p71
  $region31: #{mybart_forward.25} parent=0 // pred_check_branch
    %74 = sbr.rel (%p72) target = $region33
  $region32: #{mybart_forward.25} parent=0 // pred_region
    %v75 = vld [vmem:[#allocation2] sm:$0xff]
    %v76 = vld [vmem:[#allocation2 + $0x8] sm:$0xff]
    %v77 = vadd.f32 %v75, %v61
    %v78 = vadd.f32 %v76, %v63
    %79 = vst.msk [vmem:[#allocation2] sm:$0xff] %vm47, %v77
    %80 = vst.msk [vmem:[#allocation2 + $0x8] sm:$0xff] %vm47, %v78
  $region33: #{mybart_forward.25} parent=0 // pred_fallthru
    _
  // Predicated region
  $region34: #{mybart_forward.25} parent=0 // pred_check
    %p81 = pneg %p65
  $region35: #{mybart_forward.25} parent=0 // pred_check_branch
    %83 = sbr.rel (%p81) target = $region37
  $region36: #{mybart_forward.25} parent=0 // pred_region
    %v84 = vld [vmem:[#allocation2] sm:$0xff]
    %v85 = vld [vmem:[#allocation2 + $0x8] sm:$0xff]
    %v86 = vld [vmem:[%s3] sm:$0x1]
    %v88 = vperm.slane %v86, 0
    %v90 = vadd.f32 %v84, %v88
    %v91 = vadd.f32 %v85, %v88
    %v92 = vld [vmem:[%s1] sm:$0xf]
    %v93 = vld [vmem:[%s1 + $0x4] sm:$0xf]
    %v94 = vunpack.c.l.bf16 %v92
    %v95 = vunpack.c.l.bf16 %v93
    %v96 = vadd.f32 %v90, %v94
    %v97 = vadd.f32 %v91, %v95
    %v98 = vsel %vm47, %v96, 0.0
    %99 = vadd.xlane.f32.xlu0 %v98
    %v100 = vpop.xlane.xlu0 %99
    %v101 = vsel %vm47, %v97, 0.0
    %102 = vadd.xlane.f32.xlu0 %v101
    %v103 = vpop.xlane.xlu0 %102
    %v104 = vrcp.pop 32.0
    %v105 = vmul.f32 32.0, %v104
    %v106 = vsub.f32 1.0, %v105
    %v107 = vmul.f32 %v104, %v106
    %v108 = vadd.f32 %v104, %v107
    %vm109 = vweird.f32 %v104
    %v110 = vsel %vm109, %v104, %v108
    %v111 = vmul.f32 %v100, %v110
    %v112 = vmul.f32 %v103, %v110
    %v113 = vsub.f32 %v96, %v111
    %v114 = vsub.f32 %v97, %v112
    %v115 = vmul.f32 %v113, %v113
    %v116 = vmul.f32 %v114, %v114
    %v117 = vsel %vm47, %v115, 0.0
    %118 = vadd.xlane.f32.xlu0 %v117
    %v119 = vpop.xlane.xlu0 %118
    %v120 = vsel %vm47, %v116, 0.0
    %121 = vadd.xlane.f32.xlu0 %v120
    %v122 = vpop.xlane.xlu0 %121
    %v123 = vmul.f32 %v119, %v110
    %v124 = vmul.f32 %v122, %v110
    %v125 = vadd.f32 %v123, 1e-05
    %v126 = vadd.f32 %v124, 1e-05
    %v127 = vrsqrt.pop %v125
    %v128 = vmul.f32 %v127, %v125
    %v129 = vmul.f32 %v128, %v127
    %v130 = vmul.f32 0.5, %v129
    %v131 = vsub.f32 1.5, %v130
    %v132 = vmul.f32 %v127, %v131
    %vm133 = vweird.f32 %v125
    %vm134 = vweird.f32 %v127
    %vm135 = vmor %vm133, %vm134
    %v136 = vsel %vm135, %v127, %v132
    %v137 = vrsqrt.pop %v126
    %v138 = vmul.f32 %v137, %v126
    %v139 = vmul.f32 %v138, %v137
    %v140 = vmul.f32 0.5, %v139
    %v141 = vsub.f32 1.5, %v140
    %v142 = vmul.f32 %v137, %v141
    %vm143 = vweird.f32 %v126
    %vm144 = vweird.f32 %v137
    %vm145 = vmor %vm143, %vm144
    %v146 = vsel %vm145, %v137, %v142
    %v147 = vmul.f32 %v113, %v136
    %v148 = vmul.f32 %v114, %v146
    %v149 = vld [vmem:[%s4] sm:$0x1]
    %v151 = vperm.slane %v149, 0
    %v153 = vmul.f32 %v147, %v151
    %v154 = vmul.f32 %v148, %v151
    %v155 = vld [vmem:[%s5] sm:$0x1]
    %v157 = vperm.slane %v155, 0
    %v159 = vadd.f32 %v153, %v157
    %v160 = vadd.f32 %v154, %v157
    %v161 = vpack.c.bf16 %v159, %v159
    %v162 = vpack.c.bf16 %v160, %v160
    %vm163 = vcmask 257024
    %164 = vst.msk [vmem:[%s6] sm:$0xf] %vm163, %v161
    %165 = vst.msk [vmem:[%s6 + $0x4] sm:$0xf] %vm163, %v162
  $region37: #{mybart_forward.25} parent=0 // pred_fallthru
    _
  // Predicated region
  $region38: #{mybart_forward.25} parent=0 // pred_check
    _
  $region39: #{mybart_forward.25} parent=0 // pred_check_branch
    %167 = sbr.rel (0) target = $region41
  $region40: #{mybart_forward.25} parent=0 // pred_region
    _
  $region41: #{mybart_forward.25} parent=0 // pred_fallthru
    _
  // Predicated region
  $region42: #{mybart_forward.25} parent=0 // pred_check
    _
  $region43: #{mybart_forward.25} parent=0 // pred_check_branch
    %169 = sbr.rel (0) target = $region45
  $region44: #{mybart_forward.25} parent=0 // pred_region
    _
  $region45: #{mybart_forward.25} parent=0 // pred_fallthru
    _

// kernel: mybart_forward.24
$region0: #{mybart_forward.24}
  #allocation0 [shape = 'u32[]', space=smem, size = 0x4, offset = 0x4, fixed_abs, tag = 'smem constant byte address 0x4 - core index']
  #allocation1 [shape = 'u32[72,128]{1,0:T(1,128)}', space=vmem, size = 0x9000, scoped, tag = 'internal scratch']
  #allocation2 [shape = 'bf16[8,32]{1,0:T(8,128)(2,1)}', space=vmem, size = 0x800, scoped, tag = 'scratch operand']
  #allocation3 [shape = 'bf16[8,32]{1,0:T(8,128)(2,1)}', space=vmem, size = 0x800, scoped, tag = 'scratch operand']
  #allocation4 [shape = 'f32[4,8,1]{2,1,0:T(8,128)}', space=vmem, size = 0x4000, scoped, tag = 'scratch operand']
  #allocation5 [shape = 'f32[4,8,1]{2,1,0:T(8,128)}', space=vmem, size = 0x4000, scoped, tag = 'scratch operand']
  #allocation6 [shape = 'f32[4,8,8]{2,1,0:T(8,128)}', space=vmem, size = 0x4000, scoped, tag = 'scratch operand']
  %s0 = inlined_call_operand.vmem [shape: bf16[2,8,32], index: 0, kind: input, shape index: {}]
  %s1 = inlined_call_operand.vmem [shape: bf16[32,32], index: 1, kind: input, shape index: {}]
  %s2 = inlined_call_operand.vmem [shape: f32[1,32], index: 2, kind: input, shape index: {}]
  %s3 = inlined_call_operand.vmem [shape: bf16[2,8,64], index: 3, kind: input, shape index: {}]
  %s4 = inlined_call_operand.vmem [shape: f32[2,1,8], index: 4, kind: input, shape index: {}]
  %s5 = inlined_call_operand.vmem [shape: bf16[2,8,32], index: 5, kind: output, shape index: {}]
  %s6 = sld [smem:[#allocation0]]
  $region65: #{mybart_forward.24} parent=0
    _
  %s8 = ssub.s32 1, %s6
  %s9 = scalar_select 0, %s8, %s6
  loop: start=0, step=1, limit=4
  $region2: #{mybart_forward.24} parent=0 // loop_pre_header
    _
  $region3: #{mybart_forward.24} parent=0 // loop_header
    %s11 = sphi 0, %s15
    %p12 = scmp.ge.s32.totalorder %s11, 4
    %s18 = sphi 0, %s37
    %s19 = sphi 0, %s33
    %s20 = sphi 0, %s29
    %s21 = sphi 0, %s18
    %s22 = sphi 0, %s19
    %s23 = sphi 0, %s20
    %s24 = sphi 0, %s21
    %s25 = sphi 0, %s22
    %s26 = sphi 0, %s23
    %s42 = sphi 0, %s44
    %s45 = sphi 0, %s42
    %s46 = sphi 0, %s45
    %s62 = sphi 0, %s46
    %s66 = sphi 0, %s66
    %s68 = sphi 0, %s66
    %s69 = sphi 0, %s68
    %s83 = sphi 0, %s69
    %s87 = sphi 0, %s87
    %s89 = sphi 0, %s87
    %s90 = sphi 0, %s89
    %s104 = sphi 0, %s90
    %s112 = sphi 0, %s114
    %s115 = sphi 0, %s112
    %s116 = sphi 0, %s115
    %s132 = sphi 0, %s116
    %s140 = sphi 0, %s142
    %s143 = sphi 0, %s140
    %s144 = sphi 0, %s143
    %s160 = sphi 0, %s144
    %s168 = sphi 0, %s170
    %s171 = sphi 0, %s168
    %s172 = sphi 0, %s171
    %s188 = sphi 0, %s172
  $region4: #{mybart_forward.24} parent=0 // loop_header_branch
    %14 = sbr.rel (%p12) target = $region8
  $region5: #{mybart_forward.24} parent=0 // loop_body
    %s16 = ssub.s32 %s11, 1
    %s17 = ssub.s32 %s11, 2
    %s27 = sadd.s32 1, %s20
    %p28 = scmp.ge.s32.totalorder %s27, 1
    %s29 = scalar_select %p28, 0, %s27
    %s30 = sadd.s32 1, %s19
    %s31 = scalar_select %p28, %s30, %s19
    %p32 = scmp.ge.s32.totalorder %s31, 1
    %s33 = scalar_select %p32, 0, %s31
    %s34 = sadd.s32 1, %s18
    %s35 = scalar_select %p32, %s34, %s18
    %p36 = scmp.ge.s32.totalorder %s35, 2
    %s37 = scalar_select %p36, 0, %s35
    %s38 = ssub.s32 %s18, %s37
    %s39 = ssub.s32 %s19, %s33
    %s40 = sor.u32 %s38, %s39
    %p41 = scmp.eq.s32.totalorder %s40, 0
    %s43 = sadd.s32 %s42, 1
    %s44 = scalar_select %p41, %s42, %s43
    %p47 = pneg %p41
    %p48 = scmp.eq.s32.totalorder %s11, 1
    %p49 = por %p47, %p48
    %p50 = scmp.ne.s32.totalorder %s42, %s45
    %p51 = scmp.eq.s32.totalorder %s11, 0
    %p52 = por %p50, %p51
    %p53 = scmp.ne.s32.totalorder %s42, %s45
    %p54 = scmp.eq.s32.totalorder %s16, 1
    %p55 = por %p53, %p54
    %p56 = scmp.ne.s32.totalorder %s45, %s46
    %p57 = scmp.eq.s32.totalorder %s16, 0
    %p58 = por %p56, %p57
    %p59 = scmp.ne.s32.totalorder %s45, %s46
    %p60 = scmp.eq.s32.totalorder %s17, 1
    %p61 = por %p59, %p60
    %p63 = scmp.ne.s32.totalorder %s46, %s62
    %p64 = scmp.eq.s32.totalorder %s17, 0
    %p65 = por %p63, %p64
    %s67 = sadd.s32 %s66, 1
    %p70 = scmp.eq.s32.totalorder %s11, 1
    %p71 = scmp.ne.s32.totalorder %s66, %s68
    %p72 = scmp.eq.s32.totalorder %s11, 0
    %p73 = por %p71, %p72
    %p74 = scmp.ne.s32.totalorder %s66, %s68
    %p75 = scmp.eq.s32.totalorder %s16, 1
    %p76 = por %p74, %p75
    %p77 = scmp.ne.s32.totalorder %s68, %s69
    %p78 = scmp.eq.s32.totalorder %s16, 0
    %p79 = por %p77, %p78
    %p80 = scmp.ne.s32.totalorder %s68, %s69
    %p81 = scmp.eq.s32.totalorder %s17, 1
    %p82 = por %p80, %p81
    %p84 = scmp.ne.s32.totalorder %s69, %s83
    %p85 = scmp.eq.s32.totalorder %s17, 0
    %p86 = por %p84, %p85
    %s88 = sadd.s32 %s87, 1
    %p91 = scmp.eq.s32.totalorder %s11, 1
    %p92 = scmp.ne.s32.totalorder %s87, %s89
    %p93 = scmp.eq.s32.totalorder %s11, 0
    %p94 = por %p92, %p93
    %p95 = scmp.ne.s32.totalorder %s87, %s89
    %p96 = scmp.eq.s32.totalorder %s16, 1
    %p97 = por %p95, %p96
    %p98 = scmp.ne.s32.totalorder %s89, %s90
    %p99 = scmp.eq.s32.totalorder %s16, 0
    %p100 = por %p98, %p99
    %p101 = scmp.ne.s32.totalorder %s89, %s90
    %p102 = scmp.eq.s32.totalorder %s17, 1
    %p103 = por %p101, %p102
    %p105 = scmp.ne.s32.totalorder %s90, %s104
    %p106 = scmp.eq.s32.totalorder %s17, 0
    %p107 = por %p105, %p106
    %s108 = ssub.s32 %s18, %s37
    %s109 = ssub.s32 %s20, %s29
    %s110 = sor.u32 %s108, %s109
    %p111 = scmp.eq.s32.totalorder %s110, 0
    %s113 = sadd.s32 %s112, 1
    %s114 = scalar_select %p111, %s112, %s113
    %p117 = pneg %p111
    %p118 = scmp.eq.s32.totalorder %s11, 1
    %p119 = por %p117, %p118
    %p120 = scmp.ne.s32.totalorder %s112, %s115
    %p121 = scmp.eq.s32.totalorder %s11, 0
    %p122 = por %p120, %p121
    %p123 = scmp.ne.s32.totalorder %s112, %s115
    %p124 = scmp.eq.s32.totalorder %s16, 1
    %p125 = por %p123, %p124
    %p126 = scmp.ne.s32.totalorder %s115, %s116
    %p127 = scmp.eq.s32.totalorder %s16, 0
    %p128 = por %p126, %p127
    %p129 = scmp.ne.s32.totalorder %s115, %s116
    %p130 = scmp.eq.s32.totalorder %s17, 1
    %p131 = por %p129, %p130
    %p133 = scmp.ne.s32.totalorder %s116, %s132
    %p134 = scmp.eq.s32.totalorder %s17, 0
    %p135 = por %p133, %p134
    %s136 = ssub.s32 %s18, %s37
    %s137 = ssub.s32 %s20, %s29
    %s138 = sor.u32 %s136, %s137
    %p139 = scmp.eq.s32.totalorder %s138, 0
    %s141 = sadd.s32 %s140, 1
    %s142 = scalar_select %p139, %s140, %s141
    %p145 = pneg %p139
    %p146 = scmp.eq.s32.totalorder %s11, 1
    %p147 = por %p145, %p146
    %p148 = scmp.ne.s32.totalorder %s140, %s143
    %p149 = scmp.eq.s32.totalorder %s11, 0
    %p150 = por %p148, %p149
    %p151 = scmp.ne.s32.totalorder %s140, %s143
    %p152 = scmp.eq.s32.totalorder %s16, 1
    %p153 = por %p151, %p152
    %p154 = scmp.ne.s32.totalorder %s143, %s144
    %p155 = scmp.eq.s32.totalorder %s16, 0
    %p156 = por %p154, %p155
    %p157 = scmp.ne.s32.totalorder %s143, %s144
    %p158 = scmp.eq.s32.totalorder %s17, 1
    %p159 = por %p157, %p158
    %p161 = scmp.ne.s32.totalorder %s144, %s160
    %p162 = scmp.eq.s32.totalorder %s17, 0
    %p163 = por %p161, %p162
    %s164 = ssub.s32 %s18, %s37
    %s165 = ssub.s32 %s19, %s33
    %s166 = sor.u32 %s164, %s165
    %p167 = scmp.eq.s32.totalorder %s166, 0
    %s169 = sadd.s32 %s168, 1
    %s170 = scalar_select %p167, %s168, %s169
    %p173 = pneg %p167
    %p174 = scmp.eq.s32.totalorder %s11, 1
    %p175 = por %p173, %p174
    %p176 = scmp.ne.s32.totalorder %s168, %s171
    %p177 = scmp.eq.s32.totalorder %s11, 0
    %p178 = por %p176, %p177
    %p179 = scmp.ne.s32.totalorder %s168, %s171
    %p180 = scmp.eq.s32.totalorder %s16, 1
    %p181 = por %p179, %p180
    %p182 = scmp.ne.s32.totalorder %s171, %s172
    %p183 = scmp.eq.s32.totalorder %s16, 0
    %p184 = por %p182, %p183
    %p185 = scmp.ne.s32.totalorder %s171, %s172
    %p186 = scmp.eq.s32.totalorder %s17, 1
    %p187 = por %p185, %p186
    %p189 = scmp.ne.s32.totalorder %s172, %s188
    %p190 = scmp.eq.s32.totalorder %s17, 0
    %p191 = por %p189, %p190
    %p192 = scmp.le.s32.totalorder 1, %s11
    %p193 = scmp.lt.s32.totalorder %s11, 3
    %p194 = pnand %p192, %p193
    %p195 = pneg %p194
    // Predicated region
    $region9: #{mybart_forward.24} parent=5 // pred_check
      _
    $region10: #{mybart_forward.24} parent=5 // pred_check_branch
      %197 = sbr.rel (%p194) target = $region12
    $region11: #{mybart_forward.24} parent=5 // pred_region
      %s198 = ssub.s32 %s11, 1
      // Predicated region
      $region13: #{mybart_forward.24} parent=11 // pred_check
        %p199 = pneg %p79
      $region14: #{mybart_forward.24} parent=11 // pred_check_branch
        %201 = sbr.rel (%p199) target = $region16
      $region15: #{mybart_forward.24} parent=11 // pred_region
        _
      $region16: #{mybart_forward.24} parent=11 // pred_fallthru
        _
      // Predicated region
      $region17: #{mybart_forward.24} parent=11 // pred_check
        %p202 = pneg %p100
      $region18: #{mybart_forward.24} parent=11 // pred_check_branch
        %204 = sbr.rel (%p202) target = $region20
      $region19: #{mybart_forward.24} parent=11 // pred_region
        _
      $region20: #{mybart_forward.24} parent=11 // pred_fallthru
        _
    $region12: #{mybart_forward.24} parent=5 // pred_fallthru
      _
    %p205 = scmp.lt.s32.totalorder %s11, 2
    // Predicated region
    $region21: #{mybart_forward.24} parent=5 // pred_check
      %p206 = pneg %p205
    $region22: #{mybart_forward.24} parent=5 // pred_check_branch
      %208 = sbr.rel (%p206) target = $region24
    $region23: #{mybart_forward.24} parent=5 // pred_region
      // Predicated region
      $region25: #{mybart_forward.24} parent=23 // pred_check
        %p209 = pneg %p52
      $region26: #{mybart_forward.24} parent=23 // pred_check_branch
        %211 = sbr.rel (%p209) target = $region28
      $region27: #{mybart_forward.24} parent=23 // pred_region
        %p212 = scmp.lt.s32.totalorder %s18, 1
        %s213 = scalar_select %p212, %s18, 1
        %p214 = scmp.lt.s32.totalorder %s19, 0
        %s215 = scalar_select %p214, %s19, 0
        %s216 = sadd.s32 %s215, %s213
        %s217 = smul.addr %s216, 4
        %s218 = scalar_lea.vmem %s0, %s217
      $region28: #{mybart_forward.24} parent=23 // pred_fallthru
        _
      // Predicated region
      $region29: #{mybart_forward.24} parent=23 // pred_check
        %p219 = pneg %p122
      $region30: #{mybart_forward.24} parent=23 // pred_check_branch
        %221 = sbr.rel (%p219) target = $region32
      $region31: #{mybart_forward.24} parent=23 // pred_region
        %p222 = scmp.lt.s32.totalorder %s18, 1
        %s223 = scalar_select %p222, %s18, 1
        %p224 = scmp.lt.s32.totalorder %s20, 0
        %s225 = scalar_select %p224, %s20, 0
        %s226 = sadd.s32 %s225, %s223
        %s227 = smul.addr %s226, 4
        %s228 = scalar_lea.vmem %s3, %s227
      $region32: #{mybart_forward.24} parent=23 // pred_fallthru
        _
      // Predicated region
      $region33: #{mybart_forward.24} parent=23 // pred_check
        %p229 = pneg %p150
      $region34: #{mybart_forward.24} parent=23 // pred_check_branch
        %231 = sbr.rel (%p229) target = $region36
      $region35: #{mybart_forward.24} parent=23 // pred_region
        %p232 = scmp.lt.s32.totalorder %s18, 1
        %s233 = scalar_select %p232, %s18, 1
        %p234 = scmp.lt.s32.totalorder %s20, 0
        %s235 = scalar_select %p234, %s20, 0
        %s236 = sadd.s32 %s235, %s233
        %s237 = scalar_lea.vmem %s4, %s236
      $region36: #{mybart_forward.24} parent=23 // pred_fallthru
        _
    $region24: #{mybart_forward.24} parent=5 // pred_fallthru
      _
    %p238 = scmp.le.s32.totalorder 1, %s11
    %p239 = scmp.lt.s32.totalorder %s11, 3
    %p240 = pnand %p238, %p239
    %p241 = pneg %p240
    // Predicated region
    $region37: #{mybart_forward.24} parent=5 // pred_check
      _
    $region38: #{mybart_forward.24} parent=5 // pred_check_branch
      %243 = sbr.rel (%p240) target = $region40
    $region39: #{mybart_forward.24} parent=5 // pred_region
      %s244 = ssub.s32 %s11, 1
      %p245 = scmp.lt.s32.totalorder %s21, 1
      %s246 = scalar_select %p245, %s21, 1
      %p247 = scmp.lt.s32.totalorder %s22, 0
      %s248 = scalar_select %p247, %s22, 0
      %s249 = sadd.s32 %s248, %s246
      %s250 = smul.addr %s249, 4
      %s251 = scalar_lea.vmem %s0, %s250
      %p252 = pneg %p58
      %p253 = pneg %p55
      %p254 = pneg %p79
      %p255 = pneg %p76
      %p256 = pneg %p100
      %p257 = pneg %p97
      %p258 = scmp.lt.s32.totalorder %s21, 1
      %s259 = scalar_select %p258, %s21, 1
      %p260 = scmp.lt.s32.totalorder %s23, 0
      %s261 = scalar_select %p260, %s23, 0
      %s262 = sadd.s32 %s261, %s259
      %s263 = smul.addr %s262, 4
      %s264 = scalar_lea.vmem %s3, %s263
      %p265 = pneg %p128
      %p266 = pneg %p125
      %p267 = scmp.lt.s32.totalorder %s21, 1
      %s268 = scalar_select %p267, %s21, 1
      %p269 = scmp.lt.s32.totalorder %s23, 0
      %s270 = scalar_select %p269, %s23, 0
      %s271 = sadd.s32 %s270, %s268
      %s272 = scalar_lea.vmem %s4, %s271
      %p273 = pneg %p156
      %p274 = pneg %p153
      %p275 = pneg %p184
      %p276 = pneg %p181
      %p277 = scmp.lt.s32.totalorder %s21, 1
      %s278 = scalar_select %p277, %s21, 1
      %p279 = scmp.lt.s32.totalorder %s22, 0
      %s280 = scalar_select %p279, %s22, 0
      %s281 = sadd.s32 %s280, %s278
      %s282 = smul.addr %s281, 4
      %s283 = scalar_lea.vmem %s5, %s282
      %p284 = scmp.lt.s32.totalorder %s21, 1
      %s285 = scalar_select %p284, %s21, 1
      %p286 = scmp.lt.s32.totalorder %s22, 0
      %s287 = scalar_select %p286, %s22, 0
      %s288 = sadd.s32 %s287, %s285
      %s289 = smul.addr %s288, 4
      %s290 = scalar_lea.vmem %s0, %s289
      %p291 = scmp.lt.s32.totalorder %s21, 1
      %s292 = scalar_select %p291, %s21, 1
      %p293 = scmp.lt.s32.totalorder %s23, 0
      %s294 = scalar_select %p293, %s23, 0
      %s295 = sadd.s32 %s294, %s292
      %s296 = smul.addr %s295, 4
      %s297 = scalar_lea.vmem %s3, %s296
      %p298 = scmp.lt.s32.totalorder %s21, 1
      %s299 = scalar_select %p298, %s21, 1
      %p300 = scmp.lt.s32.totalorder %s23, 0
      %s301 = scalar_select %p300, %s23, 0
      %s302 = sadd.s32 %s301, %s299
      %s303 = scalar_lea.vmem %s4, %s302
      %p304 = scmp.lt.s32.totalorder %s21, 1
      %s305 = scalar_select %p304, %s21, 1
      %p306 = scmp.lt.s32.totalorder %s22, 0
      %s307 = scalar_select %p306, %s22, 0
      %s308 = sadd.s32 %s307, %s305
      %s309 = smul.addr %s308, 4
      %s310 = scalar_lea.vmem %s5, %s309
      %p312 = scmp.eq.s32.totalorder %s23, 0
      // Predicated region
      $region41: #{mybart_forward.24} parent=39 // pred_check
        %p313 = pneg %p312
      $region42: #{mybart_forward.24} parent=39 // pred_check_branch
        %315 = sbr.rel (%p313) target = $region44
      $region43: #{mybart_forward.24} parent=39 // pred_region
        %v316 = vld [vmem:[%s290] sm:$0xf]
        %v317 = vld [vmem:[%s1] sm:$0xf]
        %v318 = vld [vmem:[%s1 + $0x4] sm:$0xf]
        %v319 = vld [vmem:[%s1 + $0x8] sm:$0xf]
        %v320 = vld [vmem:[%s1 + $0xc] sm:$0xf]
        %v321 = vld [vmem:[%s2] sm:$0x1]
        %v323 = vperm.slane %v321, 0
        %v329 = vunpack.c.l.b16 %v317
        %v330 = vunpack.c.l.b16 %v318
        %v331 = vunpack.c.l.b16 %v319
        %v332 = vunpack.c.l.b16 %v320
        %v333 = vpack.c.b16 %v330, %v329
        %v334 = vpack.c.b16 %v332, %v331
        %vm337 = vcmask 261120
        %v339 = vsel %vm337, %v316, 0
        %341 = vmatpush.bf16.msra.mxu0 0
        %342 = vmatpush.bf16.msra.mxu0 0
        %343 = vmatpush.bf16.msra.mxu0 0
        %344 = vmatpush.bf16.msra.mxu0 0
        %345 = vmatpush.bf16.msra.mxu0 0
        %346 = vmatpush.bf16.msra.mxu0 0
        %347 = vmatpush.bf16.msra.mxu0 %v334
        %348 = vmatpush.bf16.msra.mxu0 %v333
        %349 = vmatmul.bf16.gmra.mxu0 %v339
        %v350 = vpop.f32.mrf.mxu0
        %v351 = vadd.f32 %v323, %v350
        %v352 = vpop.f32.mrf.mxu0
        %353 = vdwg.mxu0
        %v354 = vmul.f32 %v351, 0.35355338
        %v355 = vpack.c.bf16 %v354, %v354
        %vm356 = vcmask 257024
        %357 = vst.msk [vmem:[#allocation2] sm:$0xf] %vm356, %v355
        %vm358 = vcmask 7168
        %359 = vst.msk [vmem:[#allocation4] sm:$0xff] %vm358, -1e+30
        %360 = vst.msk [vmem:[#allocation4 + $0x8] sm:$0xff] %vm358, -1e+30
        %361 = vst.msk [vmem:[#allocation4 + $0x10] sm:$0xff] %vm358, -1e+30
        %362 = vst.msk [vmem:[#allocation4 + $0x18] sm:$0xff] %vm358, -1e+30
        %363 = vst.msk [vmem:[#allocation5] sm:$0xff] %vm358, 0.0
        %364 = vst.msk [vmem:[#allocation5 + $0x8] sm:$0xff] %vm358, 0.0
        %365 = vst.msk [vmem:[#allocation5 + $0x10] sm:$0xff] %vm358, 0.0
        %366 = vst.msk [vmem:[#allocation5 + $0x18] sm:$0xff] %vm358, 0.0
        %vm367 = vcmask 64512
        %368 = vst.msk [vmem:[#allocation6] sm:$0xff] %vm367, 0.0
        %369 = vst.msk [vmem:[#allocation6 + $0x8] sm:$0xff] %vm367, 0.0
        %370 = vst.msk [vmem:[#allocation6 + $0x10] sm:$0xff] %vm367, 0.0
        %371 = vst.msk [vmem:[#allocation6 + $0x18] sm:$0xff] %vm367, 0.0
      $region44: #{mybart_forward.24} parent=39 // pred_fallthru
        _
      %s372 = smul.u32 %s23, 8
      %s373 = smul.u32 %s22, 8
      %s374 = sadd.s32 %s373, 7
      %p375 = scmp.le.s32.totalorder %s372, %s374
      // Predicated region
      $region45: #{mybart_forward.24} parent=39 // pred_check
        %p376 = pneg %p375
      $region46: #{mybart_forward.24} parent=39 // pred_check_branch
        %378 = sbr.rel (%p376) target = $region48
      $region47: #{mybart_forward.24} parent=39 // pred_region
        %v379 = vld [vmem:[%s297] sm:$0xf]
        %v380 = vld [vmem:[%s303] sm:$0x1]
        %vm381 = vcmp.gt.f32.partialorder %v380, 0.5
        %v382 = vsel %vm381, 0.0, -1e+09
        %v383 = vlaneseq
        %v384 = vshrl.u32 %v383, 7
        %v385 = vstv %s373
        %v386 = vadd.s32 %v384, %v385
        %v387 = vlaneseq
        %v388 = vand.u32 %v387, 127
        %v389 = vstv %s372
        %v390 = vadd.s32 %v388, %v389
        %vm391 = vcmp.le.s32.totalorder %v390, %v386
        %v392 = vsel %vm391, 0.0, -1e+09
        %v394 = vperm.slane %v382, 0
        %v396 = vadd.f32 %v394, %v392
        %v397 = vld [vmem:[#allocation2] sm:$0xf]
        %vm398 = vcmask 64512
        %v400 = vsel %vm398, %v397, 0
        %v403 = vsel %vm398, %v379, 0
        %405 = vmatpush.bf16.xpose.msra.mxu0 0
        %406 = vmatpush.bf16.xpose.msra.mxu0 0
        %407 = vmatpush.bf16.xpose.msra.mxu0 0
        %408 = vmatpush.bf16.xpose.msra.mxu0 0
        %409 = vmatpush.bf16.xpose.msra.mxu0 0
        %410 = vmatpush.bf16.xpose.msra.mxu0 0
        %411 = vmatpush.bf16.xpose.msra.mxu0 0
        %412 = vmatpush.bf16.xpose.msra.mxu0 %v403
        %413 = vmatmul.bf16.gmra.mxu0 %v400
        %v414 = vpop.f32.mrf.mxu0
        %v415 = vadd.f32 %v396, %v414
        %v416 = vpop.f32.mrf.mxu0
        %417 = vdwg.mxu0
        %v418 = vld [vmem:[#allocation4] sm:$0xff]
        %v419 = vsel %vm398, %v415, -inf
        %420 = vmax.xlane.f32.xlu0 %v419
        %v421 = vpop.xlane.xlu0 %420
        %v422 = vmax.f32 %v418, %v421
        %v423 = vsub.f32 %v418, %v422
        %v424 = vmul.f32 %v423, 1.442695
        %v425 = vpow.pop %v424
        %427 = vset.pattern.permute.xlu0 0
        %428 = vperm.xlu0 %427, %v422
        %v429 = vpop.permute.xlu0 %428
        %v431 = vsub.f32 %v415, %v429
        %v432 = vmul.f32 %v431, 1.442695
        %v433 = vpow.pop %v432
        %v434 = vld [vmem:[#allocation5] sm:$0xff]
        %v435 = vmul.f32 %v425, %v434
        %v436 = vsel %vm398, %v433, 0.0
        %437 = vadd.xlane.f32.xlu0 %v436
        %v438 = vpop.xlane.xlu0 %437
        %v439 = vadd.f32 %v435, %v438
        %vm440 = vcmask 7168
        %441 = vst.msk [vmem:[#allocation5] sm:$0xff] %vm440, %v439
        %v442 = vld [vmem:[#allocation6] sm:$0xff]
        %444 = vset.pattern.permute.xlu0 0
        %445 = vperm.xlu0 %444, %v425
        %v446 = vpop.permute.xlu0 %445
        %v448 = vmul.f32 %v446, %v442
        %v449 = vpack.c.bf16 %v433, %v433
        %v451 = vunpack.c.l.b16 %v379
        %v452 = vpack.c.b16 %v451, %v451
        %453 = vrot.lane.b32.xlu0 %v452, 96
        %v454 = vpop.permute.xlu0 %453
        %v456 = vsel %vm398, %v449, 0
        %vm458 = vcmask 1043456
        %v460 = vsel %vm458, %v454, 0
        %462 = vmatpush.bf16.msra.mxu0 0
        %463 = vmatpush.bf16.msra.mxu0 0
        %464 = vmatpush.bf16.msra.mxu0 0
        %465 = vmatpush.bf16.msra.mxu0 0
        %466 = vmatpush.bf16.msra.mxu0 0
        %467 = vmatpush.bf16.msra.mxu0 0
        %468 = vmatpush.bf16.msra.mxu0 0
        %469 = vmatpush.bf16.msra.mxu0 %v460
        %470 = vmatmul.bf16.gmra.mxu0 %v456
        %v471 = vpop.f32.mrf.mxu0
        %v472 = vadd.f32 0.0, %v471
        %v473 = vpop.f32.mrf.mxu0
        %474 = vdwg.mxu0
        %v475 = vadd.f32 %v448, %v472
        %476 = vst.msk [vmem:[#allocation6] sm:$0xff] %vm398, %v475
        %477 = vst.msk [vmem:[#allocation4] sm:$0xff] %vm440, %v422
        %v478 = vld [vmem:[#allocation2] sm:$0xf]
        %v480 = vunpack.c.l.b16 %v478
        %v481 = vpack.c.b16 %v480, %v480
        %482 = vrot.lane.b32.xlu0 %v481, 120
        %v483 = vpop.permute.xlu0 %482
        %484 = vrot.lane.b32.xlu0 %v452, 120
        %v485 = vpop.permute.xlu0 %484
        %v487 = vsel %vm398, %v483, 0
        %v490 = vsel %vm398, %v485, 0
        %492 = vmatpush.bf16.xpose.msra.mxu0 0
        %493 = vmatpush.bf16.xpose.msra.mxu0 0
        %494 = vmatpush.bf16.xpose.msra.mxu0 0
        %495 = vmatpush.bf16.xpose.msra.mxu0 0
        %496 = vmatpush.bf16.xpose.msra.mxu0 0
        %497 = vmatpush.bf16.xpose.msra.mxu0 0
        %498 = vmatpush.bf16.xpose.msra.mxu0 0
        %499 = vmatpush.bf16.xpose.msra.mxu0 %v490
        %500 = vmatmul.bf16.gmra.mxu0 %v487
        %v501 = vpop.f32.mrf.mxu0
        %v502 = vadd.f32 %v396, %v501
        %v503 = vpop.f32.mrf.mxu0
        %504 = vdwg.mxu0
        %s505 = scalar_lea.vmem [#allocation4], 8
        %v506 = vld [vmem:[%s505] sm:$0xff]
        %v507 = vsel %vm398, %v502, -inf
        %508 = vmax.xlane.f32.xlu0 %v507
        %v509 = vpop.xlane.xlu0 %508
        %v510 = vmax.f32 %v506, %v509
        %v511 = vsub.f32 %v506, %v510
        %v512 = vmul.f32 %v511, 1.442695
        %v513 = vpow.pop %v512
        %515 = vset.pattern.permute.xlu0 0
        %516 = vperm.xlu0 %515, %v510
        %v517 = vpop.permute.xlu0 %516
        %v519 = vsub.f32 %v502, %v517
        %v520 = vmul.f32 %v519, 1.442695
        %v521 = vpow.pop %v520
        %s522 = scalar_lea.vmem [#allocation5], 8
        %v523 = vld [vmem:[%s522] sm:$0xff]
        %v524 = vmul.f32 %v513, %v523
        %v525 = vsel %vm398, %v521, 0.0
        %526 = vadd.xlane.f32.xlu0 %v525
        %v527 = vpop.xlane.xlu0 %526
        %v528 = vadd.f32 %v524, %v527
        %529 = vst.msk [vmem:[%s522] sm:$0xff] %vm440, %v528
        %s530 = scalar_lea.vmem [#allocation6], 8
        %v531 = vld [vmem:[%s530] sm:$0xff]
        %533 = vset.pattern.permute.xlu0 0
        %534 = vperm.xlu0 %533, %v513
        %v535 = vpop.permute.xlu0 %534
        %v537 = vmul.f32 %v535, %v531
        %v538 = vpack.c.bf16 %v521, %v521
        %539 = vrot.lane.b32.xlu0 %v452, 88
        %v540 = vpop.permute.xlu0 %539
        %v542 = vsel %vm398, %v538, 0
        %v545 = vsel %vm458, %v540, 0
        %547 = vmatpush.bf16.msra.mxu0 0
        %548 = vmatpush.bf16.msra.mxu0 0
        %549 = vmatpush.bf16.msra.mxu0 0
        %550 = vmatpush.bf16.msra.mxu0 0
        %551 = vmatpush.bf16.msra.mxu0 0
        %552 = vmatpush.bf16.msra.mxu0 0
        %553 = vmatpush.bf16.msra.mxu0 0
        %554 = vmatpush.bf16.msra.mxu0 %v545
        %555 = vmatmul.bf16.gmra.mxu0 %v542
        %v556 = vpop.f32.mrf.mxu0
        %v557 = vadd.f32 0.0, %v556
        %v558 = vpop.f32.mrf.mxu0
        %559 = vdwg.mxu0
        %v560 = vadd.f32 %v537, %v557
        %561 = vst.msk [vmem:[%s530] sm:$0xff] %vm398, %v560
        %562 = vst.msk [vmem:[%s505] sm:$0xff] %vm440, %v510
        %v563 = vld [vmem:[#allocation2] sm:$0xf]
        %v565 = vunpack.c.l.b16 %v563
        %v566 = vpack.c.b16 %v565, %v565
        %567 = vrot.lane.b32.xlu0 %v566, 112
        %v568 = vpop.permute.xlu0 %567
        %569 = vrot.lane.b32.xlu0 %v452, 112
        %v570 = vpop.permute.xlu0 %569
        %v572 = vsel %vm398, %v568, 0
        %v575 = vsel %vm398, %v570, 0
        %577 = vmatpush.bf16.xpose.msra.mxu0 0
        %578 = vmatpush.bf16.xpose.msra.mxu0 0
        %579 = vmatpush.bf16.xpose.msra.mxu0 0
        %580 = vmatpush.bf16.xpose.msra.mxu0 0
        %581 = vmatpush.bf16.xpose.msra.mxu0 0
        %582 = vmatpush.bf16.xpose.msra.mxu0 0
        %583 = vmatpush.bf16.xpose.msra.mxu0 0
        %584 = vmatpush.bf16.xpose.msra.mxu0 %v575
        %585 = vmatmul.bf16.gmra.mxu0 %v572
        %v586 = vpop.f32.mrf.mxu0
        %v587 = vadd.f32 %v396, %v586
        %v588 = vpop.f32.mrf.mxu0
        %589 = vdwg.mxu0
        %s590 = scalar_lea.vmem [#allocation4], 16
        %v591 = vld [vmem:[%s590] sm:$0xff]
        %v592 = vsel %vm398, %v587, -inf
        %593 = vmax.xlane.f32.xlu0 %v592
        %v594 = vpop.xlane.xlu0 %593
        %v595 = vmax.f32 %v591, %v594
        %v596 = vsub.f32 %v591, %v595
        %v597 = vmul.f32 %v596, 1.442695
        %v598 = vpow.pop %v597
        %600 = vset.pattern.permute.xlu0 0
        %601 = vperm.xlu0 %600, %v595
        %v602 = vpop.permute.xlu0 %601
        %v604 = vsub.f32 %v587, %v602
        %v605 = vmul.f32 %v604, 1.442695
        %v606 = vpow.pop %v605
        %s607 = scalar_lea.vmem [#allocation5], 16
        %v608 = vld [vmem:[%s607] sm:$0xff]
        %v609 = vmul.f32 %v598, %v608
        %v610 = vsel %vm398, %v606, 0.0
        %611 = vadd.xlane.f32.xlu0 %v610
        %v612 = vpop.xlane.xlu0 %611
        %v613 = vadd.f32 %v609, %v612
        %614 = vst.msk [vmem:[%s607] sm:$0xff] %vm440, %v613
        %s615 = scalar_lea.vmem [#allocation6], 16
        %v616 = vld [vmem:[%s615] sm:$0xff]
        %618 = vset.pattern.permute.xlu0 0
        %619 = vperm.xlu0 %618, %v598
        %v620 = vpop.permute.xlu0 %619
        %v622 = vmul.f32 %v620, %v616
        %v623 = vpack.c.bf16 %v606, %v606
        %624 = vrot.lane.b32.xlu0 %v452, 80
        %v625 = vpop.permute.xlu0 %624
        %v627 = vsel %vm398, %v623, 0
        %v630 = vsel %vm458, %v625, 0
        %632 = vmatpush.bf16.msra.mxu0 0
        %633 = vmatpush.bf16.msra.mxu0 0
        %634 = vmatpush.bf16.msra.mxu0 0
        %635 = vmatpush.bf16.msra.mxu0 0
        %636 = vmatpush.bf16.msra.mxu0 0
        %637 = vmatpush.bf16.msra.mxu0 0
        %638 = vmatpush.bf16.msra.mxu0 0
        %639 = vmatpush.bf16.msra.mxu0 %v630
        %640 = vmatmul.bf16.gmra.mxu0 %v627
        %v641 = vpop.f32.mrf.mxu0
        %v642 = vadd.f32 0.0, %v641
        %v643 = vpop.f32.mrf.mxu0
        %644 = vdwg.mxu0
        %v645 = vadd.f32 %v622, %v642
        %646 = vst.msk [vmem:[%s615] sm:$0xff] %vm398, %v645
        %647 = vst.msk [vmem:[%s590] sm:$0xff] %vm440, %v595
        %v648 = vld [vmem:[#allocation2] sm:$0xf]
        %v650 = vunpack.c.l.b16 %v648
        %v651 = vpack.c.b16 %v650, %v650
        %652 = vrot.lane.b32.xlu0 %v651, 104
        %v653 = vpop.permute.xlu0 %652
        %654 = vrot.lane.b32.xlu0 %v452, 104
        %v655 = vpop.permute.xlu0 %654
        %v657 = vsel %vm398, %v653, 0
        %v660 = vsel %vm398, %v655, 0
        %662 = vmatpush.bf16.xpose.msra.mxu0 0
        %663 = vmatpush.bf16.xpose.msra.mxu0 0
        %664 = vmatpush.bf16.xpose.msra.mxu0 0
        %665 = vmatpush.bf16.xpose.msra.mxu0 0
        %666 = vmatpush.bf16.xpose.msra.mxu0 0
        %667 = vmatpush.bf16.xpose.msra.mxu0 0
        %668 = vmatpush.bf16.xpose.msra.mxu0 0
        %669 = vmatpush.bf16.xpose.msra.mxu0 %v660
        %670 = vmatmul.bf16.gmra.mxu0 %v657
        %v671 = vpop.f32.mrf.mxu0
        %v672 = vadd.f32 %v396, %v671
        %v673 = vpop.f32.mrf.mxu0
        %674 = vdwg.mxu0
        %s675 = scalar_lea.vmem [#allocation4], 24
        %v676 = vld [vmem:[%s675] sm:$0xff]
        %v677 = vsel %vm398, %v672, -inf
        %678 = vmax.xlane.f32.xlu0 %v677
        %v679 = vpop.xlane.xlu0 %678
        %v680 = vmax.f32 %v676, %v679
        %v681 = vsub.f32 %v676, %v680
        %v682 = vmul.f32 %v681, 1.442695
        %v683 = vpow.pop %v682
        %685 = vset.pattern.permute.xlu0 0
        %686 = vperm.xlu0 %685, %v680
        %v687 = vpop.permute.xlu0 %686
        %v689 = vsub.f32 %v672, %v687
        %v690 = vmul.f32 %v689, 1.442695
        %v691 = vpow.pop %v690
        %s692 = scalar_lea.vmem [#allocation5], 24
        %v693 = vld [vmem:[%s692] sm:$0xff]
        %v694 = vmul.f32 %v683, %v693
        %v695 = vsel %vm398, %v691, 0.0
        %696 = vadd.xlane.f32.xlu0 %v695
        %v697 = vpop.xlane.xlu0 %696
        %v698 = vadd.f32 %v694, %v697
        %699 = vst.msk [vmem:[%s692] sm:$0xff] %vm440, %v698
        %s700 = scalar_lea.vmem [#allocation6], 24
        %v701 = vld [vmem:[%s700] sm:$0xff]
        %703 = vset.pattern.permute.xlu0 0
        %704 = vperm.xlu0 %703, %v683
        %v705 = vpop.permute.xlu0 %704
        %v707 = vmul.f32 %v705, %v701
        %v708 = vpack.c.bf16 %v691, %v691
        %709 = vrot.lane.b32.xlu0 %v452, 72
        %v710 = vpop.permute.xlu0 %709
        %v712 = vsel %vm398, %v708, 0
        %v715 = vsel %vm458, %v710, 0
        %717 = vmatpush.bf16.msra.mxu0 0
        %718 = vmatpush.bf16.msra.mxu0 0
        %719 = vmatpush.bf16.msra.mxu0 0
        %720 = vmatpush.bf16.msra.mxu0 0
        %721 = vmatpush.bf16.msra.mxu0 0
        %722 = vmatpush.bf16.msra.mxu0 0
        %723 = vmatpush.bf16.msra.mxu0 0
        %724 = vmatpush.bf16.msra.mxu0 %v715
        %725 = vmatmul.bf16.gmra.mxu0 %v712
        %v726 = vpop.f32.mrf.mxu0
        %v727 = vadd.f32 0.0, %v726
        %v728 = vpop.f32.mrf.mxu0
        %729 = vdwg.mxu0
        %v730 = vadd.f32 %v707, %v727
        %731 = vst.msk [vmem:[%s700] sm:$0xff] %vm398, %v730
        %732 = vst.msk [vmem:[%s675] sm:$0xff] %vm440, %v680
      $region48: #{mybart_forward.24} parent=39 // pred_fallthru
        _
      // Predicated region
      $region49: #{mybart_forward.24} parent=39 // pred_check
        %p733 = pneg %p312
      $region50: #{mybart_forward.24} parent=39 // pred_check_branch
        %735 = sbr.rel (%p733) target = $region52
      $region51: #{mybart_forward.24} parent=39 // pred_region
        %v736 = vld [vmem:[#allocation6] sm:$0xff]
        %v737 = vld [vmem:[#allocation5] sm:$0xff]
        %739 = vset.pattern.permute.xlu0 0
        %740 = vperm.xlu0 %739, %v737
        %v741 = vpop.permute.xlu0 %740
        %v743 = vrcp.pop %v741
        %v744 = vmul.f32 %v741, %v743
        %v745 = vsub.f32 1.0, %v744
        %v746 = vmul.f32 %v743, %v745
        %v747 = vadd.f32 %v743, %v746
        %vm748 = vweird.f32 %v741
        %vm749 = vweird.f32 %v743
        %vm750 = vmor %vm748, %vm749
        %v751 = vsel %vm750, %v743, %v747
        %v752 = vand.u32 2147483647, %v741
        %vm753 = vcmp.eq.f32.partialorder %v752, 8.507059e+37
        %v754 = vand.u32 %v741, 2147483648
        %v755 = vor.u32 1.1754944e-38, %v754
        %v756 = vsel %vm753, %v755, %v751
        %v757 = vmul.f32 %v736, %v756
        %v758 = vpack.c.bf16 %v757, %v757
        %vm759 = vcmask 60416
        %760 = vst.msk [vmem:[#allocation3] sm:$0xf] %vm759, %v758
        %s761 = scalar_lea.vmem [#allocation6], 8
        %v762 = vld [vmem:[%s761] sm:$0xff]
        %s763 = scalar_lea.vmem [#allocation5], 8
        %v764 = vld [vmem:[%s763] sm:$0xff]
        %766 = vset.pattern.permute.xlu0 0
        %767 = vperm.xlu0 %766, %v764
        %v768 = vpop.permute.xlu0 %767
        %v770 = vrcp.pop %v768
        %v771 = vmul.f32 %v768, %v770
        %v772 = vsub.f32 1.0, %v771
        %v773 = vmul.f32 %v770, %v772
        %v774 = vadd.f32 %v770, %v773
        %vm775 = vweird.f32 %v768
        %vm776 = vweird.f32 %v770
        %vm777 = vmor %vm775, %vm776
        %v778 = vsel %vm777, %v770, %v774
        %v779 = vand.u32 2147483647, %v768
        %vm780 = vcmp.eq.f32.partialorder %v779, 8.507059e+37
        %v781 = vand.u32 %v768, 2147483648
        %v782 = vor.u32 1.1754944e-38, %v781
        %v783 = vsel %vm780, %v782, %v778
        %v784 = vmul.f32 %v762, %v783
        %v785 = vpack.c.bf16 %v784, %v784
        %787 = vrot.lane.b32.xlu0 %v785, 8
        %v788 = vpop.permute.xlu0 %787
        %vm790 = vcmask 126016
        %791 = vst.msk [vmem:[#allocation3] sm:$0xf] %vm790, %v788
        %s792 = scalar_lea.vmem [#allocation6], 16
        %v793 = vld [vmem:[%s792] sm:$0xff]
        %s794 = scalar_lea.vmem [#allocation5], 16
        %v795 = vld [vmem:[%s794] sm:$0xff]
        %797 = vset.pattern.permute.xlu0 0
        %798 = vperm.xlu0 %797, %v795
        %v799 = vpop.permute.xlu0 %798
        %v801 = vrcp.pop %v799
        %v802 = vmul.f32 %v799, %v801
        %v803 = vsub.f32 1.0, %v802
        %v804 = vmul.f32 %v801, %v803
        %v805 = vadd.f32 %v801, %v804
        %vm806 = vweird.f32 %v799
        %vm807 = vweird.f32 %v801
        %vm808 = vmor %vm806, %vm807
        %v809 = vsel %vm808, %v801, %v805
        %v810 = vand.u32 2147483647, %v799
        %vm811 = vcmp.eq.f32.partialorder %v810, 8.507059e+37
        %v812 = vand.u32 %v799, 2147483648
        %v813 = vor.u32 1.1754944e-38, %v812
        %v814 = vsel %vm811, %v813, %v809
        %v815 = vmul.f32 %v793, %v814
        %v816 = vpack.c.bf16 %v815, %v815
        %818 = vrot.lane.b32.xlu0 %v816, 16
        %v819 = vpop.permute.xlu0 %818
        %vm821 = vcmask 191616
        %822 = vst.msk [vmem:[#allocation3] sm:$0xf] %vm821, %v819
        %s823 = scalar_lea.vmem [#allocation6], 24
        %v824 = vld [vmem:[%s823] sm:$0xff]
        %s825 = scalar_lea.vmem [#allocation5], 24
        %v826 = vld [vmem:[%s825] sm:$0xff]
        %828 = vset.pattern.permute.xlu0 0
        %829 = vperm.xlu0 %828, %v826
        %v830 = vpop.permute.xlu0 %829
        %v832 = vrcp.pop %v830
        %v833 = vmul.f32 %v830, %v832
        %v834 = vsub.f32 1.0, %v833
        %v835 = vmul.f32 %v832, %v834
        %v836 = vadd.f32 %v832, %v835
        %vm837 = vweird.f32 %v830
        %vm838 = vweird.f32 %v832
        %vm839 = vmor %vm837, %vm838
        %v840 = vsel %vm839, %v832, %v836
        %v841 = vand.u32 2147483647, %v830
        %vm842 = vcmp.eq.f32.partialorder %v841, 8.507059e+37
        %v843 = vand.u32 %v830, 2147483648
        %v844 = vor.u32 1.1754944e-38, %v843
        %v845 = vsel %vm842, %v844, %v840
        %v846 = vmul.f32 %v824, %v845
        %v847 = vpack.c.bf16 %v846, %v846
        %849 = vrot.lane.b32.xlu0 %v847, 24
        %v850 = vpop.permute.xlu0 %849
        %vm852 = vcmask 257216
        %853 = vst.msk [vmem:[#allocation3] sm:$0xf] %vm852, %v850
        %v854 = vld [vmem:[#allocation3] sm:$0xf]
        %vm855 = vcmask 257024
        %856 = vst.msk [vmem:[%s310] sm:$0xf] %vm855, %v854
      $region52: #{mybart_forward.24} parent=39 // pred_fallthru
        _
      %p857 = scmp.lt.s32.totalorder %s21, 1
      %s858 = scalar_select %p857, %s21, 1
      %p859 = scmp.lt.s32.totalorder %s22, 0
      %s860 = scalar_select %p859, %s22, 0
      %s861 = sadd.s32 %s860, %s858
      %s862 = smul.addr %s861, 4
      %s863 = scalar_lea.vmem %s5, %s862
      // Predicated region
      $region53: #{mybart_forward.24} parent=39 // pred_check
        %p864 = pneg %p181
      $region54: #{mybart_forward.24} parent=39 // pred_check_branch
        %866 = sbr.rel (%p864) target = $region56
      $region55: #{mybart_forward.24} parent=39 // pred_region
        _
      $region56: #{mybart_forward.24} parent=39 // pred_fallthru
        _
    $region40: #{mybart_forward.24} parent=5 // pred_fallthru
      _
    %p867 = scmp.le.s32.totalorder 2, %s11
    // Predicated region
    $region57: #{mybart_forward.24} parent=5 // pred_check
      %p868 = pneg %p867
    $region58: #{mybart_forward.24} parent=5 // pred_check_branch
      %870 = sbr.rel (%p868) target = $region60
    $region59: #{mybart_forward.24} parent=5 // pred_region
      %s871 = ssub.s32 %s11, 2
      // Predicated region
      $region61: #{mybart_forward.24} parent=59 // pred_check
        %p872 = pneg %p187
      $region62: #{mybart_forward.24} parent=59 // pred_check_branch
        %874 = sbr.rel (%p872) target = $region64
      $region63: #{mybart_forward.24} parent=59 // pred_region
        %p875 = scmp.lt.s32.totalorder %s24, 1
        %s876 = scalar_select %p875, %s24, 1
        %p877 = scmp.lt.s32.totalorder %s25, 0
        %s878 = scalar_select %p877, %s25, 0
        %s879 = sadd.s32 %s878, %s876
        %s880 = smul.addr %s879, 4
        %s881 = scalar_lea.vmem %s5, %s880
      $region64: #{mybart_forward.24} parent=59 // pred_fallthru
        _
    $region60: #{mybart_forward.24} parent=5 // pred_fallthru
      _
  $region6: #{mybart_forward.24} parent=0 // loop_footer
    %s15 = sadd.s32 1, %s11
  $region7: #{mybart_forward.24} parent=0 // loop_footer_branch
    %10 = sbr.rel target = $region3
  $region8: #{mybart_forward.24} parent=0 // loop_exit
    _

// kernel: mybart_forward.20
$region0: #{mybart_forward.20}
  #allocation0 [shape = 'u32[]', space=smem, size = 0x4, offset = 0x4, fixed_abs, tag = 'smem constant byte address 0x4 - core index']
  #allocation1 [shape = 'u32[72,128]{1,0:T(1,128)}', space=vmem, size = 0x9000, scoped, tag = 'internal scratch']
  #allocation2 [shape = 'f32[16,64]{1,0:T(8,128)}', space=vmem, size = 0x2000, scoped, tag = 'scratch operand']
  %s0 = inlined_call_operand.vmem [shape: bf16[16,32], index: 0, kind: input, shape index: {}]
  %s1 = inlined_call_operand.vmem [shape: bf16[32,64], index: 1, kind: input, shape index: {}]
  %s2 = inlined_call_operand.vmem [shape: f32[1,64], index: 2, kind: input, shape index: {}]
  %s3 = inlined_call_operand.vmem [shape: bf16[16,64], index: 3, kind: output, shape index: {}]
  %s4 = sld [smem:[#allocation0]]
  $region34: #{mybart_forward.20} parent=0
    _
  %s6 = ssub.s32 1, %s4
  %s7 = scalar_select 0, %s6, %s4
  // Predicated region
  $region2: #{mybart_forward.20} parent=0 // pred_check
    _
  $region3: #{mybart_forward.20} parent=0 // pred_check_branch
    %9 = sbr.rel (0) target = $region5
  $region4: #{mybart_forward.20} parent=0 // pred_region
    _
  $region5: #{mybart_forward.20} parent=0 // pred_fallthru
    _
  // Predicated region
  $region6: #{mybart_forward.20} parent=0 // pred_check
    _
  $region7: #{mybart_forward.20} parent=0 // pred_check_branch
    %11 = sbr.rel (0) target = $region9
  $region8: #{mybart_forward.20} parent=0 // pred_region
    _
  $region9: #{mybart_forward.20} parent=0 // pred_fallthru
    _
  // Predicated region
  $region10: #{mybart_forward.20} parent=0 // pred_check
    _
  $region11: #{mybart_forward.20} parent=0 // pred_check_branch
    %13 = sbr.rel (0) target = $region13
  $region12: #{mybart_forward.20} parent=0 // pred_region
    _
  $region13: #{mybart_forward.20} parent=0 // pred_fallthru
    _
  %v15 = vld [vmem:[%s0] sm:$0xf]
  %v16 = vld [vmem:[%s0 + $0x4] sm:$0xf]
  %v17 = vld [vmem:[%s1] sm:$0xf]
  %v18 = vld [vmem:[%s1 + $0x4] sm:$0xf]
  %v19 = vld [vmem:[%s1 + $0x8] sm:$0xf]
  %v20 = vld [vmem:[%s1 + $0xc] sm:$0xf]
  %v23 = vunpack.c.l.b16 %v15
  %v24 = vunpack.c.l.b16 %v16
  %v25 = vpack.c.b16 %v24, %v23
  %v30 = vunpack.c.l.b16 %v17
  %v31 = vunpack.c.l.b16 %v18
  %v32 = vunpack.c.l.b16 %v19
  %v33 = vunpack.c.l.b16 %v20
  %v34 = vpack.c.b16 %v31, %v30
  %v35 = vpack.c.b16 %v33, %v32
  %vm38 = vcmask 261120
  %v40 = vsel %vm38, %v25, 0
  %42 = vmatpush.bf16.msra.mxu0 0
  %43 = vmatpush.bf16.msra.mxu0 0
  %44 = vmatpush.bf16.msra.mxu0 0
  %45 = vmatpush.bf16.msra.mxu0 0
  %46 = vmatpush.bf16.msra.mxu0 0
  %47 = vmatpush.bf16.msra.mxu0 0
  %48 = vmatpush.bf16.msra.mxu0 %v35
  %49 = vmatpush.bf16.msra.mxu0 %v34
  %50 = vmatmul.bf16.gmra.mxu0 %v40
  %v51 = vpop.f32.mrf.mxu0
  %v52 = vadd.f32 0.0, %v51
  %v53 = vpop.f32.mrf.mxu0
  %v54 = vadd.f32 0.0, %v53
  %55 = vdwg.mxu0
  %p56 = scmp.eq.s32.totalorder 0, 0
  // Predicated region
  $region14: #{mybart_forward.20} parent=0 // pred_check
    %p57 = pneg %p56
  $region15: #{mybart_forward.20} parent=0 // pred_check_branch
    %59 = sbr.rel (%p57) target = $region17
  $region16: #{mybart_forward.20} parent=0 // pred_region
    %vm60 = vcmask 523264
    %61 = vst.msk [vmem:[#allocation2] sm:$0xff] %vm60, %v52
    %62 = vst.msk [vmem:[#allocation2 + $0x8] sm:$0xff] %vm60, %v54
  $region17: #{mybart_forward.20} parent=0 // pred_fallthru
    _
  %p63 = scmp.gt.s32.totalorder 0, 0
  // Predicated region
  $region18: #{mybart_forward.20} parent=0 // pred_check
    %p64 = pneg %p63
  $region19: #{mybart_forward.20} parent=0 // pred_check_branch
    %66 = sbr.rel (%p64) target = $region21
  $region20: #{mybart_forward.20} parent=0 // pred_region
    %v67 = vld [vmem:[#allocation2] sm:$0xff]
    %v68 = vld [vmem:[#allocation2 + $0x8] sm:$0xff]
    %v69 = vadd.f32 %v67, %v52
    %v70 = vadd.f32 %v68, %v54
    %vm71 = vcmask 523264
    %72 = vst.msk [vmem:[#allocation2] sm:$0xff] %vm71, %v69
    %73 = vst.msk [vmem:[#allocation2 + $0x8] sm:$0xff] %vm71, %v70
  $region21: #{mybart_forward.20} parent=0 // pred_fallthru
    _
  // Predicated region
  $region22: #{mybart_forward.20} parent=0 // pred_check
    %p74 = pneg %p56
  $region23: #{mybart_forward.20} parent=0 // pred_check_branch
    %76 = sbr.rel (%p74) target = $region25
  $region24: #{mybart_forward.20} parent=0 // pred_region
    %v77 = vld [vmem:[#allocation2] sm:$0xff]
    %v78 = vld [vmem:[#allocation2 + $0x8] sm:$0xff]
    %v79 = vld [vmem:[%s2] sm:$0x1]
    %v81 = vperm.slane %v79, 0
    %v83 = vadd.f32 %v77, %v81
    %v84 = vadd.f32 %v78, %v81
    %v85 = vmul.f32 %v83, 0.5
    %v86 = vmul.f32 %v84, 0.5
    %v87 = vmul.f32 %v83, 0.044715
    %v88 = vmul.f32 %v84, 0.044715
    %v89 = vmul.f32 %v87, %v83
    %v90 = vmul.f32 %v88, %v84
    %v91 = vmul.f32 %v89, %v83
    %v92 = vmul.f32 %v90, %v84
    %v93 = vadd.f32 %v83, %v91
    %v94 = vadd.f32 %v84, %v92
    %v95 = vmul.f32 %v93, 0.7978846
    %v96 = vmul.f32 %v94, 0.7978846
    %v97 = vtanh.pop %v95
    %v98 = vtanh.pop %v96
    %v99 = vadd.f32 %v97, 1.0
    %v100 = vadd.f32 %v98, 1.0
    %v101 = vmul.f32 %v85, %v99
    %v102 = vmul.f32 %v86, %v100
    %v103 = vpack.c.bf16 %v101, %v101
    %v104 = vpack.c.bf16 %v102, %v102
    %vm105 = vcmask 519168
    %106 = vst.msk [vmem:[%s3] sm:$0xf] %vm105, %v103
    %107 = vst.msk [vmem:[%s3 + $0x4] sm:$0xf] %vm105, %v104
  $region25: #{mybart_forward.20} parent=0 // pred_fallthru
    _
  // Predicated region
  $region26: #{mybart_forward.20} parent=0 // pred_check
    _
  $region27: #{mybart_forward.20} parent=0 // pred_check_branch
    %109 = sbr.rel (0) target = $region29
  $region28: #{mybart_forward.20} parent=0 // pred_region
    _
  $region29: #{mybart_forward.20} parent=0 // pred_fallthru
    _
  // Predicated region
  $region30: #{mybart_forward.20} parent=0 // pred_check
    _
  $region31: #{mybart_forward.20} parent=0 // pred_check_branch
    %111 = sbr.rel (0) target = $region33
  $region32: #{mybart_forward.20} parent=0 // pred_region
    _
  $region33: #{mybart_forward.20} parent=0 // pred_fallthru
    _

// kernel: mybart_forward.21
$region0: #{mybart_forward.21}
  #allocation0 [shape = 'u32[]', space=smem, size = 0x4, offset = 0x4, fixed_abs, tag = 'smem constant byte address 0x4 - core index']
  #allocation1 [shape = 'u32[72,128]{1,0:T(1,128)}', space=vmem, size = 0x9000, scoped, tag = 'internal scratch']
  #allocation2 [shape = 'f32[16,32]{1,0:T(8,128)}', space=vmem, size = 0x2000, scoped, tag = 'scratch operand']
  %s0 = inlined_call_operand.vmem [shape: bf16[16,64], index: 0, kind: input, shape index: {}]
  %s1 = inlined_call_operand.vmem [shape: bf16[16,32], index: 1, kind: input, shape index: {}]
  %s2 = inlined_call_operand.vmem [shape: bf16[64,32], index: 2, kind: input, shape index: {}]
  %s3 = inlined_call_operand.vmem [shape: f32[1,32], index: 3, kind: input, shape index: {}]
  %s4 = inlined_call_operand.vmem [shape: f32[1,32], index: 4, kind: input, shape index: {}]
  %s5 = inlined_call_operand.vmem [shape: f32[1,32], index: 5, kind: input, shape index: {}]
  %s6 = inlined_call_operand.vmem [shape: bf16[16,32], index: 6, kind: output, shape index: {}]
  %s7 = sld [smem:[#allocation0]]
  $region46: #{mybart_forward.21} parent=0
    _
  %s9 = ssub.s32 1, %s7
  %s10 = scalar_select 0, %s9, %s7
  // Predicated region
  $region2: #{mybart_forward.21} parent=0 // pred_check
    _
  $region3: #{mybart_forward.21} parent=0 // pred_check_branch
    %12 = sbr.rel (0) target = $region5
  $region4: #{mybart_forward.21} parent=0 // pred_region
    _
  $region5: #{mybart_forward.21} parent=0 // pred_fallthru
    _
  // Predicated region
  $region6: #{mybart_forward.21} parent=0 // pred_check
    _
  $region7: #{mybart_forward.21} parent=0 // pred_check_branch
    %14 = sbr.rel (0) target = $region9
  $region8: #{mybart_forward.21} parent=0 // pred_region
    _
  $region9: #{mybart_forward.21} parent=0 // pred_fallthru
    _
  // Predicated region
  $region10: #{mybart_forward.21} parent=0 // pred_check
    _
  $region11: #{mybart_forward.21} parent=0 // pred_check_branch
    %16 = sbr.rel (0) target = $region13
  $region12: #{mybart_forward.21} parent=0 // pred_region
    _
  $region13: #{mybart_forward.21} parent=0 // pred_fallthru
    _
  // Predicated region
  $region14: #{mybart_forward.21} parent=0 // pred_check
    _
  $region15: #{mybart_forward.21} parent=0 // pred_check_branch
    %18 = sbr.rel (0) target = $region17
  $region16: #{mybart_forward.21} parent=0 // pred_region
    _
  $region17: #{mybart_forward.21} parent=0 // pred_fallthru
    _
  // Predicated region
  $region18: #{mybart_forward.21} parent=0 // pred_check
    _
  $region19: #{mybart_forward.21} parent=0 // pred_check_branch
    %20 = sbr.rel (0) target = $region21
  $region20: #{mybart_forward.21} parent=0 // pred_region
    _
  $region21: #{mybart_forward.21} parent=0 // pred_fallthru
    _
  // Predicated region
  $region22: #{mybart_forward.21} parent=0 // pred_check
    _
  $region23: #{mybart_forward.21} parent=0 // pred_check_branch
    %22 = sbr.rel (0) target = $region25
  $region24: #{mybart_forward.21} parent=0 // pred_region
    _
  $region25: #{mybart_forward.21} parent=0 // pred_fallthru
    _
  %v24 = vld [vmem:[%s0] sm:$0xf]
  %v25 = vld [vmem:[%s0 + $0x4] sm:$0xf]
  %v26 = vld [vmem:[%s2] sm:$0xf]
  %v27 = vld [vmem:[%s2 + $0x4] sm:$0xf]
  %v28 = vld [vmem:[%s2 + $0x8] sm:$0xf]
  %v29 = vld [vmem:[%s2 + $0xc] sm:$0xf]
  %v30 = vld [vmem:[%s2 + $0x10] sm:$0xf]
  %v31 = vld [vmem:[%s2 + $0x14] sm:$0xf]
  %v32 = vld [vmem:[%s2 + $0x18] sm:$0xf]
  %v33 = vld [vmem:[%s2 + $0x1c] sm:$0xf]
  %v36 = vunpack.c.l.b16 %v24
  %v37 = vunpack.c.l.b16 %v25
  %v38 = vpack.c.b16 %v37, %v36
  %v47 = vunpack.c.l.b16 %v26
  %v48 = vunpack.c.l.b16 %v27
  %v49 = vunpack.c.l.b16 %v28
  %v50 = vunpack.c.l.b16 %v29
  %v51 = vunpack.c.l.b16 %v30
  %v52 = vunpack.c.l.b16 %v31
  %v53 = vunpack.c.l.b16 %v32
  %v54 = vunpack.c.l.b16 %v33
  %v55 = vpack.c.b16 %v48, %v47
  %v56 = vpack.c.b16 %v50, %v49
  %v57 = vpack.c.b16 %v52, %v51
  %v58 = vpack.c.b16 %v54, %v53
  %vm63 = vcmask 523264
  %v65 = vsel %vm63, %v38, 0
  %67 = vmatpush.bf16.msra.mxu0 0
  %68 = vmatpush.bf16.msra.mxu0 0
  %69 = vmatpush.bf16.msra.mxu0 0
  %70 = vmatpush.bf16.msra.mxu0 0
  %71 = vmatpush.bf16.msra.mxu0 %v58
  %72 = vmatpush.bf16.msra.mxu0 %v57
  %73 = vmatpush.bf16.msra.mxu0 %v56
  %74 = vmatpush.bf16.msra.mxu0 %v55
  %75 = vmatmul.bf16.gmra.mxu0 %v65
  %v76 = vpop.f32.mrf.mxu0
  %v77 = vadd.f32 0.0, %v76
  %v78 = vpop.f32.mrf.mxu0
  %v79 = vadd.f32 0.0, %v78
  %80 = vdwg.mxu0
  %p81 = scmp.eq.s32.totalorder 0, 0
  // Predicated region
  $region26: #{mybart_forward.21} parent=0 // pred_check
    %p82 = pneg %p81
  $region27: #{mybart_forward.21} parent=0 // pred_check_branch
    %84 = sbr.rel (%p82) target = $region29
  $region28: #{mybart_forward.21} parent=0 // pred_region
    %vm85 = vcmask 261120
    %86 = vst.msk [vmem:[#allocation2] sm:$0xff] %vm85, %v77
    %87 = vst.msk [vmem:[#allocation2 + $0x8] sm:$0xff] %vm85, %v79
  $region29: #{mybart_forward.21} parent=0 // pred_fallthru
    _
  %p88 = scmp.gt.s32.totalorder 0, 0
  // Predicated region
  $region30: #{mybart_forward.21} parent=0 // pred_check
    %p89 = pneg %p88
  $region31: #{mybart_forward.21} parent=0 // pred_check_branch
    %91 = sbr.rel (%p89) target = $region33
  $region32: #{mybart_forward.21} parent=0 // pred_region
    %v92 = vld [vmem:[#allocation2] sm:$0xff]
    %v93 = vld [vmem:[#allocation2 + $0x8] sm:$0xff]
    %v94 = vadd.f32 %v92, %v77
    %v95 = vadd.f32 %v93, %v79
    %vm96 = vcmask 261120
    %97 = vst.msk [vmem:[#allocation2] sm:$0xff] %vm96, %v94
    %98 = vst.msk [vmem:[#allocation2 + $0x8] sm:$0xff] %vm96, %v95
  $region33: #{mybart_forward.21} parent=0 // pred_fallthru
    _
  // Predicated region
  $region34: #{mybart_forward.21} parent=0 // pred_check
    %p99 = pneg %p81
  $region35: #{mybart_forward.21} parent=0 // pred_check_branch
    %101 = sbr.rel (%p99) target = $region37
  $region36: #{mybart_forward.21} parent=0 // pred_region
    %v102 = vld [vmem:[#allocation2] sm:$0xff]
    %v103 = vld [vmem:[#allocation2 + $0x8] sm:$0xff]
    %v104 = vld [vmem:[%s3] sm:$0x1]
    %v106 = vperm.slane %v104, 0
    %v108 = vadd.f32 %v102, %v106
    %v109 = vadd.f32 %v103, %v106
    %v110 = vld [vmem:[%s1] sm:$0xf]
    %v111 = vld [vmem:[%s1 + $0x4] sm:$0xf]
    %v112 = vunpack.c.l.bf16 %v110
    %v113 = vunpack.c.l.bf16 %v111
    %v114 = vadd.f32 %v108, %v112
    %v115 = vadd.f32 %v109, %v113
    %vm116 = vcmask 261120
    %v117 = vsel %vm116, %v114, 0.0
    %118 = vadd.xlane.f32.xlu0 %v117
    %v119 = vpop.xlane.xlu0 %118
    %v120 = vsel %vm116, %v115, 0.0
    %121 = vadd.xlane.f32.xlu0 %v120
    %v122 = vpop.xlane.xlu0 %121
    %v123 = vrcp.pop 32.0
    %v124 = vmul.f32 32.0, %v123
    %v125 = vsub.f32 1.0, %v124
    %v126 = vmul.f32 %v123, %v125
    %v127 = vadd.f32 %v123, %v126
    %vm128 = vweird.f32 %v123
    %v129 = vsel %vm128, %v123, %v127
    %v130 = vmul.f32 %v119, %v129
    %v131 = vmul.f32 %v122, %v129
    %v132 = vsub.f32 %v114, %v130
    %v133 = vsub.f32 %v115, %v131
    %v134 = vmul.f32 %v132, %v132
    %v135 = vmul.f32 %v133, %v133
    %v136 = vsel %vm116, %v134, 0.0
    %137 = vadd.xlane.f32.xlu0 %v136
    %v138 = vpop.xlane.xlu0 %137
    %v139 = vsel %vm116, %v135, 0.0
    %140 = vadd.xlane.f32.xlu0 %v139
    %v141 = vpop.xlane.xlu0 %140
    %v142 = vmul.f32 %v138, %v129
    %v143 = vmul.f32 %v141, %v129
    %v144 = vadd.f32 %v142, 1e-05
    %v145 = vadd.f32 %v143, 1e-05
    %v146 = vrsqrt.pop %v144
    %v147 = vmul.f32 %v146, %v144
    %v148 = vmul.f32 %v147, %v146
    %v149 = vmul.f32 0.5, %v148
    %v150 = vsub.f32 1.5, %v149
    %v151 = vmul.f32 %v146, %v150
    %vm152 = vweird.f32 %v144
    %vm153 = vweird.f32 %v146
    %vm154 = vmor %vm152, %vm153
    %v155 = vsel %vm154, %v146, %v151
    %v156 = vrsqrt.pop %v145
    %v157 = vmul.f32 %v156, %v145
    %v158 = vmul.f32 %v157, %v156
    %v159 = vmul.f32 0.5, %v158
    %v160 = vsub.f32 1.5, %v159
    %v161 = vmul.f32 %v156, %v160
    %vm162 = vweird.f32 %v145
    %vm163 = vweird.f32 %v156
    %vm164 = vmor %vm162, %vm163
    %v165 = vsel %vm164, %v156, %v161
    %v166 = vmul.f32 %v132, %v155
    %v167 = vmul.f32 %v133, %v165
    %v168 = vld [vmem:[%s4] sm:$0x1]
    %v170 = vperm.slane %v168, 0
    %v172 = vmul.f32 %v166, %v170
    %v173 = vmul.f32 %v167, %v170
    %v174 = vld [vmem:[%s5] sm:$0x1]
    %v176 = vperm.slane %v174, 0
    %v178 = vadd.f32 %v172, %v176
    %v179 = vadd.f32 %v173, %v176
    %v180 = vpack.c.bf16 %v178, %v178
    %v181 = vpack.c.bf16 %v179, %v179
    %vm182 = vcmask 257024
    %183 = vst.msk [vmem:[%s6] sm:$0xf] %vm182, %v180
    %184 = vst.msk [vmem:[%s6 + $0x4] sm:$0xf] %vm182, %v181
  $region37: #{mybart_forward.21} parent=0 // pred_fallthru
    _
  // Predicated region
  $region38: #{mybart_forward.21} parent=0 // pred_check
    _
  $region39: #{mybart_forward.21} parent=0 // pred_check_branch
    %186 = sbr.rel (0) target = $region41
  $region40: #{mybart_forward.21} parent=0 // pred_region
    _
  $region41: #{mybart_forward.21} parent=0 // pred_fallthru
    _
  // Predicated region
  $region42: #{mybart_forward.21} parent=0 // pred_check
    _
  $region43: #{mybart_forward.21} parent=0 // pred_check_branch
    %188 = sbr.rel (0) target = $region45
  $region44: #{mybart_forward.21} parent=0 // pred_region
    _
  $region45: #{mybart_forward.21} parent=0 // pred_fallthru
    _

// kernel: mybart_forward.18
$region0: #{mybart_forward.18}
  #allocation0 [shape = 'u32[]', space=smem, size = 0x4, offset = 0x4, fixed_abs, tag = 'smem constant byte address 0x4 - core index']
  #allocation1 [shape = 'u32[72,128]{1,0:T(1,128)}', space=vmem, size = 0x9000, scoped, tag = 'internal scratch']
  #allocation2 [shape = 'bf16[8,32]{1,0:T(8,128)(2,1)}', space=vmem, size = 0x800, scoped, tag = 'scratch operand']
  #allocation3 [shape = 'bf16[8,32]{1,0:T(8,128)(2,1)}', space=vmem, size = 0x800, scoped, tag = 'scratch operand']
  #allocation4 [shape = 'f32[4,8,1]{2,1,0:T(8,128)}', space=vmem, size = 0x4000, scoped, tag = 'scratch operand']
  #allocation5 [shape = 'f32[4,8,1]{2,1,0:T(8,128)}', space=vmem, size = 0x4000, scoped, tag = 'scratch operand']
  #allocation6 [shape = 'f32[4,8,8]{2,1,0:T(8,128)}', space=vmem, size = 0x4000, scoped, tag = 'scratch operand']
  %s0 = inlined_call_operand.vmem [shape: bf16[2,8,32], index: 0, kind: input, shape index: {}]
  %s1 = inlined_call_operand.vmem [shape: bf16[32,32], index: 1, kind: input, shape index: {}]
  %s2 = inlined_call_operand.vmem [shape: f32[1,32], index: 2, kind: input, shape index: {}]
  %s3 = inlined_call_operand.vmem [shape: bf16[2,8,64], index: 3, kind: input, shape index: {}]
  %s4 = inlined_call_operand.vmem [shape: f32[2,1,8], index: 4, kind: input, shape index: {}]
  %s5 = inlined_call_operand.vmem [shape: bf16[2,8,32], index: 5, kind: output, shape index: {}]
  %s6 = sld [smem:[#allocation0]]
  $region61: #{mybart_forward.18} parent=0
    _
  %s8 = ssub.s32 1, %s6
  %s9 = scalar_select 0, %s8, %s6
  loop: start=0, step=1, limit=4
  $region2: #{mybart_forward.18} parent=0 // loop_pre_header
    _
  $region3: #{mybart_forward.18} parent=0 // loop_header
    %s11 = sphi 0, %s15
    %p12 = scmp.ge.s32.totalorder %s11, 4
    %s18 = sphi 0, %s37
    %s19 = sphi 0, %s33
    %s20 = sphi 0, %s29
    %s21 = sphi 0, %s18
    %s22 = sphi 0, %s19
    %s23 = sphi 0, %s20
    %s24 = sphi 0, %s21
    %s25 = sphi 0, %s22
    %s26 = sphi 0, %s23
    %s42 = sphi 0, %s44
    %s45 = sphi 0, %s42
    %s46 = sphi 0, %s45
    %s62 = sphi 0, %s46
    %s66 = sphi 0, %s66
    %s68 = sphi 0, %s66
    %s69 = sphi 0, %s68
    %s83 = sphi 0, %s69
    %s87 = sphi 0, %s87
    %s89 = sphi 0, %s87
    %s90 = sphi 0, %s89
    %s104 = sphi 0, %s90
    %s112 = sphi 0, %s114
    %s115 = sphi 0, %s112
    %s116 = sphi 0, %s115
    %s132 = sphi 0, %s116
    %s140 = sphi 0, %s142
    %s143 = sphi 0, %s140
    %s144 = sphi 0, %s143
    %s160 = sphi 0, %s144
    %s168 = sphi 0, %s170
    %s171 = sphi 0, %s168
    %s172 = sphi 0, %s171
    %s188 = sphi 0, %s172
  $region4: #{mybart_forward.18} parent=0 // loop_header_branch
    %14 = sbr.rel (%p12) target = $region8
  $region5: #{mybart_forward.18} parent=0 // loop_body
    %s16 = ssub.s32 %s11, 1
    %s17 = ssub.s32 %s11, 2
    %s27 = sadd.s32 1, %s20
    %p28 = scmp.ge.s32.totalorder %s27, 1
    %s29 = scalar_select %p28, 0, %s27
    %s30 = sadd.s32 1, %s19
    %s31 = scalar_select %p28, %s30, %s19
    %p32 = scmp.ge.s32.totalorder %s31, 1
    %s33 = scalar_select %p32, 0, %s31
    %s34 = sadd.s32 1, %s18
    %s35 = scalar_select %p32, %s34, %s18
    %p36 = scmp.ge.s32.totalorder %s35, 2
    %s37 = scalar_select %p36, 0, %s35
    %s38 = ssub.s32 %s18, %s37
    %s39 = ssub.s32 %s19, %s33
    %s40 = sor.u32 %s38, %s39
    %p41 = scmp.eq.s32.totalorder %s40, 0
    %s43 = sadd.s32 %s42, 1
    %s44 = scalar_select %p41, %s42, %s43
    %p47 = pneg %p41
    %p48 = scmp.eq.s32.totalorder %s11, 1
    %p49 = por %p47, %p48
    %p50 = scmp.ne.s32.totalorder %s42, %s45
    %p51 = scmp.eq.s32.totalorder %s11, 0
    %p52 = por %p50, %p51
    %p53 = scmp.ne.s32.totalorder %s42, %s45
    %p54 = scmp.eq.s32.totalorder %s16, 1
    %p55 = por %p53, %p54
    %p56 = scmp.ne.s32.totalorder %s45, %s46
    %p57 = scmp.eq.s32.totalorder %s16, 0
    %p58 = por %p56, %p57
    %p59 = scmp.ne.s32.totalorder %s45, %s46
    %p60 = scmp.eq.s32.totalorder %s17, 1
    %p61 = por %p59, %p60
    %p63 = scmp.ne.s32.totalorder %s46, %s62
    %p64 = scmp.eq.s32.totalorder %s17, 0
    %p65 = por %p63, %p64
    %s67 = sadd.s32 %s66, 1
    %p70 = scmp.eq.s32.totalorder %s11, 1
    %p71 = scmp.ne.s32.totalorder %s66, %s68
    %p72 = scmp.eq.s32.totalorder %s11, 0
    %p73 = por %p71, %p72
    %p74 = scmp.ne.s32.totalorder %s66, %s68
    %p75 = scmp.eq.s32.totalorder %s16, 1
    %p76 = por %p74, %p75
    %p77 = scmp.ne.s32.totalorder %s68, %s69
    %p78 = scmp.eq.s32.totalorder %s16, 0
    %p79 = por %p77, %p78
    %p80 = scmp.ne.s32.totalorder %s68, %s69
    %p81 = scmp.eq.s32.totalorder %s17, 1
    %p82 = por %p80, %p81
    %p84 = scmp.ne.s32.totalorder %s69, %s83
    %p85 = scmp.eq.s32.totalorder %s17, 0
    %p86 = por %p84, %p85
    %s88 = sadd.s32 %s87, 1
    %p91 = scmp.eq.s32.totalorder %s11, 1
    %p92 = scmp.ne.s32.totalorder %s87, %s89
    %p93 = scmp.eq.s32.totalorder %s11, 0
    %p94 = por %p92, %p93
    %p95 = scmp.ne.s32.totalorder %s87, %s89
    %p96 = scmp.eq.s32.totalorder %s16, 1
    %p97 = por %p95, %p96
    %p98 = scmp.ne.s32.totalorder %s89, %s90
    %p99 = scmp.eq.s32.totalorder %s16, 0
    %p100 = por %p98, %p99
    %p101 = scmp.ne.s32.totalorder %s89, %s90
    %p102 = scmp.eq.s32.totalorder %s17, 1
    %p103 = por %p101, %p102
    %p105 = scmp.ne.s32.totalorder %s90, %s104
    %p106 = scmp.eq.s32.totalorder %s17, 0
    %p107 = por %p105, %p106
    %s108 = ssub.s32 %s18, %s37
    %s109 = ssub.s32 %s20, %s29
    %s110 = sor.u32 %s108, %s109
    %p111 = scmp.eq.s32.totalorder %s110, 0
    %s113 = sadd.s32 %s112, 1
    %s114 = scalar_select %p111, %s112, %s113
    %p117 = pneg %p111
    %p118 = scmp.eq.s32.totalorder %s11, 1
    %p119 = por %p117, %p118
    %p120 = scmp.ne.s32.totalorder %s112, %s115
    %p121 = scmp.eq.s32.totalorder %s11, 0
    %p122 = por %p120, %p121
    %p123 = scmp.ne.s32.totalorder %s112, %s115
    %p124 = scmp.eq.s32.totalorder %s16, 1
    %p125 = por %p123, %p124
    %p126 = scmp.ne.s32.totalorder %s115, %s116
    %p127 = scmp.eq.s32.totalorder %s16, 0
    %p128 = por %p126, %p127
    %p129 = scmp.ne.s32.totalorder %s115, %s116
    %p130 = scmp.eq.s32.totalorder %s17, 1
    %p131 = por %p129, %p130
    %p133 = scmp.ne.s32.totalorder %s116, %s132
    %p134 = scmp.eq.s32.totalorder %s17, 0
    %p135 = por %p133, %p134
    %s136 = ssub.s32 %s18, %s37
    %s137 = ssub.s32 %s20, %s29
    %s138 = sor.u32 %s136, %s137
    %p139 = scmp.eq.s32.totalorder %s138, 0
    %s141 = sadd.s32 %s140, 1
    %s142 = scalar_select %p139, %s140, %s141
    %p145 = pneg %p139
    %p146 = scmp.eq.s32.totalorder %s11, 1
    %p147 = por %p145, %p146
    %p148 = scmp.ne.s32.totalorder %s140, %s143
    %p149 = scmp.eq.s32.totalorder %s11, 0
    %p150 = por %p148, %p149
    %p151 = scmp.ne.s32.totalorder %s140, %s143
    %p152 = scmp.eq.s32.totalorder %s16, 1
    %p153 = por %p151, %p152
    %p154 = scmp.ne.s32.totalorder %s143, %s144
    %p155 = scmp.eq.s32.totalorder %s16, 0
    %p156 = por %p154, %p155
    %p157 = scmp.ne.s32.totalorder %s143, %s144
    %p158 = scmp.eq.s32.totalorder %s17, 1
    %p159 = por %p157, %p158
    %p161 = scmp.ne.s32.totalorder %s144, %s160
    %p162 = scmp.eq.s32.totalorder %s17, 0
    %p163 = por %p161, %p162
    %s164 = ssub.s32 %s18, %s37
    %s165 = ssub.s32 %s19, %s33
    %s166 = sor.u32 %s164, %s165
    %p167 = scmp.eq.s32.totalorder %s166, 0
    %s169 = sadd.s32 %s168, 1
    %s170 = scalar_select %p167, %s168, %s169
    %p173 = pneg %p167
    %p174 = scmp.eq.s32.totalorder %s11, 1
    %p175 = por %p173, %p174
    %p176 = scmp.ne.s32.totalorder %s168, %s171
    %p177 = scmp.eq.s32.totalorder %s11, 0
    %p178 = por %p176, %p177
    %p179 = scmp.ne.s32.totalorder %s168, %s171
    %p180 = scmp.eq.s32.totalorder %s16, 1
    %p181 = por %p179, %p180
    %p182 = scmp.ne.s32.totalorder %s171, %s172
    %p183 = scmp.eq.s32.totalorder %s16, 0
    %p184 = por %p182, %p183
    %p185 = scmp.ne.s32.totalorder %s171, %s172
    %p186 = scmp.eq.s32.totalorder %s17, 1
    %p187 = por %p185, %p186
    %p189 = scmp.ne.s32.totalorder %s172, %s188
    %p190 = scmp.eq.s32.totalorder %s17, 0
    %p191 = por %p189, %p190
    %p192 = scmp.le.s32.totalorder 1, %s11
    %p193 = scmp.lt.s32.totalorder %s11, 3
    %p194 = pnand %p192, %p193
    %p195 = pneg %p194
    // Predicated region
    $region9: #{mybart_forward.18} parent=5 // pred_check
      _
    $region10: #{mybart_forward.18} parent=5 // pred_check_branch
      %197 = sbr.rel (%p194) target = $region12
    $region11: #{mybart_forward.18} parent=5 // pred_region
      %s198 = ssub.s32 %s11, 1
      // Predicated region
      $region13: #{mybart_forward.18} parent=11 // pred_check
        %p199 = pneg %p79
      $region14: #{mybart_forward.18} parent=11 // pred_check_branch
        %201 = sbr.rel (%p199) target = $region16
      $region15: #{mybart_forward.18} parent=11 // pred_region
        _
      $region16: #{mybart_forward.18} parent=11 // pred_fallthru
        _
      // Predicated region
      $region17: #{mybart_forward.18} parent=11 // pred_check
        %p202 = pneg %p100
      $region18: #{mybart_forward.18} parent=11 // pred_check_branch
        %204 = sbr.rel (%p202) target = $region20
      $region19: #{mybart_forward.18} parent=11 // pred_region
        _
      $region20: #{mybart_forward.18} parent=11 // pred_fallthru
        _
    $region12: #{mybart_forward.18} parent=5 // pred_fallthru
      _
    %p205 = scmp.lt.s32.totalorder %s11, 2
    // Predicated region
    $region21: #{mybart_forward.18} parent=5 // pred_check
      %p206 = pneg %p205
    $region22: #{mybart_forward.18} parent=5 // pred_check_branch
      %208 = sbr.rel (%p206) target = $region24
    $region23: #{mybart_forward.18} parent=5 // pred_region
      // Predicated region
      $region25: #{mybart_forward.18} parent=23 // pred_check
        %p209 = pneg %p52
      $region26: #{mybart_forward.18} parent=23 // pred_check_branch
        %211 = sbr.rel (%p209) target = $region28
      $region27: #{mybart_forward.18} parent=23 // pred_region
        %p212 = scmp.lt.s32.totalorder %s18, 1
        %s213 = scalar_select %p212, %s18, 1
        %p214 = scmp.lt.s32.totalorder %s19, 0
        %s215 = scalar_select %p214, %s19, 0
        %s216 = sadd.s32 %s215, %s213
        %s217 = smul.addr %s216, 4
        %s218 = scalar_lea.vmem %s0, %s217
      $region28: #{mybart_forward.18} parent=23 // pred_fallthru
        _
      // Predicated region
      $region29: #{mybart_forward.18} parent=23 // pred_check
        %p219 = pneg %p122
      $region30: #{mybart_forward.18} parent=23 // pred_check_branch
        %221 = sbr.rel (%p219) target = $region32
      $region31: #{mybart_forward.18} parent=23 // pred_region
        %p222 = scmp.lt.s32.totalorder %s18, 1
        %s223 = scalar_select %p222, %s18, 1
        %p224 = scmp.lt.s32.totalorder %s20, 0
        %s225 = scalar_select %p224, %s20, 0
        %s226 = sadd.s32 %s225, %s223
        %s227 = smul.addr %s226, 4
        %s228 = scalar_lea.vmem %s3, %s227
      $region32: #{mybart_forward.18} parent=23 // pred_fallthru
        _
      // Predicated region
      $region33: #{mybart_forward.18} parent=23 // pred_check
        %p229 = pneg %p150
      $region34: #{mybart_forward.18} parent=23 // pred_check_branch
        %231 = sbr.rel (%p229) target = $region36
      $region35: #{mybart_forward.18} parent=23 // pred_region
        %p232 = scmp.lt.s32.totalorder %s18, 1
        %s233 = scalar_select %p232, %s18, 1
        %p234 = scmp.lt.s32.totalorder %s20, 0
        %s235 = scalar_select %p234, %s20, 0
        %s236 = sadd.s32 %s235, %s233
        %s237 = scalar_lea.vmem %s4, %s236
      $region36: #{mybart_forward.18} parent=23 // pred_fallthru
        _
    $region24: #{mybart_forward.18} parent=5 // pred_fallthru
      _
    %p238 = scmp.le.s32.totalorder 1, %s11
    %p239 = scmp.lt.s32.totalorder %s11, 3
    %p240 = pnand %p238, %p239
    %p241 = pneg %p240
    // Predicated region
    $region37: #{mybart_forward.18} parent=5 // pred_check
      _
    $region38: #{mybart_forward.18} parent=5 // pred_check_branch
      %243 = sbr.rel (%p240) target = $region40
    $region39: #{mybart_forward.18} parent=5 // pred_region
      %s244 = ssub.s32 %s11, 1
      %p245 = scmp.lt.s32.totalorder %s21, 1
      %s246 = scalar_select %p245, %s21, 1
      %p247 = scmp.lt.s32.totalorder %s22, 0
      %s248 = scalar_select %p247, %s22, 0
      %s249 = sadd.s32 %s248, %s246
      %s250 = smul.addr %s249, 4
      %s251 = scalar_lea.vmem %s0, %s250
      %p252 = pneg %p58
      %p253 = pneg %p55
      %p254 = pneg %p79
      %p255 = pneg %p76
      %p256 = pneg %p100
      %p257 = pneg %p97
      %p258 = scmp.lt.s32.totalorder %s21, 1
      %s259 = scalar_select %p258, %s21, 1
      %p260 = scmp.lt.s32.totalorder %s23, 0
      %s261 = scalar_select %p260, %s23, 0
      %s262 = sadd.s32 %s261, %s259
      %s263 = smul.addr %s262, 4
      %s264 = scalar_lea.vmem %s3, %s263
      %p265 = pneg %p128
      %p266 = pneg %p125
      %p267 = scmp.lt.s32.totalorder %s21, 1
      %s268 = scalar_select %p267, %s21, 1
      %p269 = scmp.lt.s32.totalorder %s23, 0
      %s270 = scalar_select %p269, %s23, 0
      %s271 = sadd.s32 %s270, %s268
      %s272 = scalar_lea.vmem %s4, %s271
      %p273 = pneg %p156
      %p274 = pneg %p153
      %p275 = pneg %p184
      %p276 = pneg %p181
      %p277 = scmp.lt.s32.totalorder %s21, 1
      %s278 = scalar_select %p277, %s21, 1
      %p279 = scmp.lt.s32.totalorder %s22, 0
      %s280 = scalar_select %p279, %s22, 0
      %s281 = sadd.s32 %s280, %s278
      %s282 = smul.addr %s281, 4
      %s283 = scalar_lea.vmem %s5, %s282
      %p284 = scmp.lt.s32.totalorder %s21, 1
      %s285 = scalar_select %p284, %s21, 1
      %p286 = scmp.lt.s32.totalorder %s22, 0
      %s287 = scalar_select %p286, %s22, 0
      %s288 = sadd.s32 %s287, %s285
      %s289 = smul.addr %s288, 4
      %s290 = scalar_lea.vmem %s0, %s289
      %p291 = scmp.lt.s32.totalorder %s21, 1
      %s292 = scalar_select %p291, %s21, 1
      %p293 = scmp.lt.s32.totalorder %s23, 0
      %s294 = scalar_select %p293, %s23, 0
      %s295 = sadd.s32 %s294, %s292
      %s296 = smul.addr %s295, 4
      %s297 = scalar_lea.vmem %s3, %s296
      %p298 = scmp.lt.s32.totalorder %s21, 1
      %s299 = scalar_select %p298, %s21, 1
      %p300 = scmp.lt.s32.totalorder %s23, 0
      %s301 = scalar_select %p300, %s23, 0
      %s302 = sadd.s32 %s301, %s299
      %s303 = scalar_lea.vmem %s4, %s302
      %p304 = scmp.lt.s32.totalorder %s21, 1
      %s305 = scalar_select %p304, %s21, 1
      %p306 = scmp.lt.s32.totalorder %s22, 0
      %s307 = scalar_select %p306, %s22, 0
      %s308 = sadd.s32 %s307, %s305
      %s309 = smul.addr %s308, 4
      %s310 = scalar_lea.vmem %s5, %s309
      %p312 = scmp.eq.s32.totalorder %s23, 0
      // Predicated region
      $region41: #{mybart_forward.18} parent=39 // pred_check
        %p313 = pneg %p312
      $region42: #{mybart_forward.18} parent=39 // pred_check_branch
        %315 = sbr.rel (%p313) target = $region44
      $region43: #{mybart_forward.18} parent=39 // pred_region
        %v316 = vld [vmem:[%s290] sm:$0xf]
        %v317 = vld [vmem:[%s1] sm:$0xf]
        %v318 = vld [vmem:[%s1 + $0x4] sm:$0xf]
        %v319 = vld [vmem:[%s1 + $0x8] sm:$0xf]
        %v320 = vld [vmem:[%s1 + $0xc] sm:$0xf]
        %v321 = vld [vmem:[%s2] sm:$0x1]
        %v323 = vperm.slane %v321, 0
        %v329 = vunpack.c.l.b16 %v317
        %v330 = vunpack.c.l.b16 %v318
        %v331 = vunpack.c.l.b16 %v319
        %v332 = vunpack.c.l.b16 %v320
        %v333 = vpack.c.b16 %v330, %v329
        %v334 = vpack.c.b16 %v332, %v331
        %vm337 = vcmask 261120
        %v339 = vsel %vm337, %v316, 0
        %341 = vmatpush.bf16.msra.mxu0 0
        %342 = vmatpush.bf16.msra.mxu0 0
        %343 = vmatpush.bf16.msra.mxu0 0
        %344 = vmatpush.bf16.msra.mxu0 0
        %345 = vmatpush.bf16.msra.mxu0 0
        %346 = vmatpush.bf16.msra.mxu0 0
        %347 = vmatpush.bf16.msra.mxu0 %v334
        %348 = vmatpush.bf16.msra.mxu0 %v333
        %349 = vmatmul.bf16.gmra.mxu0 %v339
        %v350 = vpop.f32.mrf.mxu0
        %v351 = vadd.f32 %v323, %v350
        %v352 = vpop.f32.mrf.mxu0
        %353 = vdwg.mxu0
        %v354 = vmul.f32 %v351, 0.35355338
        %v355 = vpack.c.bf16 %v354, %v354
        %vm356 = vcmask 257024
        %357 = vst.msk [vmem:[#allocation2] sm:$0xf] %vm356, %v355
        %vm358 = vcmask 7168
        %359 = vst.msk [vmem:[#allocation4] sm:$0xff] %vm358, -1e+30
        %360 = vst.msk [vmem:[#allocation4 + $0x8] sm:$0xff] %vm358, -1e+30
        %361 = vst.msk [vmem:[#allocation4 + $0x10] sm:$0xff] %vm358, -1e+30
        %362 = vst.msk [vmem:[#allocation4 + $0x18] sm:$0xff] %vm358, -1e+30
        %363 = vst.msk [vmem:[#allocation5] sm:$0xff] %vm358, 0.0
        %364 = vst.msk [vmem:[#allocation5 + $0x8] sm:$0xff] %vm358, 0.0
        %365 = vst.msk [vmem:[#allocation5 + $0x10] sm:$0xff] %vm358, 0.0
        %366 = vst.msk [vmem:[#allocation5 + $0x18] sm:$0xff] %vm358, 0.0
        %vm367 = vcmask 64512
        %368 = vst.msk [vmem:[#allocation6] sm:$0xff] %vm367, 0.0
        %369 = vst.msk [vmem:[#allocation6 + $0x8] sm:$0xff] %vm367, 0.0
        %370 = vst.msk [vmem:[#allocation6 + $0x10] sm:$0xff] %vm367, 0.0
        %371 = vst.msk [vmem:[#allocation6 + $0x18] sm:$0xff] %vm367, 0.0
      $region44: #{mybart_forward.18} parent=39 // pred_fallthru
        _
      %v372 = vld [vmem:[%s297] sm:$0xf]
      %v373 = vld [vmem:[%s303] sm:$0x1]
      %vm374 = vcmp.gt.f32.partialorder %v373, 0.5
      %v375 = vsel %vm374, 0.0, -1e+09
      %v376 = vld [vmem:[#allocation2] sm:$0xf]
      %v378 = vperm.slane %v375, 0
      %vm380 = vcmask 64512
      %v382 = vsel %vm380, %v376, 0
      %v385 = vsel %vm380, %v372, 0
      %387 = vmatpush.bf16.xpose.msra.mxu0 0
      %388 = vmatpush.bf16.xpose.msra.mxu0 0
      %389 = vmatpush.bf16.xpose.msra.mxu0 0
      %390 = vmatpush.bf16.xpose.msra.mxu0 0
      %391 = vmatpush.bf16.xpose.msra.mxu0 0
      %392 = vmatpush.bf16.xpose.msra.mxu0 0
      %393 = vmatpush.bf16.xpose.msra.mxu0 0
      %394 = vmatpush.bf16.xpose.msra.mxu0 %v385
      %395 = vmatmul.bf16.gmra.mxu0 %v382
      %v396 = vpop.f32.mrf.mxu0
      %v397 = vadd.f32 %v378, %v396
      %v398 = vpop.f32.mrf.mxu0
      %399 = vdwg.mxu0
      %v400 = vld [vmem:[#allocation4] sm:$0xff]
      %v401 = vsel %vm380, %v397, -inf
      %402 = vmax.xlane.f32.xlu0 %v401
      %v403 = vpop.xlane.xlu0 %402
      %v404 = vmax.f32 %v400, %v403
      %v405 = vsub.f32 %v400, %v404
      %v406 = vmul.f32 %v405, 1.442695
      %v407 = vpow.pop %v406
      %409 = vset.pattern.permute.xlu0 0
      %410 = vperm.xlu0 %409, %v404
      %v411 = vpop.permute.xlu0 %410
      %v413 = vsub.f32 %v397, %v411
      %v414 = vmul.f32 %v413, 1.442695
      %v415 = vpow.pop %v414
      %v416 = vld [vmem:[#allocation5] sm:$0xff]
      %v417 = vmul.f32 %v407, %v416
      %v418 = vsel %vm380, %v415, 0.0
      %419 = vadd.xlane.f32.xlu0 %v418
      %v420 = vpop.xlane.xlu0 %419
      %v421 = vadd.f32 %v417, %v420
      %vm422 = vcmask 7168
      %423 = vst.msk [vmem:[#allocation5] sm:$0xff] %vm422, %v421
      %v424 = vld [vmem:[#allocation6] sm:$0xff]
      %426 = vset.pattern.permute.xlu0 0
      %427 = vperm.xlu0 %426, %v407
      %v428 = vpop.permute.xlu0 %427
      %v430 = vmul.f32 %v428, %v424
      %v431 = vpack.c.bf16 %v415, %v415
      %v433 = vunpack.c.l.b16 %v372
      %v434 = vpack.c.b16 %v433, %v433
      %435 = vrot.lane.b32.xlu0 %v434, 96
      %v436 = vpop.permute.xlu0 %435
      %v438 = vsel %vm380, %v431, 0
      %vm440 = vcmask 1043456
      %v442 = vsel %vm440, %v436, 0
      %444 = vmatpush.bf16.msra.mxu0 0
      %445 = vmatpush.bf16.msra.mxu0 0
      %446 = vmatpush.bf16.msra.mxu0 0
      %447 = vmatpush.bf16.msra.mxu0 0
      %448 = vmatpush.bf16.msra.mxu0 0
      %449 = vmatpush.bf16.msra.mxu0 0
      %450 = vmatpush.bf16.msra.mxu0 0
      %451 = vmatpush.bf16.msra.mxu0 %v442
      %452 = vmatmul.bf16.gmra.mxu0 %v438
      %v453 = vpop.f32.mrf.mxu0
      %v454 = vadd.f32 0.0, %v453
      %v455 = vpop.f32.mrf.mxu0
      %456 = vdwg.mxu0
      %v457 = vadd.f32 %v430, %v454
      %458 = vst.msk [vmem:[#allocation6] sm:$0xff] %vm380, %v457
      %459 = vst.msk [vmem:[#allocation4] sm:$0xff] %vm422, %v404
      %v460 = vld [vmem:[#allocation2] sm:$0xf]
      %v462 = vunpack.c.l.b16 %v460
      %v463 = vpack.c.b16 %v462, %v462
      %464 = vrot.lane.b32.xlu0 %v463, 120
      %v465 = vpop.permute.xlu0 %464
      %466 = vrot.lane.b32.xlu0 %v434, 120
      %v467 = vpop.permute.xlu0 %466
      %v469 = vsel %vm380, %v465, 0
      %v472 = vsel %vm380, %v467, 0
      %474 = vmatpush.bf16.xpose.msra.mxu0 0
      %475 = vmatpush.bf16.xpose.msra.mxu0 0
      %476 = vmatpush.bf16.xpose.msra.mxu0 0
      %477 = vmatpush.bf16.xpose.msra.mxu0 0
      %478 = vmatpush.bf16.xpose.msra.mxu0 0
      %479 = vmatpush.bf16.xpose.msra.mxu0 0
      %480 = vmatpush.bf16.xpose.msra.mxu0 0
      %481 = vmatpush.bf16.xpose.msra.mxu0 %v472
      %482 = vmatmul.bf16.gmra.mxu0 %v469
      %v483 = vpop.f32.mrf.mxu0
      %v484 = vadd.f32 %v378, %v483
      %v485 = vpop.f32.mrf.mxu0
      %486 = vdwg.mxu0
      %s487 = scalar_lea.vmem [#allocation4], 8
      %v488 = vld [vmem:[%s487] sm:$0xff]
      %v489 = vsel %vm380, %v484, -inf
      %490 = vmax.xlane.f32.xlu0 %v489
      %v491 = vpop.xlane.xlu0 %490
      %v492 = vmax.f32 %v488, %v491
      %v493 = vsub.f32 %v488, %v492
      %v494 = vmul.f32 %v493, 1.442695
      %v495 = vpow.pop %v494
      %497 = vset.pattern.permute.xlu0 0
      %498 = vperm.xlu0 %497, %v492
      %v499 = vpop.permute.xlu0 %498
      %v501 = vsub.f32 %v484, %v499
      %v502 = vmul.f32 %v501, 1.442695
      %v503 = vpow.pop %v502
      %s504 = scalar_lea.vmem [#allocation5], 8
      %v505 = vld [vmem:[%s504] sm:$0xff]
      %v506 = vmul.f32 %v495, %v505
      %v507 = vsel %vm380, %v503, 0.0
      %508 = vadd.xlane.f32.xlu0 %v507
      %v509 = vpop.xlane.xlu0 %508
      %v510 = vadd.f32 %v506, %v509
      %511 = vst.msk [vmem:[%s504] sm:$0xff] %vm422, %v510
      %s512 = scalar_lea.vmem [#allocation6], 8
      %v513 = vld [vmem:[%s512] sm:$0xff]
      %515 = vset.pattern.permute.xlu0 0
      %516 = vperm.xlu0 %515, %v495
      %v517 = vpop.permute.xlu0 %516
      %v519 = vmul.f32 %v517, %v513
      %v520 = vpack.c.bf16 %v503, %v503
      %521 = vrot.lane.b32.xlu0 %v434, 88
      %v522 = vpop.permute.xlu0 %521
      %v524 = vsel %vm380, %v520, 0
      %v527 = vsel %vm440, %v522, 0
      %529 = vmatpush.bf16.msra.mxu0 0
      %530 = vmatpush.bf16.msra.mxu0 0
      %531 = vmatpush.bf16.msra.mxu0 0
      %532 = vmatpush.bf16.msra.mxu0 0
      %533 = vmatpush.bf16.msra.mxu0 0
      %534 = vmatpush.bf16.msra.mxu0 0
      %535 = vmatpush.bf16.msra.mxu0 0
      %536 = vmatpush.bf16.msra.mxu0 %v527
      %537 = vmatmul.bf16.gmra.mxu0 %v524
      %v538 = vpop.f32.mrf.mxu0
      %v539 = vadd.f32 0.0, %v538
      %v540 = vpop.f32.mrf.mxu0
      %541 = vdwg.mxu0
      %v542 = vadd.f32 %v519, %v539
      %543 = vst.msk [vmem:[%s512] sm:$0xff] %vm380, %v542
      %544 = vst.msk [vmem:[%s487] sm:$0xff] %vm422, %v492
      %v545 = vld [vmem:[#allocation2] sm:$0xf]
      %v547 = vunpack.c.l.b16 %v545
      %v548 = vpack.c.b16 %v547, %v547
      %549 = vrot.lane.b32.xlu0 %v548, 112
      %v550 = vpop.permute.xlu0 %549
      %551 = vrot.lane.b32.xlu0 %v434, 112
      %v552 = vpop.permute.xlu0 %551
      %v554 = vsel %vm380, %v550, 0
      %v557 = vsel %vm380, %v552, 0
      %559 = vmatpush.bf16.xpose.msra.mxu0 0
      %560 = vmatpush.bf16.xpose.msra.mxu0 0
      %561 = vmatpush.bf16.xpose.msra.mxu0 0
      %562 = vmatpush.bf16.xpose.msra.mxu0 0
      %563 = vmatpush.bf16.xpose.msra.mxu0 0
      %564 = vmatpush.bf16.xpose.msra.mxu0 0
      %565 = vmatpush.bf16.xpose.msra.mxu0 0
      %566 = vmatpush.bf16.xpose.msra.mxu0 %v557
      %567 = vmatmul.bf16.gmra.mxu0 %v554
      %v568 = vpop.f32.mrf.mxu0
      %v569 = vadd.f32 %v378, %v568
      %v570 = vpop.f32.mrf.mxu0
      %571 = vdwg.mxu0
      %s572 = scalar_lea.vmem [#allocation4], 16
      %v573 = vld [vmem:[%s572] sm:$0xff]
      %v574 = vsel %vm380, %v569, -inf
      %575 = vmax.xlane.f32.xlu0 %v574
      %v576 = vpop.xlane.xlu0 %575
      %v577 = vmax.f32 %v573, %v576
      %v578 = vsub.f32 %v573, %v577
      %v579 = vmul.f32 %v578, 1.442695
      %v580 = vpow.pop %v579
      %582 = vset.pattern.permute.xlu0 0
      %583 = vperm.xlu0 %582, %v577
      %v584 = vpop.permute.xlu0 %583
      %v586 = vsub.f32 %v569, %v584
      %v587 = vmul.f32 %v586, 1.442695
      %v588 = vpow.pop %v587
      %s589 = scalar_lea.vmem [#allocation5], 16
      %v590 = vld [vmem:[%s589] sm:$0xff]
      %v591 = vmul.f32 %v580, %v590
      %v592 = vsel %vm380, %v588, 0.0
      %593 = vadd.xlane.f32.xlu0 %v592
      %v594 = vpop.xlane.xlu0 %593
      %v595 = vadd.f32 %v591, %v594
      %596 = vst.msk [vmem:[%s589] sm:$0xff] %vm422, %v595
      %s597 = scalar_lea.vmem [#allocation6], 16
      %v598 = vld [vmem:[%s597] sm:$0xff]
      %600 = vset.pattern.permute.xlu0 0
      %601 = vperm.xlu0 %600, %v580
      %v602 = vpop.permute.xlu0 %601
      %v604 = vmul.f32 %v602, %v598
      %v605 = vpack.c.bf16 %v588, %v588
      %606 = vrot.lane.b32.xlu0 %v434, 80
      %v607 = vpop.permute.xlu0 %606
      %v609 = vsel %vm380, %v605, 0
      %v612 = vsel %vm440, %v607, 0
      %614 = vmatpush.bf16.msra.mxu0 0
      %615 = vmatpush.bf16.msra.mxu0 0
      %616 = vmatpush.bf16.msra.mxu0 0
      %617 = vmatpush.bf16.msra.mxu0 0
      %618 = vmatpush.bf16.msra.mxu0 0
      %619 = vmatpush.bf16.msra.mxu0 0
      %620 = vmatpush.bf16.msra.mxu0 0
      %621 = vmatpush.bf16.msra.mxu0 %v612
      %622 = vmatmul.bf16.gmra.mxu0 %v609
      %v623 = vpop.f32.mrf.mxu0
      %v624 = vadd.f32 0.0, %v623
      %v625 = vpop.f32.mrf.mxu0
      %626 = vdwg.mxu0
      %v627 = vadd.f32 %v604, %v624
      %628 = vst.msk [vmem:[%s597] sm:$0xff] %vm380, %v627
      %629 = vst.msk [vmem:[%s572] sm:$0xff] %vm422, %v577
      %v630 = vld [vmem:[#allocation2] sm:$0xf]
      %v632 = vunpack.c.l.b16 %v630
      %v633 = vpack.c.b16 %v632, %v632
      %634 = vrot.lane.b32.xlu0 %v633, 104
      %v635 = vpop.permute.xlu0 %634
      %636 = vrot.lane.b32.xlu0 %v434, 104
      %v637 = vpop.permute.xlu0 %636
      %v639 = vsel %vm380, %v635, 0
      %v642 = vsel %vm380, %v637, 0
      %644 = vmatpush.bf16.xpose.msra.mxu0 0
      %645 = vmatpush.bf16.xpose.msra.mxu0 0
      %646 = vmatpush.bf16.xpose.msra.mxu0 0
      %647 = vmatpush.bf16.xpose.msra.mxu0 0
      %648 = vmatpush.bf16.xpose.msra.mxu0 0
      %649 = vmatpush.bf16.xpose.msra.mxu0 0
      %650 = vmatpush.bf16.xpose.msra.mxu0 0
      %651 = vmatpush.bf16.xpose.msra.mxu0 %v642
      %652 = vmatmul.bf16.gmra.mxu0 %v639
      %v653 = vpop.f32.mrf.mxu0
      %v654 = vadd.f32 %v378, %v653
      %v655 = vpop.f32.mrf.mxu0
      %656 = vdwg.mxu0
      %s657 = scalar_lea.vmem [#allocation4], 24
      %v658 = vld [vmem:[%s657] sm:$0xff]
      %v659 = vsel %vm380, %v654, -inf
      %660 = vmax.xlane.f32.xlu0 %v659
      %v661 = vpop.xlane.xlu0 %660
      %v662 = vmax.f32 %v658, %v661
      %v663 = vsub.f32 %v658, %v662
      %v664 = vmul.f32 %v663, 1.442695
      %v665 = vpow.pop %v664
      %667 = vset.pattern.permute.xlu0 0
      %668 = vperm.xlu0 %667, %v662
      %v669 = vpop.permute.xlu0 %668
      %v671 = vsub.f32 %v654, %v669
      %v672 = vmul.f32 %v671, 1.442695
      %v673 = vpow.pop %v672
      %s674 = scalar_lea.vmem [#allocation5], 24
      %v675 = vld [vmem:[%s674] sm:$0xff]
      %v676 = vmul.f32 %v665, %v675
      %v677 = vsel %vm380, %v673, 0.0
      %678 = vadd.xlane.f32.xlu0 %v677
      %v679 = vpop.xlane.xlu0 %678
      %v680 = vadd.f32 %v676, %v679
      %681 = vst.msk [vmem:[%s674] sm:$0xff] %vm422, %v680
      %s682 = scalar_lea.vmem [#allocation6], 24
      %v683 = vld [vmem:[%s682] sm:$0xff]
      %685 = vset.pattern.permute.xlu0 0
      %686 = vperm.xlu0 %685, %v665
      %v687 = vpop.permute.xlu0 %686
      %v689 = vmul.f32 %v687, %v683
      %v690 = vpack.c.bf16 %v673, %v673
      %691 = vrot.lane.b32.xlu0 %v434, 72
      %v692 = vpop.permute.xlu0 %691
      %v694 = vsel %vm380, %v690, 0
      %v697 = vsel %vm440, %v692, 0
      %699 = vmatpush.bf16.msra.mxu0 0
      %700 = vmatpush.bf16.msra.mxu0 0
      %701 = vmatpush.bf16.msra.mxu0 0
      %702 = vmatpush.bf16.msra.mxu0 0
      %703 = vmatpush.bf16.msra.mxu0 0
      %704 = vmatpush.bf16.msra.mxu0 0
      %705 = vmatpush.bf16.msra.mxu0 0
      %706 = vmatpush.bf16.msra.mxu0 %v697
      %707 = vmatmul.bf16.gmra.mxu0 %v694
      %v708 = vpop.f32.mrf.mxu0
      %v709 = vadd.f32 0.0, %v708
      %v710 = vpop.f32.mrf.mxu0
      %711 = vdwg.mxu0
      %v712 = vadd.f32 %v689, %v709
      %713 = vst.msk [vmem:[%s682] sm:$0xff] %vm380, %v712
      %714 = vst.msk [vmem:[%s657] sm:$0xff] %vm422, %v662
      // Predicated region
      $region45: #{mybart_forward.18} parent=39 // pred_check
        %p715 = pneg %p312
      $region46: #{mybart_forward.18} parent=39 // pred_check_branch
        %717 = sbr.rel (%p715) target = $region48
      $region47: #{mybart_forward.18} parent=39 // pred_region
        %v718 = vld [vmem:[#allocation6] sm:$0xff]
        %v719 = vld [vmem:[#allocation5] sm:$0xff]
        %721 = vset.pattern.permute.xlu0 0
        %722 = vperm.xlu0 %721, %v719
        %v723 = vpop.permute.xlu0 %722
        %v725 = vrcp.pop %v723
        %v726 = vmul.f32 %v723, %v725
        %v727 = vsub.f32 1.0, %v726
        %v728 = vmul.f32 %v725, %v727
        %v729 = vadd.f32 %v725, %v728
        %vm730 = vweird.f32 %v723
        %vm731 = vweird.f32 %v725
        %vm732 = vmor %vm730, %vm731
        %v733 = vsel %vm732, %v725, %v729
        %v734 = vand.u32 2147483647, %v723
        %vm735 = vcmp.eq.f32.partialorder %v734, 8.507059e+37
        %v736 = vand.u32 %v723, 2147483648
        %v737 = vor.u32 1.1754944e-38, %v736
        %v738 = vsel %vm735, %v737, %v733
        %v739 = vmul.f32 %v718, %v738
        %v740 = vpack.c.bf16 %v739, %v739
        %vm741 = vcmask 60416
        %742 = vst.msk [vmem:[#allocation3] sm:$0xf] %vm741, %v740
        %v743 = vld [vmem:[%s512] sm:$0xff]
        %v744 = vld [vmem:[%s504] sm:$0xff]
        %746 = vset.pattern.permute.xlu0 0
        %747 = vperm.xlu0 %746, %v744
        %v748 = vpop.permute.xlu0 %747
        %v750 = vrcp.pop %v748
        %v751 = vmul.f32 %v748, %v750
        %v752 = vsub.f32 1.0, %v751
        %v753 = vmul.f32 %v750, %v752
        %v754 = vadd.f32 %v750, %v753
        %vm755 = vweird.f32 %v748
        %vm756 = vweird.f32 %v750
        %vm757 = vmor %vm755, %vm756
        %v758 = vsel %vm757, %v750, %v754
        %v759 = vand.u32 2147483647, %v748
        %vm760 = vcmp.eq.f32.partialorder %v759, 8.507059e+37
        %v761 = vand.u32 %v748, 2147483648
        %v762 = vor.u32 1.1754944e-38, %v761
        %v763 = vsel %vm760, %v762, %v758
        %v764 = vmul.f32 %v743, %v763
        %v765 = vpack.c.bf16 %v764, %v764
        %767 = vrot.lane.b32.xlu0 %v765, 8
        %v768 = vpop.permute.xlu0 %767
        %vm770 = vcmask 126016
        %771 = vst.msk [vmem:[#allocation3] sm:$0xf] %vm770, %v768
        %v772 = vld [vmem:[%s597] sm:$0xff]
        %v773 = vld [vmem:[%s589] sm:$0xff]
        %775 = vset.pattern.permute.xlu0 0
        %776 = vperm.xlu0 %775, %v773
        %v777 = vpop.permute.xlu0 %776
        %v779 = vrcp.pop %v777
        %v780 = vmul.f32 %v777, %v779
        %v781 = vsub.f32 1.0, %v780
        %v782 = vmul.f32 %v779, %v781
        %v783 = vadd.f32 %v779, %v782
        %vm784 = vweird.f32 %v777
        %vm785 = vweird.f32 %v779
        %vm786 = vmor %vm784, %vm785
        %v787 = vsel %vm786, %v779, %v783
        %v788 = vand.u32 2147483647, %v777
        %vm789 = vcmp.eq.f32.partialorder %v788, 8.507059e+37
        %v790 = vand.u32 %v777, 2147483648
        %v791 = vor.u32 1.1754944e-38, %v790
        %v792 = vsel %vm789, %v791, %v787
        %v793 = vmul.f32 %v772, %v792
        %v794 = vpack.c.bf16 %v793, %v793
        %796 = vrot.lane.b32.xlu0 %v794, 16
        %v797 = vpop.permute.xlu0 %796
        %vm799 = vcmask 191616
        %800 = vst.msk [vmem:[#allocation3] sm:$0xf] %vm799, %v797
        %v801 = vld [vmem:[%s682] sm:$0xff]
        %v802 = vld [vmem:[%s674] sm:$0xff]
        %804 = vset.pattern.permute.xlu0 0
        %805 = vperm.xlu0 %804, %v802
        %v806 = vpop.permute.xlu0 %805
        %v808 = vrcp.pop %v806
        %v809 = vmul.f32 %v806, %v808
        %v810 = vsub.f32 1.0, %v809
        %v811 = vmul.f32 %v808, %v810
        %v812 = vadd.f32 %v808, %v811
        %vm813 = vweird.f32 %v806
        %vm814 = vweird.f32 %v808
        %vm815 = vmor %vm813, %vm814
        %v816 = vsel %vm815, %v808, %v812
        %v817 = vand.u32 2147483647, %v806
        %vm818 = vcmp.eq.f32.partialorder %v817, 8.507059e+37
        %v819 = vand.u32 %v806, 2147483648
        %v820 = vor.u32 1.1754944e-38, %v819
        %v821 = vsel %vm818, %v820, %v816
        %v822 = vmul.f32 %v801, %v821
        %v823 = vpack.c.bf16 %v822, %v822
        %825 = vrot.lane.b32.xlu0 %v823, 24
        %v826 = vpop.permute.xlu0 %825
        %vm828 = vcmask 257216
        %829 = vst.msk [vmem:[#allocation3] sm:$0xf] %vm828, %v826
        %v830 = vld [vmem:[#allocation3] sm:$0xf]
        %vm831 = vcmask 257024
        %832 = vst.msk [vmem:[%s310] sm:$0xf] %vm831, %v830
      $region48: #{mybart_forward.18} parent=39 // pred_fallthru
        _
      %p833 = scmp.lt.s32.totalorder %s21, 1
      %s834 = scalar_select %p833, %s21, 1
      %p835 = scmp.lt.s32.totalorder %s22, 0
      %s836 = scalar_select %p835, %s22, 0
      %s837 = sadd.s32 %s836, %s834
      %s838 = smul.addr %s837, 4
      %s839 = scalar_lea.vmem %s5, %s838
      // Predicated region
      $region49: #{mybart_forward.18} parent=39 // pred_check
        %p840 = pneg %p181
      $region50: #{mybart_forward.18} parent=39 // pred_check_branch
        %842 = sbr.rel (%p840) target = $region52
      $region51: #{mybart_forward.18} parent=39 // pred_region
        _
      $region52: #{mybart_forward.18} parent=39 // pred_fallthru
        _
    $region40: #{mybart_forward.18} parent=5 // pred_fallthru
      _
    %p843 = scmp.le.s32.totalorder 2, %s11
    // Predicated region
    $region53: #{mybart_forward.18} parent=5 // pred_check
      %p844 = pneg %p843
    $region54: #{mybart_forward.18} parent=5 // pred_check_branch
      %846 = sbr.rel (%p844) target = $region56
    $region55: #{mybart_forward.18} parent=5 // pred_region
      %s847 = ssub.s32 %s11, 2
      // Predicated region
      $region57: #{mybart_forward.18} parent=55 // pred_check
        %p848 = pneg %p187
      $region58: #{mybart_forward.18} parent=55 // pred_check_branch
        %850 = sbr.rel (%p848) target = $region60
      $region59: #{mybart_forward.18} parent=55 // pred_region
        %p851 = scmp.lt.s32.totalorder %s24, 1
        %s852 = scalar_select %p851, %s24, 1
        %p853 = scmp.lt.s32.totalorder %s25, 0
        %s854 = scalar_select %p853, %s25, 0
        %s855 = sadd.s32 %s854, %s852
        %s856 = smul.addr %s855, 4
        %s857 = scalar_lea.vmem %s5, %s856
      $region60: #{mybart_forward.18} parent=55 // pred_fallthru
        _
    $region56: #{mybart_forward.18} parent=5 // pred_fallthru
      _
  $region6: #{mybart_forward.18} parent=0 // loop_footer
    %s15 = sadd.s32 1, %s11
  $region7: #{mybart_forward.18} parent=0 // loop_footer_branch
    %10 = sbr.rel target = $region3
  $region8: #{mybart_forward.18} parent=0 // loop_exit
    _

// kernel: mybart_forward.31
$region0: #{mybart_forward.31}
  #allocation0 [shape = 'u32[]', space=smem, size = 0x4, offset = 0x4, fixed_abs, tag = 'smem constant byte address 0x4 - core index']
  #allocation1 [shape = 'u32[72,128]{1,0:T(1,128)}', space=vmem, size = 0x9000, scoped, tag = 'internal scratch']
  #allocation2 [shape = 'f32[16,64]{1,0:T(8,128)}', space=vmem, size = 0x2000, scoped, tag = 'scratch operand']
  #allocation3 [shape = 'f32[16,1]{1,0:T(8,128)}', space=vmem, size = 0x2000, scoped, tag = 'scratch operand']
  #allocation4 [shape = 'f32[16,1]{1,0:T(8,128)}', space=vmem, size = 0x2000, scoped, tag = 'scratch operand']
  #allocation5 [shape = 'f32[16,1]{1,0:T(8,128)}', space=vmem, size = 0x2000, scoped, tag = 'scratch operand']
  %s0 = inlined_call_operand.vmem [shape: bf16[16,32], index: 0, kind: input, shape index: {}]
  %s1 = inlined_call_operand.vmem [shape: bf16[64,32], index: 1, kind: input, shape index: {}]
  %s2 = inlined_call_operand.vmem [shape: f32[1,64], index: 2, kind: input, shape index: {}]
  %s3 = inlined_call_operand.vmem [shape: s32[16,1], index: 3, kind: input, shape index: {}]
  %s4 = inlined_call_operand.hbm [shape: bf16[16,64], index: 4, kind: output, shape index: {0}]
  %s5 = inlined_call_operand.vmem [shape: f32[16,1], index: 5, kind: output, shape index: {1}]
  %6 = xla_tuple %s4, %s5
  %s7 = sld [smem:[#allocation0]]
  $region54: #{mybart_forward.31} parent=0
    _
  %s9 = ssub.s32 1, %s7
  %s10 = scalar_select 0, %s9, %s7
  $region1: #{mybart_forward.31} parent=0
    #allocation6 [shape = 'u8[4096]{0}', space=vmem, size = 0x1000, scoped, tag = 'output window, operand 0, single buffered']
    #allocation7 [shape = 's32[1]{0}', space=sflag, size = 0x4, scoped, tag = 'scoped memory for mybart_forward.31']
    %11 = vsyncpa [#allocation7], 0
    // Predicated region
    $region2: #{mybart_forward.31} parent=1 // pred_check
      _
    $region3: #{mybart_forward.31} parent=1 // pred_check_branch
      %13 = sbr.rel (0) target = $region5
    $region4: #{mybart_forward.31} parent=1 // pred_region
      _
    $region5: #{mybart_forward.31} parent=1 // pred_fallthru
      _
    // Predicated region
    $region6: #{mybart_forward.31} parent=1 // pred_check
      _
    $region7: #{mybart_forward.31} parent=1 // pred_check_branch
      %15 = sbr.rel (0) target = $region9
    $region8: #{mybart_forward.31} parent=1 // pred_region
      _
    $region9: #{mybart_forward.31} parent=1 // pred_fallthru
      _
    // Predicated region
    $region10: #{mybart_forward.31} parent=1 // pred_check
      _
    $region11: #{mybart_forward.31} parent=1 // pred_check_branch
      %17 = sbr.rel (0) target = $region13
    $region12: #{mybart_forward.31} parent=1 // pred_region
      _
    $region13: #{mybart_forward.31} parent=1 // pred_fallthru
      _
    // Predicated region
    $region14: #{mybart_forward.31} parent=1 // pred_check
      _
    $region15: #{mybart_forward.31} parent=1 // pred_check_branch
      %19 = sbr.rel (0) target = $region17
    $region16: #{mybart_forward.31} parent=1 // pred_region
      _
    $region17: #{mybart_forward.31} parent=1 // pred_fallthru
      _
    %p21 = scmp.eq.s32.totalorder 0, 0
    %p22 = scmp.eq.s32.totalorder 0, 0
    %p23 = pnand %p21, %p22
    %p24 = pneg %p23
    // Predicated region
    $region18: #{mybart_forward.31} parent=1 // pred_check
      _
    $region19: #{mybart_forward.31} parent=1 // pred_check_branch
      %26 = sbr.rel (%p23) target = $region21
    $region20: #{mybart_forward.31} parent=1 // pred_region
      %vm27 = vcmask 7168
      %28 = vst.msk [vmem:[#allocation3] sm:$0xff] %vm27, -1e+30
      %29 = vst.msk [vmem:[#allocation3 + $0x8] sm:$0xff] %vm27, -1e+30
      %30 = vst.msk [vmem:[#allocation4] sm:$0xff] %vm27, 0.0
      %31 = vst.msk [vmem:[#allocation4 + $0x8] sm:$0xff] %vm27, 0.0
      %32 = vst.msk [vmem:[#allocation5] sm:$0xff] %vm27, 0.0
      %33 = vst.msk [vmem:[#allocation5 + $0x8] sm:$0xff] %vm27, 0.0
    $region21: #{mybart_forward.31} parent=1 // pred_fallthru
      _
    %v34 = vld [vmem:[%s0] sm:$0xf]
    %v35 = vld [vmem:[%s0 + $0x4] sm:$0xf]
    %v36 = vld [vmem:[%s1] sm:$0xf]
    %v37 = vld [vmem:[%s1 + $0x4] sm:$0xf]
    %v38 = vld [vmem:[%s1 + $0x8] sm:$0xf]
    %v39 = vld [vmem:[%s1 + $0xc] sm:$0xf]
    %v40 = vld [vmem:[%s1 + $0x10] sm:$0xf]
    %v41 = vld [vmem:[%s1 + $0x14] sm:$0xf]
    %v42 = vld [vmem:[%s1 + $0x18] sm:$0xf]
    %v43 = vld [vmem:[%s1 + $0x1c] sm:$0xf]
    %v46 = vunpack.c.l.b16 %v34
    %v47 = vunpack.c.l.b16 %v35
    %v48 = vpack.c.b16 %v47, %v46
    %v57 = vunpack.c.l.b16 %v36
    %v58 = vunpack.c.l.b16 %v37
    %v59 = vunpack.c.l.b16 %v38
    %v60 = vunpack.c.l.b16 %v39
    %v61 = vunpack.c.l.b16 %v40
    %v62 = vunpack.c.l.b16 %v41
    %v63 = vunpack.c.l.b16 %v42
    %v64 = vunpack.c.l.b16 %v43
    %v65 = vpack.c.b16 %v58, %v57
    %v66 = vpack.c.b16 %v60, %v59
    %v67 = vpack.c.b16 %v62, %v61
    %v68 = vpack.c.b16 %v64, %v63
    %vm69 = vcmask 261120
    %v71 = vsel %vm69, %v48, 0
    %v74 = vsel %vm69, %v65, 0
    %v77 = vsel %vm69, %v66, 0
    %v80 = vsel %vm69, %v67, 0
    %v83 = vsel %vm69, %v68, 0
    %85 = vmatpush.bf16.xpose.msra.mxu0 0
    %86 = vmatpush.bf16.xpose.msra.mxu0 0
    %87 = vmatpush.bf16.xpose.msra.mxu0 0
    %88 = vmatpush.bf16.xpose.msra.mxu0 0
    %89 = vmatpush.bf16.xpose.msra.mxu0 %v83
    %90 = vmatpush.bf16.xpose.msra.mxu0 %v80
    %91 = vmatpush.bf16.xpose.msra.mxu0 %v77
    %92 = vmatpush.bf16.xpose.msra.mxu0 %v74
    %93 = vmatmul.bf16.gmra.mxu0 %v71
    %v94 = vpop.f32.mrf.mxu0
    %v95 = vadd.f32 0.0, %v94
    %v96 = vpop.f32.mrf.mxu0
    %v97 = vadd.f32 0.0, %v96
    %98 = vdwg.mxu0
    // Predicated region
    $region22: #{mybart_forward.31} parent=1 // pred_check
      %p99 = pneg %p22
    $region23: #{mybart_forward.31} parent=1 // pred_check_branch
      %101 = sbr.rel (%p99) target = $region25
    $region24: #{mybart_forward.31} parent=1 // pred_region
      %vm102 = vcmask 523264
      %103 = vst.msk [vmem:[#allocation2] sm:$0xff] %vm102, %v95
      %104 = vst.msk [vmem:[#allocation2 + $0x8] sm:$0xff] %vm102, %v97
    $region25: #{mybart_forward.31} parent=1 // pred_fallthru
      _
    %p105 = scmp.gt.s32.totalorder 0, 0
    // Predicated region
    $region26: #{mybart_forward.31} parent=1 // pred_check
      %p106 = pneg %p105
    $region27: #{mybart_forward.31} parent=1 // pred_check_branch
      %108 = sbr.rel (%p106) target = $region29
    $region28: #{mybart_forward.31} parent=1 // pred_region
      %v109 = vld [vmem:[#allocation2] sm:$0xff]
      %v110 = vld [vmem:[#allocation2 + $0x8] sm:$0xff]
      %v111 = vadd.f32 %v109, %v95
      %v112 = vadd.f32 %v110, %v97
      %vm113 = vcmask 523264
      %114 = vst.msk [vmem:[#allocation2] sm:$0xff] %vm113, %v111
      %115 = vst.msk [vmem:[#allocation2 + $0x8] sm:$0xff] %vm113, %v112
    $region29: #{mybart_forward.31} parent=1 // pred_fallthru
      _
    // Predicated region
    $region30: #{mybart_forward.31} parent=1 // pred_check
      %p116 = pneg %p22
    $region31: #{mybart_forward.31} parent=1 // pred_check_branch
      %118 = sbr.rel (%p116) target = $region33
    $region32: #{mybart_forward.31} parent=1 // pred_region
      %v119 = vld [vmem:[#allocation2] sm:$0xff]
      %v120 = vld [vmem:[#allocation2 + $0x8] sm:$0xff]
      %v121 = vld [vmem:[%s2] sm:$0x1]
      %v123 = vperm.slane %v121, 0
      %v125 = vadd.f32 %v119, %v123
      %v126 = vadd.f32 %v120, %v123
      %v127 = vpack.c.bf16 %v125, %v125
      %v128 = vpack.c.bf16 %v126, %v126
      %vm129 = vcmask 519168
      %130 = vst.msk [vmem:[#allocation6] sm:$0xf] %vm129, %v127
      %131 = vst.msk [vmem:[#allocation6 + $0x4] sm:$0xf] %vm129, %v128
      %v132 = vlaneseq
      %v133 = vand.u32 %v132, 127
      %s134 = smul.u32 0, 64
      %v135 = vstv %s134
      %v136 = vadd.s32 %v133, %v135
      %v137 = vld [vmem:[%s3] sm:$0xff]
      %v138 = vld [vmem:[%s3 + $0x8] sm:$0xff]
      %v139 = vld [vmem:[#allocation5] sm:$0xff]
      %v140 = vld [vmem:[#allocation5 + $0x8] sm:$0xff]
      %141 = vset.pattern.permute.xlu0 0
      %142 = vperm.xlu0 %141, %v137
      %v143 = vpop.permute.xlu0 %142
      %144 = vset.pattern.permute.xlu0 0
      %145 = vperm.xlu0 %144, %v138
      %v146 = vpop.permute.xlu0 %145
      %vm147 = vcmp.eq.s32.totalorder %v136, %v143
      %vm148 = vcmp.eq.s32.totalorder %v136, %v146
      %v149 = vsel %vm147, %v125, 0.0
      %v150 = vsel %vm148, %v126, 0.0
      %vm151 = vcmask 523264
      %v152 = vsel %vm151, %v149, 0.0
      %153 = vadd.xlane.f32.xlu0 %v152
      %v154 = vpop.xlane.xlu0 %153
      %v155 = vsel %vm151, %v150, 0.0
      %156 = vadd.xlane.f32.xlu0 %v155
      %v157 = vpop.xlane.xlu0 %156
      %v158 = vadd.f32 %v139, %v154
      %v159 = vadd.f32 %v140, %v157
      %vm160 = vcmask 7168
      %161 = vst.msk [vmem:[#allocation5] sm:$0xff] %vm160, %v158
      %162 = vst.msk [vmem:[#allocation5 + $0x8] sm:$0xff] %vm160, %v159
      %v163 = vld [vmem:[#allocation3] sm:$0xff]
      %v164 = vld [vmem:[#allocation3 + $0x8] sm:$0xff]
      %v165 = vsel %vm151, %v125, -inf
      %166 = vmax.xlane.f32.xlu0 %v165
      %v167 = vpop.xlane.xlu0 %166
      %v168 = vsel %vm151, %v126, -inf
      %169 = vmax.xlane.f32.xlu0 %v168
      %v170 = vpop.xlane.xlu0 %169
      %v171 = vmax.f32 %v163, %v167
      %v172 = vmax.f32 %v164, %v170
      %v173 = vld [vmem:[#allocation4] sm:$0xff]
      %v174 = vld [vmem:[#allocation4 + $0x8] sm:$0xff]
      %v175 = vsub.f32 %v163, %v171
      %v176 = vsub.f32 %v164, %v172
      %v177 = vmul.f32 %v175, 1.442695
      %v178 = vpow.pop %v177
      %v179 = vmul.f32 %v176, 1.442695
      %v180 = vpow.pop %v179
      %v181 = vmul.f32 %v173, %v178
      %v182 = vmul.f32 %v174, %v180
      %184 = vset.pattern.permute.xlu0 0
      %185 = vperm.xlu0 %184, %v171
      %v186 = vpop.permute.xlu0 %185
      %189 = vset.pattern.permute.xlu0 0
      %190 = vperm.xlu0 %189, %v172
      %v191 = vpop.permute.xlu0 %190
      %v193 = vsub.f32 %v125, %v186
      %v194 = vsub.f32 %v126, %v191
      %v195 = vmul.f32 %v193, 1.442695
      %v196 = vpow.pop %v195
      %v197 = vmul.f32 %v194, 1.442695
      %v198 = vpow.pop %v197
      %v199 = vsel %vm151, %v196, 0.0
      %200 = vadd.xlane.f32.xlu0 %v199
      %v201 = vpop.xlane.xlu0 %200
      %v202 = vsel %vm151, %v198, 0.0
      %203 = vadd.xlane.f32.xlu0 %v202
      %v204 = vpop.xlane.xlu0 %203
      %v205 = vadd.f32 %v181, %v201
      %v206 = vadd.f32 %v182, %v204
      %207 = vst.msk [vmem:[#allocation4] sm:$0xff] %vm160, %v205
      %208 = vst.msk [vmem:[#allocation4 + $0x8] sm:$0xff] %vm160, %v206
      %209 = vst.msk [vmem:[#allocation3] sm:$0xff] %vm160, %v171
      %210 = vst.msk [vmem:[#allocation3 + $0x8] sm:$0xff] %vm160, %v172
    $region33: #{mybart_forward.31} parent=1 // pred_fallthru
      _
    // Predicated region
    $region34: #{mybart_forward.31} parent=1 // pred_check
      _
    $region35: #{mybart_forward.31} parent=1 // pred_check_branch
      %212 = sbr.rel (%p23) target = $region37
    $region36: #{mybart_forward.31} parent=1 // pred_region
      %v213 = vld [vmem:[#allocation4] sm:$0xff]
      %v214 = vld [vmem:[#allocation4 + $0x8] sm:$0xff]
      %v215 = vlog2.pop %v213
      %v216 = vmul.f32 %v215, 0.6931472
      %v217 = vlog2.pop %v214
      %v218 = vmul.f32 %v217, 0.6931472
      %v219 = vld [vmem:[#allocation3] sm:$0xff]
      %v220 = vld [vmem:[#allocation3 + $0x8] sm:$0xff]
      %v221 = vadd.f32 %v216, %v219
      %v222 = vadd.f32 %v218, %v220
      %v223 = vld [vmem:[#allocation5] sm:$0xff]
      %v224 = vld [vmem:[#allocation5 + $0x8] sm:$0xff]
      %v225 = vsub.f32 %v221, %v223
      %v226 = vsub.f32 %v222, %v224
      %v227 = vld [vmem:[%s3] sm:$0xff]
      %v228 = vld [vmem:[%s3 + $0x8] sm:$0xff]
      %vm229 = vcmp.ge.s32.totalorder %v227, 0
      %vm230 = vcmp.ge.s32.totalorder %v228, 0
      %v231 = vsel %vm229, %v225, 0.0
      %v232 = vsel %vm230, %v226, 0.0
      %vm233 = vcmask 7168
      %234 = vst.msk [vmem:[%s5] sm:$0xff] %vm233, %v231
      %235 = vst.msk [vmem:[%s5 + $0x8] sm:$0xff] %vm233, %v232
    $region37: #{mybart_forward.31} parent=1 // pred_fallthru
      _
    // Predicated region
    $region38: #{mybart_forward.31} parent=1 // pred_check
      _
    $region39: #{mybart_forward.31} parent=1 // pred_check_branch
      %237 = sbr.rel (0) target = $region41
    $region40: #{mybart_forward.31} parent=1 // pred_region
      %239 = vsyncadd [#allocation7], 0
      %s240 = sshll.u32 [#allocation6], 4
      %s241 = int_to_ptr.vmem [resolvable:$true] %s240
      %s242 = sshll.u32 %s4, 4
      %s243 = int_to_ptr.hbm [resolvable:$true] %s242
      %248 = dma.vmem_to_hbm [thread:$0]  %s241, 128, %s243, [#allocation7], 64, 64, 4
    $region41: #{mybart_forward.31} parent=1 // pred_fallthru
      _
    // Predicated region
    $region42: #{mybart_forward.31} parent=1 // pred_check
      _
    $region43: #{mybart_forward.31} parent=1 // pred_check_branch
      %250 = sbr.rel (0) target = $region45
    $region44: #{mybart_forward.31} parent=1 // pred_region
      _
    $region45: #{mybart_forward.31} parent=1 // pred_fallthru
      _
    // Predicated region
    $region46: #{mybart_forward.31} parent=1 // pred_check
      _
    $region47: #{mybart_forward.31} parent=1 // pred_check_branch
      %252 = sbr.rel (0) target = $region49
    $region48: #{mybart_forward.31} parent=1 // pred_region
      %254 = dma.done [#allocation7], 128
    $region49: #{mybart_forward.31} parent=1 // pred_fallthru
      _
    // Predicated region
    $region50: #{mybart_forward.31} parent=1 // pred_check
      _
    $region51: #{mybart_forward.31} parent=1 // pred_check_branch
      %256 = sbr.rel (0) target = $region53
    $region52: #{mybart_forward.31} parent=1 // pred_region
      _
    $region53: #{mybart_forward.31} parent=1 // pred_fallthru
      _
    %257 = vsyncpa [#allocation7], 1

</llo_original>
